<compile_context>
chip_gen: v7x
topology: tpu7x:2x2x1
jax: 0.10.0
libtpu: 0.0.40
codegen_flags: <defaults>
</compile_context>

<pallas_src>
import functools

import jax
import jax.numpy as jnp
from jax import lax
from jax.experimental import pallas as pl
from jax.experimental.pallas import tpu as pltpu


def _mean_var(v, count):
    """Two-pass per-channel mean/variance over the (H, W) axes of an (H, W, C) value."""
    s = jnp.sum(v, axis=0, keepdims=True)
    s = jnp.sum(s, axis=1, keepdims=True)
    mean = s / count
    d = v - mean
    s2 = jnp.sum(d * d, axis=0, keepdims=True)
    s2 = jnp.sum(s2, axis=1, keepdims=True)
    var = s2 / count
    return mean, var


def _resblock2_kernel(x_ref, w1_ref, b1_ref, w2_ref, b2_ref, out_ref,
                      xp_ref, hp_ref, h2_ref, *, H, W, C, eps):
    """Fused ResBlock2 forward for one sample.

    x_ref   : (1, H, W, C)   input sample (NHWC block)
    w*_ref  : (9, C, C)      3x3 conv weights, tap-major: w[ky*3+kx] is (C_in, C_out)
    b*_ref  : (1, C)         conv biases
    out_ref : (1, H, W, C)
    xp_ref  : (H, W+2, C)    scratch: column-reflect-padded input
    hp_ref  : (H, W+2, C)    scratch: column-reflect-padded intermediate
    h2_ref  : (H, W, C)      scratch: second conv output
    """
    count = jnp.float32(H * W)

    xv = x_ref[0]                                             # (H, W, C)

    # Column reflect-pad x into scratch (row reflection handled via index math below;
    # reflection padding is separable, so this reproduces ReflectionPad2d(1)).
    xp_ref[:, 1:W + 1, :] = xv
    xp_ref[:, 0:1, :] = xv[:, 1:2, :]
    xp_ref[:, W + 1:W + 2, :] = xv[:, W - 2:W - 1, :]

    w1 = w1_ref[...]
    w2 = w2_ref[...]
    b1 = b1_ref[...]
    b2 = b2_ref[...]

    def conv3x3_rows(src_ref, w, b, dst_ref, dst_col_off):
        """3x3 reflect-padded conv.  src_ref is column-padded (H, W+2, C); vertical
        reflection is done with reflected row indices; one output row per loop step."""

        @pl.loop(0, H)
        def _(y):
            acc = jnp.zeros((W, C), jnp.float32) + b          # (W, C), bias broadcast
            for ky in range(3):
                ry = y + (ky - 1)
                ry = jnp.where(ry < 0, -ry, ry)               # reflect top edge
                ry = jnp.where(ry > H - 1, 2 * (H - 1) - ry, ry)  # reflect bottom edge
                for kx in range(3):
                    patch = src_ref[ry, pl.ds(kx, W), :]      # (W, C_in), lane-dense C
                    acc = acc + jnp.dot(patch, w[ky * 3 + kx],
                                        preferred_element_type=jnp.float32)
            dst_ref[y, pl.ds(dst_col_off, W), :] = acc

    # ---- conv1 -> InstanceNorm -> ReLU (stays entirely in VMEM) ----
    conv3x3_rows(xp_ref, w1, b1, hp_ref, 1)
    h1 = hp_ref[:, 1:W + 1, :]                                # (H, W, C)
    m1, v1 = _mean_var(h1, count)
    y1 = jnp.maximum((h1 - m1) * lax.rsqrt(v1 + eps), 0.0)
    # TODO(synk): Dropout(0.5) for use_dropout=True would go here (pltpu.prng_* + mask).
    hp_ref[:, 1:W + 1, :] = y1                                # re-pad columns by reflection
    hp_ref[:, 0:1, :] = y1[:, 1:2, :]
    hp_ref[:, W + 1:W + 2, :] = y1[:, W - 2:W - 1, :]

    # ---- conv2 -> InstanceNorm ----
    conv3x3_rows(hp_ref, w2, b2, h2_ref, 0)
    h2 = h2_ref[...]
    m2, v2 = _mean_var(h2, count)
    y2 = (h2 - m2) * lax.rsqrt(v2 + eps)

    # ---- residual add + ReLU ----
    out_ref[0] = jnp.maximum(xv + y2, 0.0).astype(out_ref.dtype)


def resblock2_forward(x_nchw, params, *, eps=1e-5):
    """x_nchw: (N, C, H, W) float32.  params hold PyTorch-layout conv weights/biases."""
    n, c, h, w = x_nchw.shape

    # PyTorch OIHW (C_out, C_in, 3, 3) -> 9 per-tap (C_in, C_out) matmul matrices.
    def taps(w_oihw):
        return jnp.transpose(w_oihw, (2, 3, 1, 0)).reshape(9, c, c)

    w1 = taps(params["w1"].astype(jnp.float32))
    w2 = taps(params["w2"].astype(jnp.float32))
    b1 = params["b1"].reshape(1, c).astype(jnp.float32)
    b2 = params["b2"].reshape(1, c).astype(jnp.float32)

    x_nhwc = jnp.transpose(x_nchw, (0, 2, 3, 1)).astype(jnp.float32)

    kernel = functools.partial(_resblock2_kernel, H=h, W=w, C=c, eps=eps)
    out_nhwc = pl.pallas_call(
        kernel,
        out_shape=jax.ShapeDtypeStruct((n, h, w, c), jnp.float32),
        grid_spec=pltpu.PrefetchScalarGridSpec(
            num_scalar_prefetch=0,
            grid=(n,),
            in_specs=[
                pl.BlockSpec((1, h, w, c), lambda i: (i, 0, 0, 0)),
                pl.BlockSpec((9, c, c), lambda i: (0, 0, 0)),
                pl.BlockSpec((1, c), lambda i: (0, 0)),
                pl.BlockSpec((9, c, c), lambda i: (0, 0, 0)),
                pl.BlockSpec((1, c), lambda i: (0, 0)),
            ],
            out_specs=pl.BlockSpec((1, h, w, c), lambda i: (i, 0, 0, 0)),
            scratch_shapes=[
                pltpu.VMEM((h, w + 2, c), jnp.float32),   # column-padded x
                pltpu.VMEM((h, w + 2, c), jnp.float32),   # column-padded intermediate
                pltpu.VMEM((h, w, c), jnp.float32),       # conv2 output
            ],
        ),
        compiler_params=pltpu.CompilerParams(
            dimension_semantics=("parallel",)),   # samples independent -> megacore on v7x
    )(x_nhwc, w1, b1, w2, b2)

    return jnp.transpose(out_nhwc, (0, 3, 1, 2))


def _reference_forward(x_nchw, params, eps=1e-5):
    """Pure-JAX reference of ResBlock2 (reflect pad, InstanceNorm2d affine=False)."""
    def conv3x3_reflect(x, w_oihw, b):
        xp = jnp.pad(x, ((0, 0), (0, 0), (1, 1), (1, 1)), mode="reflect")
        y = lax.conv_general_dilated(
            xp, w_oihw, window_strides=(1, 1), padding="VALID",
            dimension_numbers=("NCHW", "OIHW", "NCHW"),
            precision=lax.Precision.HIGHEST)
        return y + b.reshape(1, -1, 1, 1)

    def instance_norm(y):
        m = jnp.mean(y, axis=(2, 3), keepdims=True)
        v = jnp.mean((y - m) ** 2, axis=(2, 3), keepdims=True)
        return (y - m) * lax.rsqrt(v + eps)

    h = jax.nn.relu(instance_norm(conv3x3_reflect(x_nchw, params["w1"], params["b1"])))
    h = instance_norm(conv3x3_reflect(h, params["w2"], params["b2"]))
    return jax.nn.relu(x_nchw + h)


if __name__ == "__main__":
    key = jax.random.PRNGKey(0)
    kx, kw1, kw2, kb1, kb2 = jax.random.split(key, 5)

    # Small shapes: batch=2, dim=4 channels, spatial 16x16.
    N, DIM, H, W = 2, 4, 16, 16
    x = jax.random.normal(kx, (N, DIM, H, W), jnp.float32)
    params = {
        "w1": 0.2 * jax.random.normal(kw1, (DIM, DIM, 3, 3), jnp.float32),
        "b1": 0.1 * jax.random.normal(kb1, (DIM,), jnp.float32),
        "w2": 0.2 * jax.random.normal(kw2, (DIM, DIM, 3, 3), jnp.float32),
        "b2": 0.1 * jax.random.normal(kb2, (DIM,), jnp.float32),
    }

    fwd = jax.jit(resblock2_forward)
    out = jax.block_until_ready(fwd(x, params))

    ref = _reference_forward(x, params)
    assert out.shape == (N, DIM, H, W), out.shape
    max_err = float(jnp.max(jnp.abs(out - ref)))
    assert jnp.allclose(out, ref, atol=2e-3, rtol=2e-3), max_err

    print("KERNEL_OK")
</pallas_src>

<mosaic_0001>
module attributes {stable_mosaic.version = 11 : i64} {
  func.func @_resblock2_kernel(%arg0: i32, %arg1: memref<1x16x16x4xf32, #tpu.memory_space<vmem>>, %arg2: memref<9x4x4xf32, #tpu.memory_space<vmem>>, %arg3: memref<1x4xf32, #tpu.memory_space<vmem>>, %arg4: memref<9x4x4xf32, #tpu.memory_space<vmem>>, %arg5: memref<1x4xf32, #tpu.memory_space<vmem>>, %arg6: memref<1x16x16x4xf32, #tpu.memory_space<vmem>>, %arg7: memref<16x18x4xf32, #tpu.memory_space<vmem>>, %arg8: memref<16x18x4xf32, #tpu.memory_space<vmem>>, %arg9: memref<16x16x4xf32, #tpu.memory_space<vmem>>) attributes {dimension_semantics = [#tpu.dimension_semantics<parallel>], iteration_bounds = array<i64: 2>, scalar_prefetch = 0 : i64, scratch_operands = 3 : i64, tpu.core_type = #tpu.core_type<tc>, window_params = [{transform_indices = @transform_0, window_bounds = array<i64: 1, 16, 16, 4>}, {pipeline_mode = #tpu.pipeline_mode<synchronous>, transform_indices = @transform_1, window_bounds = array<i64: 9, 4, 4>}, {pipeline_mode = #tpu.pipeline_mode<synchronous>, transform_indices = @transform_2, window_bounds = array<i64: 1, 4>}, {pipeline_mode = #tpu.pipeline_mode<synchronous>, transform_indices = @transform_3, window_bounds = array<i64: 9, 4, 4>}, {pipeline_mode = #tpu.pipeline_mode<synchronous>, transform_indices = @transform_4, window_bounds = array<i64: 1, 4>}, {transform_indices = @transform_5, window_bounds = array<i64: 1, 16, 16, 4>}]} {
    %c0 = arith.constant 0 : index
    %c0_0 = arith.constant 0 : index
    %c0_1 = arith.constant 0 : index
    %c0_2 = arith.constant 0 : index
    %0 = vector.load %arg1[%c0, %c0_0, %c0_1, %c0_2] : memref<1x16x16x4xf32, #tpu.memory_space<vmem>>, vector<1x16x16x4xf32>
    %1 = vector.shape_cast %0 : vector<1x16x16x4xf32> to vector<16x16x4xf32>
    %c0_3 = arith.constant 0 : index
    %c1 = arith.constant 1 : index
    %c0_4 = arith.constant 0 : index
    %2 = vector.load %arg7[%c0_3, %c1, %c0_4] : memref<16x18x4xf32, #tpu.memory_space<vmem>>, vector<16x16x4xf32>
    tpu.vector_store %arg7[%c0_3, %c1, %c0_4], %1 {strides = array<i32>} : memref<16x18x4xf32, #tpu.memory_space<vmem>>, vector<16x16x4xf32>,
    %3 = vector.extract_strided_slice %1 {offsets = [0, 1, 0], sizes = [16, 1, 4], strides = [1, 1, 1]} : vector<16x16x4xf32> to vector<16x1x4xf32>
    %c0_5 = arith.constant 0 : index
    %c0_6 = arith.constant 0 : index
    %c0_7 = arith.constant 0 : index
    %4 = vector.load %arg7[%c0_5, %c0_6, %c0_7] : memref<16x18x4xf32, #tpu.memory_space<vmem>>, vector<16x1x4xf32>
    tpu.vector_store %arg7[%c0_5, %c0_6, %c0_7], %3 {strides = array<i32>} : memref<16x18x4xf32, #tpu.memory_space<vmem>>, vector<16x1x4xf32>,
    %5 = vector.extract_strided_slice %1 {offsets = [0, 14, 0], sizes = [16, 1, 4], strides = [1, 1, 1]} : vector<16x16x4xf32> to vector<16x1x4xf32>
    %c0_8 = arith.constant 0 : index
    %c17 = arith.constant 17 : index
    %c0_9 = arith.constant 0 : index
    %6 = vector.load %arg7[%c0_8, %c17, %c0_9] : memref<16x18x4xf32, #tpu.memory_space<vmem>>, vector<16x1x4xf32>
    tpu.vector_store %arg7[%c0_8, %c17, %c0_9], %5 {strides = array<i32>} : memref<16x18x4xf32, #tpu.memory_space<vmem>>, vector<16x1x4xf32>,
    %c0_10 = arith.constant 0 : index
    %c0_11 = arith.constant 0 : index
    %c0_12 = arith.constant 0 : index
    %7 = vector.load %arg2[%c0_10, %c0_11, %c0_12] : memref<9x4x4xf32, #tpu.memory_space<vmem>>, vector<9x4x4xf32>
    %c0_13 = arith.constant 0 : index
    %c0_14 = arith.constant 0 : index
    %c0_15 = arith.constant 0 : index
    %8 = vector.load %arg4[%c0_13, %c0_14, %c0_15] : memref<9x4x4xf32, #tpu.memory_space<vmem>>, vector<9x4x4xf32>
    %c0_16 = arith.constant 0 : index
    %c0_17 = arith.constant 0 : index
    %9 = vector.load %arg3[%c0_16, %c0_17] : memref<1x4xf32, #tpu.memory_space<vmem>>, vector<1x4xf32>
    %c0_18 = arith.constant 0 : index
    %c0_19 = arith.constant 0 : index
    %10 = vector.load %arg5[%c0_18, %c0_19] : memref<1x4xf32, #tpu.memory_space<vmem>>, vector<1x4xf32>
    %c0_i32 = arith.constant 0 : i32
    %c16_i32 = arith.constant 16 : i32
    %11 = arith.addi %c0_i32, %c16_i32 : i32
    %c1_i32 = arith.constant 1 : i32
    scf.for %arg10 = %c0_i32 to %11 step %c1_i32  : i32 {
      %c1_i32_59 = arith.constant 1 : i32
      %72 = arith.muli %arg10, %c1_i32_59 : i32
      %c0_i32_60 = arith.constant 0 : i32
      %73 = arith.addi %c0_i32_60, %72 : i32
      %cst_61 = arith.constant 0.000000e+00 : f32
      %74 = vector.broadcast %cst_61 : f32 to vector<16x4xf32>
      %75 = vector.broadcast %9 : vector<1x4xf32> to vector<16x4xf32>
      %76 = arith.addf %74, %75 : vector<16x4xf32>
      %c-1_i32 = arith.constant -1 : i32
      %77 = arith.addi %73, %c-1_i32 : i32
      %c0_i32_62 = arith.constant 0 : i32
      %78 = arith.cmpi slt, %77, %c0_i32_62 : i32
      %c0_i32_63 = arith.constant 0 : i32
      %79 = arith.subi %c0_i32_63, %77 : i32
      %80 = arith.select %78, %79, %77 : i32
      %c15_i32 = arith.constant 15 : i32
      %81 = arith.cmpi sgt, %80, %c15_i32 : i32
      %c30_i32 = arith.constant 30 : i32
      %82 = arith.subi %c30_i32, %80 : i32
      %83 = arith.select %81, %82, %80 : i32
      %84 = arith.index_cast %83 : i32 to index
      %c0_64 = arith.constant 0 : index
      %c0_65 = arith.constant 0 : index
      %85 = vector.load %arg7[%84, %c0_64, %c0_65] : memref<16x18x4xf32, #tpu.memory_space<vmem>>, vector<1x16x4xf32>
      %86 = vector.shape_cast %85 : vector<1x16x4xf32> to vector<16x4xf32>
      %87 = vector.extract_strided_slice %7 {offsets = [0, 0, 0], sizes = [1, 4, 4], strides = [1, 1, 1]} : vector<9x4x4xf32> to vector<1x4x4xf32>
      %88 = vector.shape_cast %87 : vector<1x4x4xf32> to vector<4x4xf32>
      %cst_66 = arith.constant dense<0.000000e+00> : vector<16x4xf32>
      %89 = tpu.matmul %86, %88, %cst_66 {dimension_numbers = #tpu.dot_dimension_numbers<[1], [0], [0], [1], [0, 0, 1, 1], [], []>} : vector<16x4xf32>, vector<4x4xf32>, vector<16x4xf32> -> vector<16x4xf32>
      %90 = arith.addf %76, %89 : vector<16x4xf32>
      %91 = arith.index_cast %83 : i32 to index
      %c1_67 = arith.constant 1 : index
      %c0_68 = arith.constant 0 : index
      %92 = vector.load %arg7[%91, %c1_67, %c0_68] : memref<16x18x4xf32, #tpu.memory_space<vmem>>, vector<1x16x4xf32>
      %93 = vector.shape_cast %92 : vector<1x16x4xf32> to vector<16x4xf32>
      %94 = vector.extract_strided_slice %7 {offsets = [1, 0, 0], sizes = [1, 4, 4], strides = [1, 1, 1]} : vector<9x4x4xf32> to vector<1x4x4xf32>
      %95 = vector.shape_cast %94 : vector<1x4x4xf32> to vector<4x4xf32>
      %cst_69 = arith.constant dense<0.000000e+00> : vector<16x4xf32>
      %96 = tpu.matmul %93, %95, %cst_69 {dimension_numbers = #tpu.dot_dimension_numbers<[1], [0], [0], [1], [0, 0, 1, 1], [], []>} : vector<16x4xf32>, vector<4x4xf32>, vector<16x4xf32> -> vector<16x4xf32>
      %97 = arith.addf %90, %96 : vector<16x4xf32>
      %98 = arith.index_cast %83 : i32 to index
      %c2 = arith.constant 2 : index
      %c0_70 = arith.constant 0 : index
      %99 = vector.load %arg7[%98, %c2, %c0_70] : memref<16x18x4xf32, #tpu.memory_space<vmem>>, vector<1x16x4xf32>
      %100 = vector.shape_cast %99 : vector<1x16x4xf32> to vector<16x4xf32>
      %101 = vector.extract_strided_slice %7 {offsets = [2, 0, 0], sizes = [1, 4, 4], strides = [1, 1, 1]} : vector<9x4x4xf32> to vector<1x4x4xf32>
      %102 = vector.shape_cast %101 : vector<1x4x4xf32> to vector<4x4xf32>
      %cst_71 = arith.constant dense<0.000000e+00> : vector<16x4xf32>
      %103 = tpu.matmul %100, %102, %cst_71 {dimension_numbers = #tpu.dot_dimension_numbers<[1], [0], [0], [1], [0, 0, 1, 1], [], []>} : vector<16x4xf32>, vector<4x4xf32>, vector<16x4xf32> -> vector<16x4xf32>
      %104 = arith.addf %97, %103 : vector<16x4xf32>
      %c0_i32_72 = arith.constant 0 : i32
      %105 = arith.addi %73, %c0_i32_72 : i32
      %c0_i32_73 = arith.constant 0 : i32
      %106 = arith.cmpi slt, %105, %c0_i32_73 : i32
      %c0_i32_74 = arith.constant 0 : i32
      %107 = arith.subi %c0_i32_74, %105 : i32
      %108 = arith.select %106, %107, %105 : i32
      %c15_i32_75 = arith.constant 15 : i32
      %109 = arith.cmpi sgt, %108, %c15_i32_75 : i32
      %c30_i32_76 = arith.constant 30 : i32
      %110 = arith.subi %c30_i32_76, %108 : i32
      %111 = arith.select %109, %110, %108 : i32
      %112 = arith.index_cast %111 : i32 to index
      %c0_77 = arith.constant 0 : index
      %c0_78 = arith.constant 0 : index
      %113 = vector.load %arg7[%112, %c0_77, %c0_78] : memref<16x18x4xf32, #tpu.memory_space<vmem>>, vector<1x16x4xf32>
      %114 = vector.shape_cast %113 : vector<1x16x4xf32> to vector<16x4xf32>
      %115 = vector.extract_strided_slice %7 {offsets = [3, 0, 0], sizes = [1, 4, 4], strides = [1, 1, 1]} : vector<9x4x4xf32> to vector<1x4x4xf32>
      %116 = vector.shape_cast %115 : vector<1x4x4xf32> to vector<4x4xf32>
      %cst_79 = arith.constant dense<0.000000e+00> : vector<16x4xf32>
      %117 = tpu.matmul %114, %116, %cst_79 {dimension_numbers = #tpu.dot_dimension_numbers<[1], [0], [0], [1], [0, 0, 1, 1], [], []>} : vector<16x4xf32>, vector<4x4xf32>, vector<16x4xf32> -> vector<16x4xf32>
      %118 = arith.addf %104, %117 : vector<16x4xf32>
      %119 = arith.index_cast %111 : i32 to index
      %c1_80 = arith.constant 1 : index
      %c0_81 = arith.constant 0 : index
      %120 = vector.load %arg7[%119, %c1_80, %c0_81] : memref<16x18x4xf32, #tpu.memory_space<vmem>>, vector<1x16x4xf32>
      %121 = vector.shape_cast %120 : vector<1x16x4xf32> to vector<16x4xf32>
      %122 = vector.extract_strided_slice %7 {offsets = [4, 0, 0], sizes = [1, 4, 4], strides = [1, 1, 1]} : vector<9x4x4xf32> to vector<1x4x4xf32>
      %123 = vector.shape_cast %122 : vector<1x4x4xf32> to vector<4x4xf32>
      %cst_82 = arith.constant dense<0.000000e+00> : vector<16x4xf32>
      %124 = tpu.matmul %121, %123, %cst_82 {dimension_numbers = #tpu.dot_dimension_numbers<[1], [0], [0], [1], [0, 0, 1, 1], [], []>} : vector<16x4xf32>, vector<4x4xf32>, vector<16x4xf32> -> vector<16x4xf32>
      %125 = arith.addf %118, %124 : vector<16x4xf32>
      %126 = arith.index_cast %111 : i32 to index
      %c2_83 = arith.constant 2 : index
      %c0_84 = arith.constant 0 : index
      %127 = vector.load %arg7[%126, %c2_83, %c0_84] : memref<16x18x4xf32, #tpu.memory_space<vmem>>, vector<1x16x4xf32>
      %128 = vector.shape_cast %127 : vector<1x16x4xf32> to vector<16x4xf32>
      %129 = vector.extract_strided_slice %7 {offsets = [5, 0, 0], sizes = [1, 4, 4], strides = [1, 1, 1]} : vector<9x4x4xf32> to vector<1x4x4xf32>
      %130 = vector.shape_cast %129 : vector<1x4x4xf32> to vector<4x4xf32>
      %cst_85 = arith.constant dense<0.000000e+00> : vector<16x4xf32>
      %131 = tpu.matmul %128, %130, %cst_85 {dimension_numbers = #tpu.dot_dimension_numbers<[1], [0], [0], [1], [0, 0, 1, 1], [], []>} : vector<16x4xf32>, vector<4x4xf32>, vector<16x4xf32> -> vector<16x4xf32>
      %132 = arith.addf %125, %131 : vector<16x4xf32>
      %c1_i32_86 = arith.constant 1 : i32
      %133 = arith.addi %73, %c1_i32_86 : i32
      %c0_i32_87 = arith.constant 0 : i32
      %134 = arith.cmpi slt, %133, %c0_i32_87 : i32
      %c0_i32_88 = arith.constant 0 : i32
      %135 = arith.subi %c0_i32_88, %133 : i32
      %136 = arith.select %134, %135, %133 : i32
      %c15_i32_89 = arith.constant 15 : i32
      %137 = arith.cmpi sgt, %136, %c15_i32_89 : i32
      %c30_i32_90 = arith.constant 30 : i32
      %138 = arith.subi %c30_i32_90, %136 : i32
      %139 = arith.select %137, %138, %136 : i32
      %140 = arith.index_cast %139 : i32 to index
      %c0_91 = arith.constant 0 : index
      %c0_92 = arith.constant 0 : index
      %141 = vector.load %arg7[%140, %c0_91, %c0_92] : memref<16x18x4xf32, #tpu.memory_space<vmem>>, vector<1x16x4xf32>
      %142 = vector.shape_cast %141 : vector<1x16x4xf32> to vector<16x4xf32>
      %143 = vector.extract_strided_slice %7 {offsets = [6, 0, 0], sizes = [1, 4, 4], strides = [1, 1, 1]} : vector<9x4x4xf32> to vector<1x4x4xf32>
      %144 = vector.shape_cast %143 : vector<1x4x4xf32> to vector<4x4xf32>
      %cst_93 = arith.constant dense<0.000000e+00> : vector<16x4xf32>
      %145 = tpu.matmul %142, %144, %cst_93 {dimension_numbers = #tpu.dot_dimension_numbers<[1], [0], [0], [1], [0, 0, 1, 1], [], []>} : vector<16x4xf32>, vector<4x4xf32>, vector<16x4xf32> -> vector<16x4xf32>
      %146 = arith.addf %132, %145 : vector<16x4xf32>
      %147 = arith.index_cast %139 : i32 to index
      %c1_94 = arith.constant 1 : index
      %c0_95 = arith.constant 0 : index
      %148 = vector.load %arg7[%147, %c1_94, %c0_95] : memref<16x18x4xf32, #tpu.memory_space<vmem>>, vector<1x16x4xf32>
      %149 = vector.shape_cast %148 : vector<1x16x4xf32> to vector<16x4xf32>
      %150 = vector.extract_strided_slice %7 {offsets = [7, 0, 0], sizes = [1, 4, 4], strides = [1, 1, 1]} : vector<9x4x4xf32> to vector<1x4x4xf32>
      %151 = vector.shape_cast %150 : vector<1x4x4xf32> to vector<4x4xf32>
      %cst_96 = arith.constant dense<0.000000e+00> : vector<16x4xf32>
      %152 = tpu.matmul %149, %151, %cst_96 {dimension_numbers = #tpu.dot_dimension_numbers<[1], [0], [0], [1], [0, 0, 1, 1], [], []>} : vector<16x4xf32>, vector<4x4xf32>, vector<16x4xf32> -> vector<16x4xf32>
      %153 = arith.addf %146, %152 : vector<16x4xf32>
      %154 = arith.index_cast %139 : i32 to index
      %c2_97 = arith.constant 2 : index
      %c0_98 = arith.constant 0 : index
      %155 = vector.load %arg7[%154, %c2_97, %c0_98] : memref<16x18x4xf32, #tpu.memory_space<vmem>>, vector<1x16x4xf32>
      %156 = vector.shape_cast %155 : vector<1x16x4xf32> to vector<16x4xf32>
      %157 = vector.extract_strided_slice %7 {offsets = [8, 0, 0], sizes = [1, 4, 4], strides = [1, 1, 1]} : vector<9x4x4xf32> to vector<1x4x4xf32>
      %158 = vector.shape_cast %157 : vector<1x4x4xf32> to vector<4x4xf32>
      %cst_99 = arith.constant dense<0.000000e+00> : vector<16x4xf32>
      %159 = tpu.matmul %156, %158, %cst_99 {dimension_numbers = #tpu.dot_dimension_numbers<[1], [0], [0], [1], [0, 0, 1, 1], [], []>} : vector<16x4xf32>, vector<4x4xf32>, vector<16x4xf32> -> vector<16x4xf32>
      %160 = arith.addf %153, %159 : vector<16x4xf32>
      %161 = arith.index_cast %73 : i32 to index
      %c1_100 = arith.constant 1 : index
      %c0_101 = arith.constant 0 : index
      %162 = vector.load %arg8[%161, %c1_100, %c0_101] : memref<16x18x4xf32, #tpu.memory_space<vmem>>, vector<1x16x4xf32>
      %163 = vector.shape_cast %162 : vector<1x16x4xf32> to vector<16x4xf32>
      %164 = vector.shape_cast %160 : vector<16x4xf32> to vector<1x16x4xf32>
      tpu.vector_store %arg8[%161, %c1_100, %c0_101], %164 {strides = array<i32>} : memref<16x18x4xf32, #tpu.memory_space<vmem>>, vector<1x16x4xf32>,
    }
    %c16_i32_20 = arith.constant 16 : i32
    %c0_21 = arith.constant 0 : index
    %c1_22 = arith.constant 1 : index
    %c0_23 = arith.constant 0 : index
    %12 = vector.load %arg8[%c0_21, %c1_22, %c0_23] : memref<16x18x4xf32, #tpu.memory_space<vmem>>, vector<16x16x4xf32>
    %cst = arith.constant dense<0.000000e+00> : vector<16x4xf32>
    %13 = vector.multi_reduction <add>, %12, %cst [0] : vector<16x16x4xf32> to vector<16x4xf32>
    %14 = vector.shape_cast %13 : vector<16x4xf32> to vector<1x16x4xf32>
    %cst_24 = arith.constant dense<0.000000e+00> : vector<1x4xf32>
    %15 = vector.multi_reduction <add>, %14, %cst_24 [1] : vector<1x16x4xf32> to vector<1x4xf32>
    %16 = vector.shape_cast %15 : vector<1x4xf32> to vector<1x1x4xf32>
    %cst_25 = arith.constant 2.560000e+02 : f32
    %17 = vector.broadcast %cst_25 : f32 to vector<1x1x4xf32>
    %18 = arith.divf %16, %17 : vector<1x1x4xf32>
    %19 = vector.broadcast %18 : vector<1x1x4xf32> to vector<16x16x4xf32>
    %20 = arith.subf %12, %19 : vector<16x16x4xf32>
    %21 = arith.mulf %20, %20 : vector<16x16x4xf32>
    %cst_26 = arith.constant dense<0.000000e+00> : vector<16x4xf32>
    %22 = vector.multi_reduction <add>, %21, %cst_26 [0] : vector<16x16x4xf32> to vector<16x4xf32>
    %23 = vector.shape_cast %22 : vector<16x4xf32> to vector<1x16x4xf32>
    %cst_27 = arith.constant dense<0.000000e+00> : vector<1x4xf32>
    %24 = vector.multi_reduction <add>, %23, %cst_27 [1] : vector<1x16x4xf32> to vector<1x4xf32>
    %25 = vector.shape_cast %24 : vector<1x4xf32> to vector<1x1x4xf32>
    %cst_28 = arith.constant 2.560000e+02 : f32
    %26 = vector.broadcast %cst_28 : f32 to vector<1x1x4xf32>
    %27 = arith.divf %25, %26 : vector<1x1x4xf32>
    %28 = vector.broadcast %18 : vector<1x1x4xf32> to vector<16x16x4xf32>
    %29 = arith.subf %12, %28 : vector<16x16x4xf32>
    %cst_29 = arith.constant 9.99999974E-6 : f32
    %30 = vector.broadcast %cst_29 : f32 to vector<1x1x4xf32>
    %31 = arith.addf %27, %30 : vector<1x1x4xf32>
    %32 = math.rsqrt %31 : vector<1x1x4xf32>
    %33 = vector.broadcast %32 : vector<1x1x4xf32> to vector<16x16x4xf32>
    %34 = arith.mulf %29, %33 : vector<16x16x4xf32>
    %cst_30 = arith.constant 0.000000e+00 : f32
    %35 = vector.broadcast %cst_30 : f32 to vector<16x16x4xf32>
    %36 = arith.maximumf %34, %35 : vector<16x16x4xf32>
    %c0_31 = arith.constant 0 : index
    %c1_32 = arith.constant 1 : index
    %c0_33 = arith.constant 0 : index
    %37 = vector.load %arg8[%c0_31, %c1_32, %c0_33] : memref<16x18x4xf32, #tpu.memory_space<vmem>>, vector<16x16x4xf32>
    tpu.vector_store %arg8[%c0_31, %c1_32, %c0_33], %36 {strides = array<i32>} : memref<16x18x4xf32, #tpu.memory_space<vmem>>, vector<16x16x4xf32>,
    %38 = vector.extract_strided_slice %36 {offsets = [0, 1, 0], sizes = [16, 1, 4], strides = [1, 1, 1]} : vector<16x16x4xf32> to vector<16x1x4xf32>
    %c0_34 = arith.constant 0 : index
    %c0_35 = arith.constant 0 : index
    %c0_36 = arith.constant 0 : index
    %39 = vector.load %arg8[%c0_34, %c0_35, %c0_36] : memref<16x18x4xf32, #tpu.memory_space<vmem>>, vector<16x1x4xf32>
    tpu.vector_store %arg8[%c0_34, %c0_35, %c0_36], %38 {strides = array<i32>} : memref<16x18x4xf32, #tpu.memory_space<vmem>>, vector<16x1x4xf32>,
    %40 = vector.extract_strided_slice %36 {offsets = [0, 14, 0], sizes = [16, 1, 4], strides = [1, 1, 1]} : vector<16x16x4xf32> to vector<16x1x4xf32>
    %c0_37 = arith.constant 0 : index
    %c17_38 = arith.constant 17 : index
    %c0_39 = arith.constant 0 : index
    %41 = vector.load %arg8[%c0_37, %c17_38, %c0_39] : memref<16x18x4xf32, #tpu.memory_space<vmem>>, vector<16x1x4xf32>
    tpu.vector_store %arg8[%c0_37, %c17_38, %c0_39], %40 {strides = array<i32>} : memref<16x18x4xf32, #tpu.memory_space<vmem>>, vector<16x1x4xf32>,
    %c0_i32_40 = arith.constant 0 : i32
    %c16_i32_41 = arith.constant 16 : i32
    %42 = arith.addi %c0_i32_40, %c16_i32_41 : i32
    %c1_i32_42 = arith.constant 1 : i32
    scf.for %arg10 = %c0_i32_40 to %42 step %c1_i32_42  : i32 {
      %c1_i32_59 = arith.constant 1 : i32
      %72 = arith.muli %arg10, %c1_i32_59 : i32
      %c0_i32_60 = arith.constant 0 : i32
      %73 = arith.addi %c0_i32_60, %72 : i32
      %cst_61 = arith.constant 0.000000e+00 : f32
      %74 = vector.broadcast %cst_61 : f32 to vector<16x4xf32>
      %75 = vector.broadcast %10 : vector<1x4xf32> to vector<16x4xf32>
      %76 = arith.addf %74, %75 : vector<16x4xf32>
      %c-1_i32 = arith.constant -1 : i32
      %77 = arith.addi %73, %c-1_i32 : i32
      %c0_i32_62 = arith.constant 0 : i32
      %78 = arith.cmpi slt, %77, %c0_i32_62 : i32
      %c0_i32_63 = arith.constant 0 : i32
      %79 = arith.subi %c0_i32_63, %77 : i32
      %80 = arith.select %78, %79, %77 : i32
      %c15_i32 = arith.constant 15 : i32
      %81 = arith.cmpi sgt, %80, %c15_i32 : i32
      %c30_i32 = arith.constant 30 : i32
      %82 = arith.subi %c30_i32, %80 : i32
      %83 = arith.select %81, %82, %80 : i32
      %84 = arith.index_cast %83 : i32 to index
      %c0_64 = arith.constant 0 : index
      %c0_65 = arith.constant 0 : index
      %85 = vector.load %arg8[%84, %c0_64, %c0_65] : memref<16x18x4xf32, #tpu.memory_space<vmem>>, vector<1x16x4xf32>
      %86 = vector.shape_cast %85 : vector<1x16x4xf32> to vector<16x4xf32>
      %87 = vector.extract_strided_slice %8 {offsets = [0, 0, 0], sizes = [1, 4, 4], strides = [1, 1, 1]} : vector<9x4x4xf32> to vector<1x4x4xf32>
      %88 = vector.shape_cast %87 : vector<1x4x4xf32> to vector<4x4xf32>
      %cst_66 = arith.constant dense<0.000000e+00> : vector<16x4xf32>
      %89 = tpu.matmul %86, %88, %cst_66 {dimension_numbers = #tpu.dot_dimension_numbers<[1], [0], [0], [1], [0, 0, 1, 1], [], []>} : vector<16x4xf32>, vector<4x4xf32>, vector<16x4xf32> -> vector<16x4xf32>
      %90 = arith.addf %76, %89 : vector<16x4xf32>
      %91 = arith.index_cast %83 : i32 to index
      %c1_67 = arith.constant 1 : index
      %c0_68 = arith.constant 0 : index
      %92 = vector.load %arg8[%91, %c1_67, %c0_68] : memref<16x18x4xf32, #tpu.memory_space<vmem>>, vector<1x16x4xf32>
      %93 = vector.shape_cast %92 : vector<1x16x4xf32> to vector<16x4xf32>
      %94 = vector.extract_strided_slice %8 {offsets = [1, 0, 0], sizes = [1, 4, 4], strides = [1, 1, 1]} : vector<9x4x4xf32> to vector<1x4x4xf32>
      %95 = vector.shape_cast %94 : vector<1x4x4xf32> to vector<4x4xf32>
      %cst_69 = arith.constant dense<0.000000e+00> : vector<16x4xf32>
      %96 = tpu.matmul %93, %95, %cst_69 {dimension_numbers = #tpu.dot_dimension_numbers<[1], [0], [0], [1], [0, 0, 1, 1], [], []>} : vector<16x4xf32>, vector<4x4xf32>, vector<16x4xf32> -> vector<16x4xf32>
      %97 = arith.addf %90, %96 : vector<16x4xf32>
      %98 = arith.index_cast %83 : i32 to index
      %c2 = arith.constant 2 : index
      %c0_70 = arith.constant 0 : index
      %99 = vector.load %arg8[%98, %c2, %c0_70] : memref<16x18x4xf32, #tpu.memory_space<vmem>>, vector<1x16x4xf32>
      %100 = vector.shape_cast %99 : vector<1x16x4xf32> to vector<16x4xf32>
      %101 = vector.extract_strided_slice %8 {offsets = [2, 0, 0], sizes = [1, 4, 4], strides = [1, 1, 1]} : vector<9x4x4xf32> to vector<1x4x4xf32>
      %102 = vector.shape_cast %101 : vector<1x4x4xf32> to vector<4x4xf32>
      %cst_71 = arith.constant dense<0.000000e+00> : vector<16x4xf32>
      %103 = tpu.matmul %100, %102, %cst_71 {dimension_numbers = #tpu.dot_dimension_numbers<[1], [0], [0], [1], [0, 0, 1, 1], [], []>} : vector<16x4xf32>, vector<4x4xf32>, vector<16x4xf32> -> vector<16x4xf32>
      %104 = arith.addf %97, %103 : vector<16x4xf32>
      %c0_i32_72 = arith.constant 0 : i32
      %105 = arith.addi %73, %c0_i32_72 : i32
      %c0_i32_73 = arith.constant 0 : i32
      %106 = arith.cmpi slt, %105, %c0_i32_73 : i32
      %c0_i32_74 = arith.constant 0 : i32
      %107 = arith.subi %c0_i32_74, %105 : i32
      %108 = arith.select %106, %107, %105 : i32
      %c15_i32_75 = arith.constant 15 : i32
      %109 = arith.cmpi sgt, %108, %c15_i32_75 : i32
      %c30_i32_76 = arith.constant 30 : i32
      %110 = arith.subi %c30_i32_76, %108 : i32
      %111 = arith.select %109, %110, %108 : i32
      %112 = arith.index_cast %111 : i32 to index
      %c0_77 = arith.constant 0 : index
      %c0_78 = arith.constant 0 : index
      %113 = vector.load %arg8[%112, %c0_77, %c0_78] : memref<16x18x4xf32, #tpu.memory_space<vmem>>, vector<1x16x4xf32>
      %114 = vector.shape_cast %113 : vector<1x16x4xf32> to vector<16x4xf32>
      %115 = vector.extract_strided_slice %8 {offsets = [3, 0, 0], sizes = [1, 4, 4], strides = [1, 1, 1]} : vector<9x4x4xf32> to vector<1x4x4xf32>
      %116 = vector.shape_cast %115 : vector<1x4x4xf32> to vector<4x4xf32>
      %cst_79 = arith.constant dense<0.000000e+00> : vector<16x4xf32>
      %117 = tpu.matmul %114, %116, %cst_79 {dimension_numbers = #tpu.dot_dimension_numbers<[1], [0], [0], [1], [0, 0, 1, 1], [], []>} : vector<16x4xf32>, vector<4x4xf32>, vector<16x4xf32> -> vector<16x4xf32>
      %118 = arith.addf %104, %117 : vector<16x4xf32>
      %119 = arith.index_cast %111 : i32 to index
      %c1_80 = arith.constant 1 : index
      %c0_81 = arith.constant 0 : index
      %120 = vector.load %arg8[%119, %c1_80, %c0_81] : memref<16x18x4xf32, #tpu.memory_space<vmem>>, vector<1x16x4xf32>
      %121 = vector.shape_cast %120 : vector<1x16x4xf32> to vector<16x4xf32>
      %122 = vector.extract_strided_slice %8 {offsets = [4, 0, 0], sizes = [1, 4, 4], strides = [1, 1, 1]} : vector<9x4x4xf32> to vector<1x4x4xf32>
      %123 = vector.shape_cast %122 : vector<1x4x4xf32> to vector<4x4xf32>
      %cst_82 = arith.constant dense<0.000000e+00> : vector<16x4xf32>
      %124 = tpu.matmul %121, %123, %cst_82 {dimension_numbers = #tpu.dot_dimension_numbers<[1], [0], [0], [1], [0, 0, 1, 1], [], []>} : vector<16x4xf32>, vector<4x4xf32>, vector<16x4xf32> -> vector<16x4xf32>
      %125 = arith.addf %118, %124 : vector<16x4xf32>
      %126 = arith.index_cast %111 : i32 to index
      %c2_83 = arith.constant 2 : index
      %c0_84 = arith.constant 0 : index
      %127 = vector.load %arg8[%126, %c2_83, %c0_84] : memref<16x18x4xf32, #tpu.memory_space<vmem>>, vector<1x16x4xf32>
      %128 = vector.shape_cast %127 : vector<1x16x4xf32> to vector<16x4xf32>
      %129 = vector.extract_strided_slice %8 {offsets = [5, 0, 0], sizes = [1, 4, 4], strides = [1, 1, 1]} : vector<9x4x4xf32> to vector<1x4x4xf32>
      %130 = vector.shape_cast %129 : vector<1x4x4xf32> to vector<4x4xf32>
      %cst_85 = arith.constant dense<0.000000e+00> : vector<16x4xf32>
      %131 = tpu.matmul %128, %130, %cst_85 {dimension_numbers = #tpu.dot_dimension_numbers<[1], [0], [0], [1], [0, 0, 1, 1], [], []>} : vector<16x4xf32>, vector<4x4xf32>, vector<16x4xf32> -> vector<16x4xf32>
      %132 = arith.addf %125, %131 : vector<16x4xf32>
      %c1_i32_86 = arith.constant 1 : i32
      %133 = arith.addi %73, %c1_i32_86 : i32
      %c0_i32_87 = arith.constant 0 : i32
      %134 = arith.cmpi slt, %133, %c0_i32_87 : i32
      %c0_i32_88 = arith.constant 0 : i32
      %135 = arith.subi %c0_i32_88, %133 : i32
      %136 = arith.select %134, %135, %133 : i32
      %c15_i32_89 = arith.constant 15 : i32
      %137 = arith.cmpi sgt, %136, %c15_i32_89 : i32
      %c30_i32_90 = arith.constant 30 : i32
      %138 = arith.subi %c30_i32_90, %136 : i32
      %139 = arith.select %137, %138, %136 : i32
      %140 = arith.index_cast %139 : i32 to index
      %c0_91 = arith.constant 0 : index
      %c0_92 = arith.constant 0 : index
      %141 = vector.load %arg8[%140, %c0_91, %c0_92] : memref<16x18x4xf32, #tpu.memory_space<vmem>>, vector<1x16x4xf32>
      %142 = vector.shape_cast %141 : vector<1x16x4xf32> to vector<16x4xf32>
      %143 = vector.extract_strided_slice %8 {offsets = [6, 0, 0], sizes = [1, 4, 4], strides = [1, 1, 1]} : vector<9x4x4xf32> to vector<1x4x4xf32>
      %144 = vector.shape_cast %143 : vector<1x4x4xf32> to vector<4x4xf32>
      %cst_93 = arith.constant dense<0.000000e+00> : vector<16x4xf32>
      %145 = tpu.matmul %142, %144, %cst_93 {dimension_numbers = #tpu.dot_dimension_numbers<[1], [0], [0], [1], [0, 0, 1, 1], [], []>} : vector<16x4xf32>, vector<4x4xf32>, vector<16x4xf32> -> vector<16x4xf32>
      %146 = arith.addf %132, %145 : vector<16x4xf32>
      %147 = arith.index_cast %139 : i32 to index
      %c1_94 = arith.constant 1 : index
      %c0_95 = arith.constant 0 : index
      %148 = vector.load %arg8[%147, %c1_94, %c0_95] : memref<16x18x4xf32, #tpu.memory_space<vmem>>, vector<1x16x4xf32>
      %149 = vector.shape_cast %148 : vector<1x16x4xf32> to vector<16x4xf32>
      %150 = vector.extract_strided_slice %8 {offsets = [7, 0, 0], sizes = [1, 4, 4], strides = [1, 1, 1]} : vector<9x4x4xf32> to vector<1x4x4xf32>
      %151 = vector.shape_cast %150 : vector<1x4x4xf32> to vector<4x4xf32>
      %cst_96 = arith.constant dense<0.000000e+00> : vector<16x4xf32>
      %152 = tpu.matmul %149, %151, %cst_96 {dimension_numbers = #tpu.dot_dimension_numbers<[1], [0], [0], [1], [0, 0, 1, 1], [], []>} : vector<16x4xf32>, vector<4x4xf32>, vector<16x4xf32> -> vector<16x4xf32>
      %153 = arith.addf %146, %152 : vector<16x4xf32>
      %154 = arith.index_cast %139 : i32 to index
      %c2_97 = arith.constant 2 : index
      %c0_98 = arith.constant 0 : index
      %155 = vector.load %arg8[%154, %c2_97, %c0_98] : memref<16x18x4xf32, #tpu.memory_space<vmem>>, vector<1x16x4xf32>
      %156 = vector.shape_cast %155 : vector<1x16x4xf32> to vector<16x4xf32>
      %157 = vector.extract_strided_slice %8 {offsets = [8, 0, 0], sizes = [1, 4, 4], strides = [1, 1, 1]} : vector<9x4x4xf32> to vector<1x4x4xf32>
      %158 = vector.shape_cast %157 : vector<1x4x4xf32> to vector<4x4xf32>
      %cst_99 = arith.constant dense<0.000000e+00> : vector<16x4xf32>
      %159 = tpu.matmul %156, %158, %cst_99 {dimension_numbers = #tpu.dot_dimension_numbers<[1], [0], [0], [1], [0, 0, 1, 1], [], []>} : vector<16x4xf32>, vector<4x4xf32>, vector<16x4xf32> -> vector<16x4xf32>
      %160 = arith.addf %153, %159 : vector<16x4xf32>
      %161 = arith.index_cast %73 : i32 to index
      %c0_100 = arith.constant 0 : index
      %c0_101 = arith.constant 0 : index
      %162 = vector.load %arg9[%161, %c0_100, %c0_101] : memref<16x16x4xf32, #tpu.memory_space<vmem>>, vector<1x16x4xf32>
      %163 = vector.shape_cast %162 : vector<1x16x4xf32> to vector<16x4xf32>
      %164 = vector.shape_cast %160 : vector<16x4xf32> to vector<1x16x4xf32>
      tpu.vector_store %arg9[%161, %c0_100, %c0_101], %164 {strides = array<i32>} : memref<16x16x4xf32, #tpu.memory_space<vmem>>, vector<1x16x4xf32>,
    }
    %c16_i32_43 = arith.constant 16 : i32
    %c0_44 = arith.constant 0 : index
    %c0_45 = arith.constant 0 : index
    %c0_46 = arith.constant 0 : index
    %43 = vector.load %arg9[%c0_44, %c0_45, %c0_46] : memref<16x16x4xf32, #tpu.memory_space<vmem>>, vector<16x16x4xf32>
    %cst_47 = arith.constant dense<0.000000e+00> : vector<16x4xf32>
    %44 = vector.multi_reduction <add>, %43, %cst_47 [0] : vector<16x16x4xf32> to vector<16x4xf32>
    %45 = vector.shape_cast %44 : vector<16x4xf32> to vector<1x16x4xf32>
    %cst_48 = arith.constant dense<0.000000e+00> : vector<1x4xf32>
    %46 = vector.multi_reduction <add>, %45, %cst_48 [1] : vector<1x16x4xf32> to vector<1x4xf32>
    %47 = vector.shape_cast %46 : vector<1x4xf32> to vector<1x1x4xf32>
    %cst_49 = arith.constant 2.560000e+02 : f32
    %48 = vector.broadcast %cst_49 : f32 to vector<1x1x4xf32>
    %49 = arith.divf %47, %48 : vector<1x1x4xf32>
    %50 = vector.broadcast %49 : vector<1x1x4xf32> to vector<16x16x4xf32>
    %51 = arith.subf %43, %50 : vector<16x16x4xf32>
    %52 = arith.mulf %51, %51 : vector<16x16x4xf32>
    %cst_50 = arith.constant dense<0.000000e+00> : vector<16x4xf32>
    %53 = vector.multi_reduction <add>, %52, %cst_50 [0] : vector<16x16x4xf32> to vector<16x4xf32>
    %54 = vector.shape_cast %53 : vector<16x4xf32> to vector<1x16x4xf32>
    %cst_51 = arith.constant dense<0.000000e+00> : vector<1x4xf32>
    %55 = vector.multi_reduction <add>, %54, %cst_51 [1] : vector<1x16x4xf32> to vector<1x4xf32>
    %56 = vector.shape_cast %55 : vector<1x4xf32> to vector<1x1x4xf32>
    %cst_52 = arith.constant 2.560000e+02 : f32
    %57 = vector.broadcast %cst_52 : f32 to vector<1x1x4xf32>
    %58 = arith.divf %56, %57 : vector<1x1x4xf32>
    %59 = vector.broadcast %49 : vector<1x1x4xf32> to vector<16x16x4xf32>
    %60 = arith.subf %43, %59 : vector<16x16x4xf32>
    %cst_53 = arith.constant 9.99999974E-6 : f32
    %61 = vector.broadcast %cst_53 : f32 to vector<1x1x4xf32>
    %62 = arith.addf %58, %61 : vector<1x1x4xf32>
    %63 = math.rsqrt %62 : vector<1x1x4xf32>
    %64 = vector.broadcast %63 : vector<1x1x4xf32> to vector<16x16x4xf32>
    %65 = arith.mulf %60, %64 : vector<16x16x4xf32>
    %66 = arith.addf %1, %65 : vector<16x16x4xf32>
    %cst_54 = arith.constant 0.000000e+00 : f32
    %67 = vector.broadcast %cst_54 : f32 to vector<16x16x4xf32>
    %68 = arith.maximumf %66, %67 : vector<16x16x4xf32>
    %c0_55 = arith.constant 0 : index
    %c0_56 = arith.constant 0 : index
    %c0_57 = arith.constant 0 : index
    %c0_58 = arith.constant 0 : index
    %69 = vector.load %arg6[%c0_55, %c0_56, %c0_57, %c0_58] : memref<1x16x16x4xf32, #tpu.memory_space<vmem>>, vector<1x16x16x4xf32>
    %70 = vector.shape_cast %69 : vector<1x16x16x4xf32> to vector<16x16x4xf32>
    %71 = vector.shape_cast %68 : vector<16x16x4xf32> to vector<1x16x16x4xf32>
    tpu.vector_store %arg6[%c0_55, %c0_56, %c0_57, %c0_58], %71 {strides = array<i32>} : memref<1x16x16x4xf32, #tpu.memory_space<vmem>>, vector<1x16x16x4xf32>,
    return
  }
  func.func @transform_0(%arg0: i32) -> (i32, i32, i32, i32) {
    %c0_i32 = arith.constant 0 : i32
    %c0_i32_0 = arith.constant 0 : i32
    %c0_i32_1 = arith.constant 0 : i32
    %c0_i32_2 = arith.constant 0 : i32
    return %arg0, %c0_i32, %c0_i32_0, %c0_i32_1 : i32, i32, i32, i32
  }
  func.func @transform_1(%arg0: i32) -> (i32, i32, i32) {
    %c0_i32 = arith.constant 0 : i32
    %c0_i32_0 = arith.constant 0 : i32
    %c0_i32_1 = arith.constant 0 : i32
    %c0_i32_2 = arith.constant 0 : i32
    return %c0_i32, %c0_i32_0, %c0_i32_1 : i32, i32, i32
  }
  func.func @transform_2(%arg0: i32) -> (i32, i32) {
    %c0_i32 = arith.constant 0 : i32
    %c0_i32_0 = arith.constant 0 : i32
    %c0_i32_1 = arith.constant 0 : i32
    return %c0_i32, %c0_i32_0 : i32, i32
  }
  func.func @transform_3(%arg0: i32) -> (i32, i32, i32) {
    %c0_i32 = arith.constant 0 : i32
    %c0_i32_0 = arith.constant 0 : i32
    %c0_i32_1 = arith.constant 0 : i32
    %c0_i32_2 = arith.constant 0 : i32
    return %c0_i32, %c0_i32_0, %c0_i32_1 : i32, i32, i32
  }
  func.func @transform_4(%arg0: i32) -> (i32, i32) {
    %c0_i32 = arith.constant 0 : i32
    %c0_i32_0 = arith.constant 0 : i32
    %c0_i32_1 = arith.constant 0 : i32
    return %c0_i32, %c0_i32_0 : i32, i32
  }
  func.func @transform_5(%arg0: i32) -> (i32, i32, i32, i32) {
    %c0_i32 = arith.constant 0 : i32
    %c0_i32_0 = arith.constant 0 : i32
    %c0_i32_1 = arith.constant 0 : i32
    %c0_i32_2 = arith.constant 0 : i32
    return %arg0, %c0_i32, %c0_i32_0, %c0_i32_1 : i32, i32, i32, i32
  }
}

</mosaic_0001>

<llo_original>
// kernel: resblock2_forward.1
$region0: #{resblock2_forward.1}
  #allocation0 [shape = 'u32[]', space=smem, size = 0x4, offset = 0x4, fixed_abs, tag = 'smem constant byte address 0x4 - core index']
  #allocation1 [shape = 'u32[144,128]{1,0:T(1,128)}', space=vmem, size = 0x12000, scoped, tag = 'internal scratch']
  #allocation2 [shape = 'f32[16,18,4]{2,1,0:T(8,128)}', space=vmem, size = 0x30000, scoped, tag = 'scratch operand']
  #allocation3 [shape = 'f32[16,18,4]{2,1,0:T(8,128)}', space=vmem, size = 0x30000, scoped, tag = 'scratch operand']
  #allocation4 [shape = 'f32[16,16,4]{2,1,0:T(8,128)}', space=vmem, size = 0x20000, scoped, tag = 'scratch operand']
  %s0 = inlined_call_operand.vmem [shape: f32[2,16,16,4], index: 0, kind: input, shape index: {}]
  %s1 = inlined_call_operand.vmem [shape: f32[9,4,4], index: 1, kind: input, shape index: {}]
  %s2 = inlined_call_operand.vmem [shape: f32[1,4], index: 2, kind: input, shape index: {}]
  %s3 = inlined_call_operand.vmem [shape: f32[9,4,4], index: 3, kind: input, shape index: {}]
  %s4 = inlined_call_operand.vmem [shape: f32[1,4], index: 4, kind: input, shape index: {}]
  %s5 = inlined_call_operand.vmem [shape: f32[2,16,16,4], index: 5, kind: output, shape index: {}]
  %s6 = sld [smem:[#allocation0]]
  $region67: #{resblock2_forward.1} parent=0
    _
  %s8 = ssub.s32 1, %s6
  %s9 = scalar_select 0, %s8, %s6
  loop: start=0, step=1, limit=4
  $region2: #{resblock2_forward.1} parent=0 // loop_pre_header
    _
  $region3: #{resblock2_forward.1} parent=0 // loop_header
    %s11 = sphi 0, %s15
    %p12 = scmp.ge.s32.totalorder %s11, 4
    %s21 = sphi 0, %s23
    %s24 = sphi 0, %s21
    %s25 = sphi 0, %s24
    %s41 = sphi 0, %s25
    %s45 = sphi 0, %s45
    %s47 = sphi 0, %s45
    %s48 = sphi 0, %s47
    %s62 = sphi 0, %s48
    %s66 = sphi 0, %s66
    %s68 = sphi 0, %s66
    %s69 = sphi 0, %s68
    %s83 = sphi 0, %s69
    %s87 = sphi 0, %s87
    %s89 = sphi 0, %s87
    %s90 = sphi 0, %s89
    %s104 = sphi 0, %s90
    %s108 = sphi 0, %s108
    %s110 = sphi 0, %s108
    %s111 = sphi 0, %s110
    %s125 = sphi 0, %s111
    %s131 = sphi 0, %s133
    %s134 = sphi 0, %s131
    %s135 = sphi 0, %s134
    %s151 = sphi 0, %s135
  $region4: #{resblock2_forward.1} parent=0 // loop_header_branch
    %14 = sbr.rel (%p12) target = $region8
  $region5: #{resblock2_forward.1} parent=0 // loop_body
    %s16 = ssub.s32 %s11, 1
    %s17 = ssub.s32 %s11, 2
    %s18 = sadd.s32 %s11, 1
    %s19 = ssub.s32 %s11, %s18
    %p20 = scmp.eq.s32.totalorder %s19, 0
    %s22 = sadd.s32 %s21, 1
    %s23 = scalar_select %p20, %s21, %s22
    %p26 = pneg %p20
    %p27 = scmp.eq.s32.totalorder %s11, 1
    %p28 = por %p26, %p27
    %p29 = scmp.ne.s32.totalorder %s21, %s24
    %p30 = scmp.eq.s32.totalorder %s11, 0
    %p31 = por %p29, %p30
    %p32 = scmp.ne.s32.totalorder %s21, %s24
    %p33 = scmp.eq.s32.totalorder %s16, 1
    %p34 = por %p32, %p33
    %p35 = scmp.ne.s32.totalorder %s24, %s25
    %p36 = scmp.eq.s32.totalorder %s16, 0
    %p37 = por %p35, %p36
    %p38 = scmp.ne.s32.totalorder %s24, %s25
    %p39 = scmp.eq.s32.totalorder %s17, 1
    %p40 = por %p38, %p39
    %p42 = scmp.ne.s32.totalorder %s25, %s41
    %p43 = scmp.eq.s32.totalorder %s17, 0
    %p44 = por %p42, %p43
    %s46 = sadd.s32 %s45, 1
    %p49 = scmp.eq.s32.totalorder %s11, 1
    %p50 = scmp.ne.s32.totalorder %s45, %s47
    %p51 = scmp.eq.s32.totalorder %s11, 0
    %p52 = por %p50, %p51
    %p53 = scmp.ne.s32.totalorder %s45, %s47
    %p54 = scmp.eq.s32.totalorder %s16, 1
    %p55 = por %p53, %p54
    %p56 = scmp.ne.s32.totalorder %s47, %s48
    %p57 = scmp.eq.s32.totalorder %s16, 0
    %p58 = por %p56, %p57
    %p59 = scmp.ne.s32.totalorder %s47, %s48
    %p60 = scmp.eq.s32.totalorder %s17, 1
    %p61 = por %p59, %p60
    %p63 = scmp.ne.s32.totalorder %s48, %s62
    %p64 = scmp.eq.s32.totalorder %s17, 0
    %p65 = por %p63, %p64
    %s67 = sadd.s32 %s66, 1
    %p70 = scmp.eq.s32.totalorder %s11, 1
    %p71 = scmp.ne.s32.totalorder %s66, %s68
    %p72 = scmp.eq.s32.totalorder %s11, 0
    %p73 = por %p71, %p72
    %p74 = scmp.ne.s32.totalorder %s66, %s68
    %p75 = scmp.eq.s32.totalorder %s16, 1
    %p76 = por %p74, %p75
    %p77 = scmp.ne.s32.totalorder %s68, %s69
    %p78 = scmp.eq.s32.totalorder %s16, 0
    %p79 = por %p77, %p78
    %p80 = scmp.ne.s32.totalorder %s68, %s69
    %p81 = scmp.eq.s32.totalorder %s17, 1
    %p82 = por %p80, %p81
    %p84 = scmp.ne.s32.totalorder %s69, %s83
    %p85 = scmp.eq.s32.totalorder %s17, 0
    %p86 = por %p84, %p85
    %s88 = sadd.s32 %s87, 1
    %p91 = scmp.eq.s32.totalorder %s11, 1
    %p92 = scmp.ne.s32.totalorder %s87, %s89
    %p93 = scmp.eq.s32.totalorder %s11, 0
    %p94 = por %p92, %p93
    %p95 = scmp.ne.s32.totalorder %s87, %s89
    %p96 = scmp.eq.s32.totalorder %s16, 1
    %p97 = por %p95, %p96
    %p98 = scmp.ne.s32.totalorder %s89, %s90
    %p99 = scmp.eq.s32.totalorder %s16, 0
    %p100 = por %p98, %p99
    %p101 = scmp.ne.s32.totalorder %s89, %s90
    %p102 = scmp.eq.s32.totalorder %s17, 1
    %p103 = por %p101, %p102
    %p105 = scmp.ne.s32.totalorder %s90, %s104
    %p106 = scmp.eq.s32.totalorder %s17, 0
    %p107 = por %p105, %p106
    %s109 = sadd.s32 %s108, 1
    %p112 = scmp.eq.s32.totalorder %s11, 1
    %p113 = scmp.ne.s32.totalorder %s108, %s110
    %p114 = scmp.eq.s32.totalorder %s11, 0
    %p115 = por %p113, %p114
    %p116 = scmp.ne.s32.totalorder %s108, %s110
    %p117 = scmp.eq.s32.totalorder %s16, 1
    %p118 = por %p116, %p117
    %p119 = scmp.ne.s32.totalorder %s110, %s111
    %p120 = scmp.eq.s32.totalorder %s16, 0
    %p121 = por %p119, %p120
    %p122 = scmp.ne.s32.totalorder %s110, %s111
    %p123 = scmp.eq.s32.totalorder %s17, 1
    %p124 = por %p122, %p123
    %p126 = scmp.ne.s32.totalorder %s111, %s125
    %p127 = scmp.eq.s32.totalorder %s17, 0
    %p128 = por %p126, %p127
    %s129 = ssub.s32 %s11, %s18
    %p130 = scmp.eq.s32.totalorder %s129, 0
    %s132 = sadd.s32 %s131, 1
    %s133 = scalar_select %p130, %s131, %s132
    %p136 = pneg %p130
    %p137 = scmp.eq.s32.totalorder %s11, 1
    %p138 = por %p136, %p137
    %p139 = scmp.ne.s32.totalorder %s131, %s134
    %p140 = scmp.eq.s32.totalorder %s11, 0
    %p141 = por %p139, %p140
    %p142 = scmp.ne.s32.totalorder %s131, %s134
    %p143 = scmp.eq.s32.totalorder %s16, 1
    %p144 = por %p142, %p143
    %p145 = scmp.ne.s32.totalorder %s134, %s135
    %p146 = scmp.eq.s32.totalorder %s16, 0
    %p147 = por %p145, %p146
    %p148 = scmp.ne.s32.totalorder %s134, %s135
    %p149 = scmp.eq.s32.totalorder %s17, 1
    %p150 = por %p148, %p149
    %p152 = scmp.ne.s32.totalorder %s135, %s151
    %p153 = scmp.eq.s32.totalorder %s17, 0
    %p154 = por %p152, %p153
    %p155 = scmp.le.s32.totalorder 1, %s11
    %p156 = scmp.lt.s32.totalorder %s11, 3
    %p157 = pnand %p155, %p156
    %p158 = pneg %p157
    // Predicated region
    $region9: #{resblock2_forward.1} parent=5 // pred_check
      _
    $region10: #{resblock2_forward.1} parent=5 // pred_check_branch
      %160 = sbr.rel (%p157) target = $region12
    $region11: #{resblock2_forward.1} parent=5 // pred_region
      %s161 = ssub.s32 %s11, 1
      // Predicated region
      $region13: #{resblock2_forward.1} parent=11 // pred_check
        %p162 = pneg %p58
      $region14: #{resblock2_forward.1} parent=11 // pred_check_branch
        %164 = sbr.rel (%p162) target = $region16
      $region15: #{resblock2_forward.1} parent=11 // pred_region
        _
      $region16: #{resblock2_forward.1} parent=11 // pred_fallthru
        _
      // Predicated region
      $region17: #{resblock2_forward.1} parent=11 // pred_check
        %p165 = pneg %p79
      $region18: #{resblock2_forward.1} parent=11 // pred_check_branch
        %167 = sbr.rel (%p165) target = $region20
      $region19: #{resblock2_forward.1} parent=11 // pred_region
        _
      $region20: #{resblock2_forward.1} parent=11 // pred_fallthru
        _
      // Predicated region
      $region21: #{resblock2_forward.1} parent=11 // pred_check
        %p168 = pneg %p100
      $region22: #{resblock2_forward.1} parent=11 // pred_check_branch
        %170 = sbr.rel (%p168) target = $region24
      $region23: #{resblock2_forward.1} parent=11 // pred_region
        _
      $region24: #{resblock2_forward.1} parent=11 // pred_fallthru
        _
      // Predicated region
      $region25: #{resblock2_forward.1} parent=11 // pred_check
        %p171 = pneg %p121
      $region26: #{resblock2_forward.1} parent=11 // pred_check_branch
        %173 = sbr.rel (%p171) target = $region28
      $region27: #{resblock2_forward.1} parent=11 // pred_region
        _
      $region28: #{resblock2_forward.1} parent=11 // pred_fallthru
        _
    $region12: #{resblock2_forward.1} parent=5 // pred_fallthru
      _
    %p174 = scmp.lt.s32.totalorder %s11, 2
    // Predicated region
    $region29: #{resblock2_forward.1} parent=5 // pred_check
      %p175 = pneg %p174
    $region30: #{resblock2_forward.1} parent=5 // pred_check_branch
      %177 = sbr.rel (%p175) target = $region32
    $region31: #{resblock2_forward.1} parent=5 // pred_region
      // Predicated region
      $region33: #{resblock2_forward.1} parent=31 // pred_check
        %p178 = pneg %p31
      $region34: #{resblock2_forward.1} parent=31 // pred_check_branch
        %180 = sbr.rel (%p178) target = $region36
      $region35: #{resblock2_forward.1} parent=31 // pred_region
        %p181 = scmp.lt.s32.totalorder %s11, 1
        %s182 = scalar_select %p181, %s11, 1
        %s183 = smul.addr %s182, 32
        %s184 = smul.addr %s183, 8
        %s185 = scalar_lea.vmem %s0, %s184
      $region36: #{resblock2_forward.1} parent=31 // pred_fallthru
        _
    $region32: #{resblock2_forward.1} parent=5 // pred_fallthru
      _
    %p186 = scmp.le.s32.totalorder 1, %s11
    %p187 = scmp.lt.s32.totalorder %s11, 3
    %p188 = pnand %p186, %p187
    %p189 = pneg %p188
    // Predicated region
    $region37: #{resblock2_forward.1} parent=5 // pred_check
      _
    $region38: #{resblock2_forward.1} parent=5 // pred_check_branch
      %191 = sbr.rel (%p188) target = $region40
    $region39: #{resblock2_forward.1} parent=5 // pred_region
      %s192 = ssub.s32 %s11, 1
      %p193 = scmp.lt.s32.totalorder %s16, 1
      %s194 = scalar_select %p193, %s16, 1
      %s195 = smul.addr %s194, 32
      %s196 = smul.addr %s195, 8
      %s197 = scalar_lea.vmem %s0, %s196
      %p198 = pneg %p37
      %p199 = pneg %p34
      %p200 = pneg %p58
      %p201 = pneg %p55
      %p202 = pneg %p79
      %p203 = pneg %p76
      %p204 = pneg %p100
      %p205 = pneg %p97
      %p206 = pneg %p121
      %p207 = pneg %p118
      %p208 = pneg %p147
      %p209 = pneg %p144
      %p210 = scmp.lt.s32.totalorder %s16, 1
      %s211 = scalar_select %p210, %s16, 1
      %s212 = smul.addr %s211, 32
      %s213 = smul.addr %s212, 8
      %s214 = scalar_lea.vmem %s5, %s213
      %p215 = scmp.lt.s32.totalorder %s16, 1
      %s216 = scalar_select %p215, %s16, 1
      %s217 = smul.addr %s216, 32
      %s218 = smul.addr %s217, 8
      %s219 = scalar_lea.vmem %s0, %s218
      %p220 = scmp.lt.s32.totalorder %s16, 1
      %s221 = scalar_select %p220, %s16, 1
      %s222 = smul.addr %s221, 32
      %s223 = smul.addr %s222, 8
      %s224 = scalar_lea.vmem %s5, %s223
      %v225 = vld [vmem:[%s219] sm:$0xff]
      %v226 = vld [vmem:[%s219 + $0x8] sm:$0xff]
      %v227 = vld [vmem:[%s219 + $0x10] sm:$0xff]
      %v228 = vld [vmem:[%s219 + $0x18] sm:$0xff]
      %v229 = vld [vmem:[%s219 + $0x20] sm:$0xff]
      %v230 = vld [vmem:[%s219 + $0x28] sm:$0xff]
      %v231 = vld [vmem:[%s219 + $0x30] sm:$0xff]
      %v232 = vld [vmem:[%s219 + $0x38] sm:$0xff]
      %v233 = vld [vmem:[%s219 + $0x40] sm:$0xff]
      %v234 = vld [vmem:[%s219 + $0x48] sm:$0xff]
      %v235 = vld [vmem:[%s219 + $0x50] sm:$0xff]
      %v236 = vld [vmem:[%s219 + $0x58] sm:$0xff]
      %v237 = vld [vmem:[%s219 + $0x60] sm:$0xff]
      %v238 = vld [vmem:[%s219 + $0x68] sm:$0xff]
      %v239 = vld [vmem:[%s219 + $0x70] sm:$0xff]
      %v240 = vld [vmem:[%s219 + $0x78] sm:$0xff]
      %v241 = vld [vmem:[%s219 + $0x80] sm:$0xff]
      %v242 = vld [vmem:[%s219 + $0x88] sm:$0xff]
      %v243 = vld [vmem:[%s219 + $0x90] sm:$0xff]
      %v244 = vld [vmem:[%s219 + $0x98] sm:$0xff]
      %v245 = vld [vmem:[%s219 + $0xa0] sm:$0xff]
      %v246 = vld [vmem:[%s219 + $0xa8] sm:$0xff]
      %v247 = vld [vmem:[%s219 + $0xb0] sm:$0xff]
      %v248 = vld [vmem:[%s219 + $0xb8] sm:$0xff]
      %v249 = vld [vmem:[%s219 + $0xc0] sm:$0xff]
      %v250 = vld [vmem:[%s219 + $0xc8] sm:$0xff]
      %v251 = vld [vmem:[%s219 + $0xd0] sm:$0xff]
      %v252 = vld [vmem:[%s219 + $0xd8] sm:$0xff]
      %v253 = vld [vmem:[%s219 + $0xe0] sm:$0xff]
      %v254 = vld [vmem:[%s219 + $0xe8] sm:$0xff]
      %v255 = vld [vmem:[%s219 + $0xf0] sm:$0xff]
      %v256 = vld [vmem:[%s219 + $0xf8] sm:$0xff]
      %vm257 = vcmask 31744
      %258 = vst.msk [vmem:[#allocation2 + $0x1] sm:$0xff] %vm257, %v225
      %259 = vst.msk [vmem:[#allocation2 + $0x9] sm:$0xff] %vm257, %v226
      %260 = vst.msk [vmem:[#allocation2 + $0x19] sm:$0xff] %vm257, %v227
      %261 = vst.msk [vmem:[#allocation2 + $0x21] sm:$0xff] %vm257, %v228
      %262 = vst.msk [vmem:[#allocation2 + $0x31] sm:$0xff] %vm257, %v229
      %263 = vst.msk [vmem:[#allocation2 + $0x39] sm:$0xff] %vm257, %v230
      %264 = vst.msk [vmem:[#allocation2 + $0x49] sm:$0xff] %vm257, %v231
      %265 = vst.msk [vmem:[#allocation2 + $0x51] sm:$0xff] %vm257, %v232
      %266 = vst.msk [vmem:[#allocation2 + $0x61] sm:$0xff] %vm257, %v233
      %267 = vst.msk [vmem:[#allocation2 + $0x69] sm:$0xff] %vm257, %v234
      %268 = vst.msk [vmem:[#allocation2 + $0x79] sm:$0xff] %vm257, %v235
      %269 = vst.msk [vmem:[#allocation2 + $0x81] sm:$0xff] %vm257, %v236
      %270 = vst.msk [vmem:[#allocation2 + $0x91] sm:$0xff] %vm257, %v237
      %271 = vst.msk [vmem:[#allocation2 + $0x99] sm:$0xff] %vm257, %v238
      %272 = vst.msk [vmem:[#allocation2 + $0xa9] sm:$0xff] %vm257, %v239
      %273 = vst.msk [vmem:[#allocation2 + $0xb1] sm:$0xff] %vm257, %v240
      %274 = vst.msk [vmem:[#allocation2 + $0xc1] sm:$0xff] %vm257, %v241
      %275 = vst.msk [vmem:[#allocation2 + $0xc9] sm:$0xff] %vm257, %v242
      %276 = vst.msk [vmem:[#allocation2 + $0xd9] sm:$0xff] %vm257, %v243
      %277 = vst.msk [vmem:[#allocation2 + $0xe1] sm:$0xff] %vm257, %v244
      %278 = vst.msk [vmem:[#allocation2 + $0xf1] sm:$0xff] %vm257, %v245
      %279 = vst.msk [vmem:[#allocation2 + $0xf9] sm:$0xff] %vm257, %v246
      %280 = vst.msk [vmem:[#allocation2 + $0x109] sm:$0xff] %vm257, %v247
      %281 = vst.msk [vmem:[#allocation2 + $0x111] sm:$0xff] %vm257, %v248
      %282 = vst.msk [vmem:[#allocation2 + $0x121] sm:$0xff] %vm257, %v249
      %283 = vst.msk [vmem:[#allocation2 + $0x129] sm:$0xff] %vm257, %v250
      %284 = vst.msk [vmem:[#allocation2 + $0x139] sm:$0xff] %vm257, %v251
      %285 = vst.msk [vmem:[#allocation2 + $0x141] sm:$0xff] %vm257, %v252
      %286 = vst.msk [vmem:[#allocation2 + $0x151] sm:$0xff] %vm257, %v253
      %287 = vst.msk [vmem:[#allocation2 + $0x159] sm:$0xff] %vm257, %v254
      %288 = vst.msk [vmem:[#allocation2 + $0x169] sm:$0xff] %vm257, %v255
      %289 = vst.msk [vmem:[#allocation2 + $0x171] sm:$0xff] %vm257, %v256
      %vm290 = vcmask 25601
      %291 = vst.msk [vmem:[#allocation2 - $0x1] sm:$0x2] %vm290, %v225
      %292 = vst.msk [vmem:[#allocation2 + $0x17] sm:$0x2] %vm290, %v227
      %293 = vst.msk [vmem:[#allocation2 + $0x2f] sm:$0x2] %vm290, %v229
      %294 = vst.msk [vmem:[#allocation2 + $0x47] sm:$0x2] %vm290, %v231
      %295 = vst.msk [vmem:[#allocation2 + $0x5f] sm:$0x2] %vm290, %v233
      %296 = vst.msk [vmem:[#allocation2 + $0x77] sm:$0x2] %vm290, %v235
      %297 = vst.msk [vmem:[#allocation2 + $0x8f] sm:$0x2] %vm290, %v237
      %298 = vst.msk [vmem:[#allocation2 + $0xa7] sm:$0x2] %vm290, %v239
      %299 = vst.msk [vmem:[#allocation2 + $0xbf] sm:$0x2] %vm290, %v241
      %300 = vst.msk [vmem:[#allocation2 + $0xd7] sm:$0x2] %vm290, %v243
      %301 = vst.msk [vmem:[#allocation2 + $0xef] sm:$0x2] %vm290, %v245
      %302 = vst.msk [vmem:[#allocation2 + $0x107] sm:$0x2] %vm290, %v247
      %303 = vst.msk [vmem:[#allocation2 + $0x11f] sm:$0x2] %vm290, %v249
      %304 = vst.msk [vmem:[#allocation2 + $0x137] sm:$0x2] %vm290, %v251
      %305 = vst.msk [vmem:[#allocation2 + $0x14f] sm:$0x2] %vm290, %v253
      %306 = vst.msk [vmem:[#allocation2 + $0x167] sm:$0x2] %vm290, %v255
      %vm307 = vcmask 30726
      %308 = vst.msk [vmem:[#allocation2 + $0xb] sm:$0x40] %vm307, %v226
      %309 = vst.msk [vmem:[#allocation2 + $0x23] sm:$0x40] %vm307, %v228
      %310 = vst.msk [vmem:[#allocation2 + $0x3b] sm:$0x40] %vm307, %v230
      %311 = vst.msk [vmem:[#allocation2 + $0x53] sm:$0x40] %vm307, %v232
      %312 = vst.msk [vmem:[#allocation2 + $0x6b] sm:$0x40] %vm307, %v234
      %313 = vst.msk [vmem:[#allocation2 + $0x83] sm:$0x40] %vm307, %v236
      %314 = vst.msk [vmem:[#allocation2 + $0x9b] sm:$0x40] %vm307, %v238
      %315 = vst.msk [vmem:[#allocation2 + $0xb3] sm:$0x40] %vm307, %v240
      %316 = vst.msk [vmem:[#allocation2 + $0xcb] sm:$0x40] %vm307, %v242
      %317 = vst.msk [vmem:[#allocation2 + $0xe3] sm:$0x40] %vm307, %v244
      %318 = vst.msk [vmem:[#allocation2 + $0xfb] sm:$0x40] %vm307, %v246
      %319 = vst.msk [vmem:[#allocation2 + $0x113] sm:$0x40] %vm307, %v248
      %320 = vst.msk [vmem:[#allocation2 + $0x12b] sm:$0x40] %vm307, %v250
      %321 = vst.msk [vmem:[#allocation2 + $0x143] sm:$0x40] %vm307, %v252
      %322 = vst.msk [vmem:[#allocation2 + $0x15b] sm:$0x40] %vm307, %v254
      %323 = vst.msk [vmem:[#allocation2 + $0x173] sm:$0x40] %vm307, %v256
      %v324 = vld [vmem:[%s1] sm:$0xf]
      %v325 = vld [vmem:[%s1 + $0x4] sm:$0xf]
      %v326 = vld [vmem:[%s1 + $0x8] sm:$0xf]
      %v327 = vld [vmem:[%s1 + $0xc] sm:$0xf]
      %v328 = vld [vmem:[%s1 + $0x10] sm:$0xf]
      %v329 = vld [vmem:[%s1 + $0x14] sm:$0xf]
      %v330 = vld [vmem:[%s1 + $0x18] sm:$0xf]
      %v331 = vld [vmem:[%s1 + $0x1c] sm:$0xf]
      %v332 = vld [vmem:[%s1 + $0x20] sm:$0xf]
      %v333 = vld [vmem:[%s3] sm:$0xf]
      %v334 = vld [vmem:[%s3 + $0x4] sm:$0xf]
      %v335 = vld [vmem:[%s3 + $0x8] sm:$0xf]
      %v336 = vld [vmem:[%s3 + $0xc] sm:$0xf]
      %v337 = vld [vmem:[%s3 + $0x10] sm:$0xf]
      %v338 = vld [vmem:[%s3 + $0x14] sm:$0xf]
      %v339 = vld [vmem:[%s3 + $0x18] sm:$0xf]
      %v340 = vld [vmem:[%s3 + $0x1c] sm:$0xf]
      %v341 = vld [vmem:[%s3 + $0x20] sm:$0xf]
      %v342 = vld [vmem:[%s2] sm:$0x1]
      %v343 = vld [vmem:[%s4] sm:$0x1]
      loop: start=0, step=1, limit=16
      $region41: #{resblock2_forward.1} parent=39 // loop_pre_header
        _
      $region42: #{resblock2_forward.1} parent=39 // loop_header
        %s345 = sphi 0, %s349
        %p346 = scmp.ge.s32.totalorder %s345, 16
      $region43: #{resblock2_forward.1} parent=39 // loop_header_branch
        %348 = sbr.rel (%p346) target = $region47
      $region44: #{resblock2_forward.1} parent=39 // loop_body
        %v351 = vlaneseq
        %v352 = vshrl.u32 %v351, 7
        %v353 = vsub.s32 0, %v352
        %v354 = vrot.slane %v342, %v353
        %v356 = vadd.f32 %v354, 0.0
        %s357 = sadd.s32 %s345, 4294967295
        %p358 = scmp.lt.s32.totalorder %s357, 0
        %s359 = ssub.s32 1, %s345
        %s360 = scalar_select %p358, %s359, %s357
        %p361 = scmp.gt.s32.totalorder %s360, 15
        %s362 = ssub.s32 30, %s360
        %s363 = scalar_select %p361, %s362, %s360
        %s364 = smul.u32 %s363, 24
        %s365 = scalar_lea.vmem [#allocation2], %s364
        %v366 = vld [vmem:[%s365] sm:$0xff]
        %v367 = vld [vmem:[%s365 + $0x8] sm:$0xff]
        %v369 = vsel %vm257, %v366, 0
        %v372 = vsel %vm257, %v367, 0
        %vm374 = vcmask 1043456
        %v376 = vsel %vm374, %v324, 0
        %378 = vmatprep.subr.mxu0 0.0
        %379 = vmatpush1.msra.mxu0 %v376
        %380 = vmatprep.subr.mxu0 0.0
        %381 = vmatpush1.msra.mxu0 0.0
        %382 = vmatprep.subr.mxu0 0.0
        %383 = vmatpush1.msra.mxu0 0.0
        %384 = vmatprep.subr.mxu0 0.0
        %385 = vmatpush1.msra.mxu0 0.0
        %386 = vmatprep.subr.mxu0 0.0
        %387 = vmatpush1.msra.mxu0 0.0
        %388 = vmatprep.subr.mxu0 0.0
        %389 = vmatpush1.msra.mxu0 0.0
        %390 = vmatprep.subr.mxu0 0.0
        %391 = vmatpush1.msra.mxu0 0.0
        %392 = vmatprep.subr.mxu0 0.0
        %393 = vmatpush1.msra.mxu0 0.0
        %394 = vmatprep.subr.mxu0 0.0
        %395 = vmatpush1.msra.mxu0 0.0
        %396 = vmatprep.subr.mxu0 0.0
        %397 = vmatpush1.msra.mxu0 0.0
        %398 = vmatprep.subr.mxu0 0.0
        %399 = vmatpush1.msra.mxu0 0.0
        %400 = vmatprep.subr.mxu0 0.0
        %401 = vmatpush1.msra.mxu0 0.0
        %402 = vmatprep.subr.mxu0 0.0
        %403 = vmatpush1.msra.mxu0 0.0
        %404 = vmatprep.subr.mxu0 0.0
        %405 = vmatpush1.msra.mxu0 0.0
        %406 = vmatprep.subr.mxu0 0.0
        %407 = vmatpush1.msra.mxu0 0.0
        %408 = vmatprep.subr.mxu0 0.0
        %409 = vmatpush1.msra.mxu0 0.0
        %410 = vmatprep.subr.mxu0 0.0
        %411 = vmatpush1.msra.mxu0 0.0
        %412 = vmatprep.subr.mxu0 0.0
        %413 = vmatpush1.msra.mxu0 0.0
        %414 = vmatprep.subr.mxu0 0.0
        %415 = vmatpush1.msra.mxu0 0.0
        %416 = vmatprep.subr.mxu0 0.0
        %417 = vmatpush1.msra.mxu0 0.0
        %418 = vmatprep.subr.mxu0 0.0
        %419 = vmatpush1.msra.mxu0 0.0
        %420 = vmatprep.subr.mxu0 0.0
        %421 = vmatpush1.msra.mxu0 0.0
        %422 = vmatprep.subr.mxu0 0.0
        %423 = vmatpush1.msra.mxu0 0.0
        %424 = vmatprep.subr.mxu0 0.0
        %425 = vmatpush1.msra.mxu0 0.0
        %426 = vmatprep.subr.mxu0 0.0
        %427 = vmatpush1.msra.mxu0 0.0
        %428 = vmatprep.subr.mxu0 0.0
        %429 = vmatpush1.msra.mxu0 0.0
        %430 = vmatprep.subr.mxu0 0.0
        %431 = vmatpush1.msra.mxu0 0.0
        %432 = vmatprep.subr.mxu0 0.0
        %433 = vmatpush1.msra.mxu0 0.0
        %434 = vmatprep.subr.mxu0 0.0
        %435 = vmatpush1.msra.mxu0 0.0
        %436 = vmatprep.subr.mxu0 0.0
        %437 = vmatpush1.msra.mxu0 0.0
        %438 = vmatprep.subr.mxu0 0.0
        %439 = vmatpush1.msra.mxu0 0.0
        %440 = vmatprep.subr.mxu0 0.0
        %441 = vmatpush1.msra.mxu0 0.0
        %442 = vmatprep.mubr.f32.mxu0 0.0
        %443 = vmatmul.mubr.f32.gmra.mrb[0].mxu0 %v369
        %v444 = vpop.f32.mrb[0].mxu0
        %v445 = vadd.f32 0.0, %v444
        %v446 = vpop.f32.mrb[0].mxu0
        %447 = vmatprep.mubr.f32.mxu0 0.0
        %448 = vmatmul.mubr.f32.gmra.mrb[0].mxu0 %v372
        %v449 = vpop.f32.mrb[0].mxu0
        %v450 = vadd.f32 0.0, %v449
        %v451 = vpop.f32.mrb[0].mxu0
        %452 = vdwg.mxu0
        %v453 = vadd.f32 %v356, %v445
        %v454 = vadd.f32 %v356, %v450
        %v455 = vld [vmem:[%s365 + $0x1] sm:$0xff]
        %v456 = vld [vmem:[%s365 + $0x9] sm:$0xff]
        %v458 = vsel %vm257, %v455, 0
        %v461 = vsel %vm257, %v456, 0
        %v464 = vsel %vm374, %v325, 0
        %466 = vmatprep.subr.mxu0 0.0
        %467 = vmatpush1.msra.mxu0 %v464
        %468 = vmatprep.subr.mxu0 0.0
        %469 = vmatpush1.msra.mxu0 0.0
        %470 = vmatprep.subr.mxu0 0.0
        %471 = vmatpush1.msra.mxu0 0.0
        %472 = vmatprep.subr.mxu0 0.0
        %473 = vmatpush1.msra.mxu0 0.0
        %474 = vmatprep.subr.mxu0 0.0
        %475 = vmatpush1.msra.mxu0 0.0
        %476 = vmatprep.subr.mxu0 0.0
        %477 = vmatpush1.msra.mxu0 0.0
        %478 = vmatprep.subr.mxu0 0.0
        %479 = vmatpush1.msra.mxu0 0.0
        %480 = vmatprep.subr.mxu0 0.0
        %481 = vmatpush1.msra.mxu0 0.0
        %482 = vmatprep.subr.mxu0 0.0
        %483 = vmatpush1.msra.mxu0 0.0
        %484 = vmatprep.subr.mxu0 0.0
        %485 = vmatpush1.msra.mxu0 0.0
        %486 = vmatprep.subr.mxu0 0.0
        %487 = vmatpush1.msra.mxu0 0.0
        %488 = vmatprep.subr.mxu0 0.0
        %489 = vmatpush1.msra.mxu0 0.0
        %490 = vmatprep.subr.mxu0 0.0
        %491 = vmatpush1.msra.mxu0 0.0
        %492 = vmatprep.subr.mxu0 0.0
        %493 = vmatpush1.msra.mxu0 0.0
        %494 = vmatprep.subr.mxu0 0.0
        %495 = vmatpush1.msra.mxu0 0.0
        %496 = vmatprep.subr.mxu0 0.0
        %497 = vmatpush1.msra.mxu0 0.0
        %498 = vmatprep.subr.mxu0 0.0
        %499 = vmatpush1.msra.mxu0 0.0
        %500 = vmatprep.subr.mxu0 0.0
        %501 = vmatpush1.msra.mxu0 0.0
        %502 = vmatprep.subr.mxu0 0.0
        %503 = vmatpush1.msra.mxu0 0.0
        %504 = vmatprep.subr.mxu0 0.0
        %505 = vmatpush1.msra.mxu0 0.0
        %506 = vmatprep.subr.mxu0 0.0
        %507 = vmatpush1.msra.mxu0 0.0
        %508 = vmatprep.subr.mxu0 0.0
        %509 = vmatpush1.msra.mxu0 0.0
        %510 = vmatprep.subr.mxu0 0.0
        %511 = vmatpush1.msra.mxu0 0.0
        %512 = vmatprep.subr.mxu0 0.0
        %513 = vmatpush1.msra.mxu0 0.0
        %514 = vmatprep.subr.mxu0 0.0
        %515 = vmatpush1.msra.mxu0 0.0
        %516 = vmatprep.subr.mxu0 0.0
        %517 = vmatpush1.msra.mxu0 0.0
        %518 = vmatprep.subr.mxu0 0.0
        %519 = vmatpush1.msra.mxu0 0.0
        %520 = vmatprep.subr.mxu0 0.0
        %521 = vmatpush1.msra.mxu0 0.0
        %522 = vmatprep.subr.mxu0 0.0
        %523 = vmatpush1.msra.mxu0 0.0
        %524 = vmatprep.subr.mxu0 0.0
        %525 = vmatpush1.msra.mxu0 0.0
        %526 = vmatprep.subr.mxu0 0.0
        %527 = vmatpush1.msra.mxu0 0.0
        %528 = vmatprep.subr.mxu0 0.0
        %529 = vmatpush1.msra.mxu0 0.0
        %530 = vmatprep.mubr.f32.mxu0 0.0
        %531 = vmatmul.mubr.f32.gmra.mrb[0].mxu0 %v458
        %v532 = vpop.f32.mrb[0].mxu0
        %v533 = vadd.f32 0.0, %v532
        %v534 = vpop.f32.mrb[0].mxu0
        %535 = vmatprep.mubr.f32.mxu0 0.0
        %536 = vmatmul.mubr.f32.gmra.mrb[0].mxu0 %v461
        %v537 = vpop.f32.mrb[0].mxu0
        %v538 = vadd.f32 0.0, %v537
        %v539 = vpop.f32.mrb[0].mxu0
        %540 = vdwg.mxu0
        %v541 = vadd.f32 %v453, %v533
        %v542 = vadd.f32 %v454, %v538
        %v543 = vld [vmem:[%s365 + $0x2] sm:$0xff]
        %v544 = vld [vmem:[%s365 + $0xa] sm:$0xff]
        %v546 = vsel %vm257, %v543, 0
        %v549 = vsel %vm257, %v544, 0
        %v552 = vsel %vm374, %v326, 0
        %554 = vmatprep.subr.mxu0 0.0
        %555 = vmatpush1.msra.mxu0 %v552
        %556 = vmatprep.subr.mxu0 0.0
        %557 = vmatpush1.msra.mxu0 0.0
        %558 = vmatprep.subr.mxu0 0.0
        %559 = vmatpush1.msra.mxu0 0.0
        %560 = vmatprep.subr.mxu0 0.0
        %561 = vmatpush1.msra.mxu0 0.0
        %562 = vmatprep.subr.mxu0 0.0
        %563 = vmatpush1.msra.mxu0 0.0
        %564 = vmatprep.subr.mxu0 0.0
        %565 = vmatpush1.msra.mxu0 0.0
        %566 = vmatprep.subr.mxu0 0.0
        %567 = vmatpush1.msra.mxu0 0.0
        %568 = vmatprep.subr.mxu0 0.0
        %569 = vmatpush1.msra.mxu0 0.0
        %570 = vmatprep.subr.mxu0 0.0
        %571 = vmatpush1.msra.mxu0 0.0
        %572 = vmatprep.subr.mxu0 0.0
        %573 = vmatpush1.msra.mxu0 0.0
        %574 = vmatprep.subr.mxu0 0.0
        %575 = vmatpush1.msra.mxu0 0.0
        %576 = vmatprep.subr.mxu0 0.0
        %577 = vmatpush1.msra.mxu0 0.0
        %578 = vmatprep.subr.mxu0 0.0
        %579 = vmatpush1.msra.mxu0 0.0
        %580 = vmatprep.subr.mxu0 0.0
        %581 = vmatpush1.msra.mxu0 0.0
        %582 = vmatprep.subr.mxu0 0.0
        %583 = vmatpush1.msra.mxu0 0.0
        %584 = vmatprep.subr.mxu0 0.0
        %585 = vmatpush1.msra.mxu0 0.0
        %586 = vmatprep.subr.mxu0 0.0
        %587 = vmatpush1.msra.mxu0 0.0
        %588 = vmatprep.subr.mxu0 0.0
        %589 = vmatpush1.msra.mxu0 0.0
        %590 = vmatprep.subr.mxu0 0.0
        %591 = vmatpush1.msra.mxu0 0.0
        %592 = vmatprep.subr.mxu0 0.0
        %593 = vmatpush1.msra.mxu0 0.0
        %594 = vmatprep.subr.mxu0 0.0
        %595 = vmatpush1.msra.mxu0 0.0
        %596 = vmatprep.subr.mxu0 0.0
        %597 = vmatpush1.msra.mxu0 0.0
        %598 = vmatprep.subr.mxu0 0.0
        %599 = vmatpush1.msra.mxu0 0.0
        %600 = vmatprep.subr.mxu0 0.0
        %601 = vmatpush1.msra.mxu0 0.0
        %602 = vmatprep.subr.mxu0 0.0
        %603 = vmatpush1.msra.mxu0 0.0
        %604 = vmatprep.subr.mxu0 0.0
        %605 = vmatpush1.msra.mxu0 0.0
        %606 = vmatprep.subr.mxu0 0.0
        %607 = vmatpush1.msra.mxu0 0.0
        %608 = vmatprep.subr.mxu0 0.0
        %609 = vmatpush1.msra.mxu0 0.0
        %610 = vmatprep.subr.mxu0 0.0
        %611 = vmatpush1.msra.mxu0 0.0
        %612 = vmatprep.subr.mxu0 0.0
        %613 = vmatpush1.msra.mxu0 0.0
        %614 = vmatprep.subr.mxu0 0.0
        %615 = vmatpush1.msra.mxu0 0.0
        %616 = vmatprep.subr.mxu0 0.0
        %617 = vmatpush1.msra.mxu0 0.0
        %618 = vmatprep.mubr.f32.mxu0 0.0
        %619 = vmatmul.mubr.f32.gmra.mrb[0].mxu0 %v546
        %v620 = vpop.f32.mrb[0].mxu0
        %v621 = vadd.f32 0.0, %v620
        %v622 = vpop.f32.mrb[0].mxu0
        %623 = vmatprep.mubr.f32.mxu0 0.0
        %624 = vmatmul.mubr.f32.gmra.mrb[0].mxu0 %v549
        %v625 = vpop.f32.mrb[0].mxu0
        %v626 = vadd.f32 0.0, %v625
        %v627 = vpop.f32.mrb[0].mxu0
        %628 = vdwg.mxu0
        %v629 = vadd.f32 %v541, %v621
        %v630 = vadd.f32 %v542, %v626
        %p631 = scmp.lt.s32.totalorder %s345, 0
        %s632 = ssub.s32 0, %s345
        %s633 = scalar_select %p631, %s632, %s345
        %p634 = scmp.gt.s32.totalorder %s633, 15
        %s635 = ssub.s32 30, %s633
        %s636 = scalar_select %p634, %s635, %s633
        %s637 = smul.u32 %s636, 24
        %s638 = scalar_lea.vmem [#allocation2], %s637
        %v639 = vld [vmem:[%s638] sm:$0xff]
        %v640 = vld [vmem:[%s638 + $0x8] sm:$0xff]
        %v642 = vsel %vm257, %v639, 0
        %v645 = vsel %vm257, %v640, 0
        %v648 = vsel %vm374, %v327, 0
        %650 = vmatprep.subr.mxu0 0.0
        %651 = vmatpush1.msra.mxu0 %v648
        %652 = vmatprep.subr.mxu0 0.0
        %653 = vmatpush1.msra.mxu0 0.0
        %654 = vmatprep.subr.mxu0 0.0
        %655 = vmatpush1.msra.mxu0 0.0
        %656 = vmatprep.subr.mxu0 0.0
        %657 = vmatpush1.msra.mxu0 0.0
        %658 = vmatprep.subr.mxu0 0.0
        %659 = vmatpush1.msra.mxu0 0.0
        %660 = vmatprep.subr.mxu0 0.0
        %661 = vmatpush1.msra.mxu0 0.0
        %662 = vmatprep.subr.mxu0 0.0
        %663 = vmatpush1.msra.mxu0 0.0
        %664 = vmatprep.subr.mxu0 0.0
        %665 = vmatpush1.msra.mxu0 0.0
        %666 = vmatprep.subr.mxu0 0.0
        %667 = vmatpush1.msra.mxu0 0.0
        %668 = vmatprep.subr.mxu0 0.0
        %669 = vmatpush1.msra.mxu0 0.0
        %670 = vmatprep.subr.mxu0 0.0
        %671 = vmatpush1.msra.mxu0 0.0
        %672 = vmatprep.subr.mxu0 0.0
        %673 = vmatpush1.msra.mxu0 0.0
        %674 = vmatprep.subr.mxu0 0.0
        %675 = vmatpush1.msra.mxu0 0.0
        %676 = vmatprep.subr.mxu0 0.0
        %677 = vmatpush1.msra.mxu0 0.0
        %678 = vmatprep.subr.mxu0 0.0
        %679 = vmatpush1.msra.mxu0 0.0
        %680 = vmatprep.subr.mxu0 0.0
        %681 = vmatpush1.msra.mxu0 0.0
        %682 = vmatprep.subr.mxu0 0.0
        %683 = vmatpush1.msra.mxu0 0.0
        %684 = vmatprep.subr.mxu0 0.0
        %685 = vmatpush1.msra.mxu0 0.0
        %686 = vmatprep.subr.mxu0 0.0
        %687 = vmatpush1.msra.mxu0 0.0
        %688 = vmatprep.subr.mxu0 0.0
        %689 = vmatpush1.msra.mxu0 0.0
        %690 = vmatprep.subr.mxu0 0.0
        %691 = vmatpush1.msra.mxu0 0.0
        %692 = vmatprep.subr.mxu0 0.0
        %693 = vmatpush1.msra.mxu0 0.0
        %694 = vmatprep.subr.mxu0 0.0
        %695 = vmatpush1.msra.mxu0 0.0
        %696 = vmatprep.subr.mxu0 0.0
        %697 = vmatpush1.msra.mxu0 0.0
        %698 = vmatprep.subr.mxu0 0.0
        %699 = vmatpush1.msra.mxu0 0.0
        %700 = vmatprep.subr.mxu0 0.0
        %701 = vmatpush1.msra.mxu0 0.0
        %702 = vmatprep.subr.mxu0 0.0
        %703 = vmatpush1.msra.mxu0 0.0
        %704 = vmatprep.subr.mxu0 0.0
        %705 = vmatpush1.msra.mxu0 0.0
        %706 = vmatprep.subr.mxu0 0.0
        %707 = vmatpush1.msra.mxu0 0.0
        %708 = vmatprep.subr.mxu0 0.0
        %709 = vmatpush1.msra.mxu0 0.0
        %710 = vmatprep.subr.mxu0 0.0
        %711 = vmatpush1.msra.mxu0 0.0
        %712 = vmatprep.subr.mxu0 0.0
        %713 = vmatpush1.msra.mxu0 0.0
        %714 = vmatprep.mubr.f32.mxu0 0.0
        %715 = vmatmul.mubr.f32.gmra.mrb[0].mxu0 %v642
        %v716 = vpop.f32.mrb[0].mxu0
        %v717 = vadd.f32 0.0, %v716
        %v718 = vpop.f32.mrb[0].mxu0
        %719 = vmatprep.mubr.f32.mxu0 0.0
        %720 = vmatmul.mubr.f32.gmra.mrb[0].mxu0 %v645
        %v721 = vpop.f32.mrb[0].mxu0
        %v722 = vadd.f32 0.0, %v721
        %v723 = vpop.f32.mrb[0].mxu0
        %724 = vdwg.mxu0
        %v725 = vadd.f32 %v629, %v717
        %v726 = vadd.f32 %v630, %v722
        %v727 = vld [vmem:[%s638 + $0x1] sm:$0xff]
        %v728 = vld [vmem:[%s638 + $0x9] sm:$0xff]
        %v730 = vsel %vm257, %v727, 0
        %v733 = vsel %vm257, %v728, 0
        %v736 = vsel %vm374, %v328, 0
        %738 = vmatprep.subr.mxu0 0.0
        %739 = vmatpush1.msra.mxu0 %v736
        %740 = vmatprep.subr.mxu0 0.0
        %741 = vmatpush1.msra.mxu0 0.0
        %742 = vmatprep.subr.mxu0 0.0
        %743 = vmatpush1.msra.mxu0 0.0
        %744 = vmatprep.subr.mxu0 0.0
        %745 = vmatpush1.msra.mxu0 0.0
        %746 = vmatprep.subr.mxu0 0.0
        %747 = vmatpush1.msra.mxu0 0.0
        %748 = vmatprep.subr.mxu0 0.0
        %749 = vmatpush1.msra.mxu0 0.0
        %750 = vmatprep.subr.mxu0 0.0
        %751 = vmatpush1.msra.mxu0 0.0
        %752 = vmatprep.subr.mxu0 0.0
        %753 = vmatpush1.msra.mxu0 0.0
        %754 = vmatprep.subr.mxu0 0.0
        %755 = vmatpush1.msra.mxu0 0.0
        %756 = vmatprep.subr.mxu0 0.0
        %757 = vmatpush1.msra.mxu0 0.0
        %758 = vmatprep.subr.mxu0 0.0
        %759 = vmatpush1.msra.mxu0 0.0
        %760 = vmatprep.subr.mxu0 0.0
        %761 = vmatpush1.msra.mxu0 0.0
        %762 = vmatprep.subr.mxu0 0.0
        %763 = vmatpush1.msra.mxu0 0.0
        %764 = vmatprep.subr.mxu0 0.0
        %765 = vmatpush1.msra.mxu0 0.0
        %766 = vmatprep.subr.mxu0 0.0
        %767 = vmatpush1.msra.mxu0 0.0
        %768 = vmatprep.subr.mxu0 0.0
        %769 = vmatpush1.msra.mxu0 0.0
        %770 = vmatprep.subr.mxu0 0.0
        %771 = vmatpush1.msra.mxu0 0.0
        %772 = vmatprep.subr.mxu0 0.0
        %773 = vmatpush1.msra.mxu0 0.0
        %774 = vmatprep.subr.mxu0 0.0
        %775 = vmatpush1.msra.mxu0 0.0
        %776 = vmatprep.subr.mxu0 0.0
        %777 = vmatpush1.msra.mxu0 0.0
        %778 = vmatprep.subr.mxu0 0.0
        %779 = vmatpush1.msra.mxu0 0.0
        %780 = vmatprep.subr.mxu0 0.0
        %781 = vmatpush1.msra.mxu0 0.0
        %782 = vmatprep.subr.mxu0 0.0
        %783 = vmatpush1.msra.mxu0 0.0
        %784 = vmatprep.subr.mxu0 0.0
        %785 = vmatpush1.msra.mxu0 0.0
        %786 = vmatprep.subr.mxu0 0.0
        %787 = vmatpush1.msra.mxu0 0.0
        %788 = vmatprep.subr.mxu0 0.0
        %789 = vmatpush1.msra.mxu0 0.0
        %790 = vmatprep.subr.mxu0 0.0
        %791 = vmatpush1.msra.mxu0 0.0
        %792 = vmatprep.subr.mxu0 0.0
        %793 = vmatpush1.msra.mxu0 0.0
        %794 = vmatprep.subr.mxu0 0.0
        %795 = vmatpush1.msra.mxu0 0.0
        %796 = vmatprep.subr.mxu0 0.0
        %797 = vmatpush1.msra.mxu0 0.0
        %798 = vmatprep.subr.mxu0 0.0
        %799 = vmatpush1.msra.mxu0 0.0
        %800 = vmatprep.subr.mxu0 0.0
        %801 = vmatpush1.msra.mxu0 0.0
        %802 = vmatprep.mubr.f32.mxu0 0.0
        %803 = vmatmul.mubr.f32.gmra.mrb[0].mxu0 %v730
        %v804 = vpop.f32.mrb[0].mxu0
        %v805 = vadd.f32 0.0, %v804
        %v806 = vpop.f32.mrb[0].mxu0
        %807 = vmatprep.mubr.f32.mxu0 0.0
        %808 = vmatmul.mubr.f32.gmra.mrb[0].mxu0 %v733
        %v809 = vpop.f32.mrb[0].mxu0
        %v810 = vadd.f32 0.0, %v809
        %v811 = vpop.f32.mrb[0].mxu0
        %812 = vdwg.mxu0
        %v813 = vadd.f32 %v725, %v805
        %v814 = vadd.f32 %v726, %v810
        %v815 = vld [vmem:[%s638 + $0x2] sm:$0xff]
        %v816 = vld [vmem:[%s638 + $0xa] sm:$0xff]
        %v818 = vsel %vm257, %v815, 0
        %v821 = vsel %vm257, %v816, 0
        %v824 = vsel %vm374, %v329, 0
        %826 = vmatprep.subr.mxu0 0.0
        %827 = vmatpush1.msra.mxu0 %v824
        %828 = vmatprep.subr.mxu0 0.0
        %829 = vmatpush1.msra.mxu0 0.0
        %830 = vmatprep.subr.mxu0 0.0
        %831 = vmatpush1.msra.mxu0 0.0
        %832 = vmatprep.subr.mxu0 0.0
        %833 = vmatpush1.msra.mxu0 0.0
        %834 = vmatprep.subr.mxu0 0.0
        %835 = vmatpush1.msra.mxu0 0.0
        %836 = vmatprep.subr.mxu0 0.0
        %837 = vmatpush1.msra.mxu0 0.0
        %838 = vmatprep.subr.mxu0 0.0
        %839 = vmatpush1.msra.mxu0 0.0
        %840 = vmatprep.subr.mxu0 0.0
        %841 = vmatpush1.msra.mxu0 0.0
        %842 = vmatprep.subr.mxu0 0.0
        %843 = vmatpush1.msra.mxu0 0.0
        %844 = vmatprep.subr.mxu0 0.0
        %845 = vmatpush1.msra.mxu0 0.0
        %846 = vmatprep.subr.mxu0 0.0
        %847 = vmatpush1.msra.mxu0 0.0
        %848 = vmatprep.subr.mxu0 0.0
        %849 = vmatpush1.msra.mxu0 0.0
        %850 = vmatprep.subr.mxu0 0.0
        %851 = vmatpush1.msra.mxu0 0.0
        %852 = vmatprep.subr.mxu0 0.0
        %853 = vmatpush1.msra.mxu0 0.0
        %854 = vmatprep.subr.mxu0 0.0
        %855 = vmatpush1.msra.mxu0 0.0
        %856 = vmatprep.subr.mxu0 0.0
        %857 = vmatpush1.msra.mxu0 0.0
        %858 = vmatprep.subr.mxu0 0.0
        %859 = vmatpush1.msra.mxu0 0.0
        %860 = vmatprep.subr.mxu0 0.0
        %861 = vmatpush1.msra.mxu0 0.0
        %862 = vmatprep.subr.mxu0 0.0
        %863 = vmatpush1.msra.mxu0 0.0
        %864 = vmatprep.subr.mxu0 0.0
        %865 = vmatpush1.msra.mxu0 0.0
        %866 = vmatprep.subr.mxu0 0.0
        %867 = vmatpush1.msra.mxu0 0.0
        %868 = vmatprep.subr.mxu0 0.0
        %869 = vmatpush1.msra.mxu0 0.0
        %870 = vmatprep.subr.mxu0 0.0
        %871 = vmatpush1.msra.mxu0 0.0
        %872 = vmatprep.subr.mxu0 0.0
        %873 = vmatpush1.msra.mxu0 0.0
        %874 = vmatprep.subr.mxu0 0.0
        %875 = vmatpush1.msra.mxu0 0.0
        %876 = vmatprep.subr.mxu0 0.0
        %877 = vmatpush1.msra.mxu0 0.0
        %878 = vmatprep.subr.mxu0 0.0
        %879 = vmatpush1.msra.mxu0 0.0
        %880 = vmatprep.subr.mxu0 0.0
        %881 = vmatpush1.msra.mxu0 0.0
        %882 = vmatprep.subr.mxu0 0.0
        %883 = vmatpush1.msra.mxu0 0.0
        %884 = vmatprep.subr.mxu0 0.0
        %885 = vmatpush1.msra.mxu0 0.0
        %886 = vmatprep.subr.mxu0 0.0
        %887 = vmatpush1.msra.mxu0 0.0
        %888 = vmatprep.subr.mxu0 0.0
        %889 = vmatpush1.msra.mxu0 0.0
        %890 = vmatprep.mubr.f32.mxu0 0.0
        %891 = vmatmul.mubr.f32.gmra.mrb[0].mxu0 %v818
        %v892 = vpop.f32.mrb[0].mxu0
        %v893 = vadd.f32 0.0, %v892
        %v894 = vpop.f32.mrb[0].mxu0
        %895 = vmatprep.mubr.f32.mxu0 0.0
        %896 = vmatmul.mubr.f32.gmra.mrb[0].mxu0 %v821
        %v897 = vpop.f32.mrb[0].mxu0
        %v898 = vadd.f32 0.0, %v897
        %v899 = vpop.f32.mrb[0].mxu0
        %900 = vdwg.mxu0
        %v901 = vadd.f32 %v813, %v893
        %v902 = vadd.f32 %v814, %v898
        %s903 = sadd.s32 %s345, 1
        %p904 = scmp.lt.s32.totalorder %s903, 0
        %s905 = ssub.s32 4294967295, %s345
        %s906 = scalar_select %p904, %s905, %s903
        %p907 = scmp.gt.s32.totalorder %s906, 15
        %s908 = ssub.s32 30, %s906
        %s909 = scalar_select %p907, %s908, %s906
        %s910 = smul.u32 %s909, 24
        %s911 = scalar_lea.vmem [#allocation2], %s910
        %v912 = vld [vmem:[%s911] sm:$0xff]
        %v913 = vld [vmem:[%s911 + $0x8] sm:$0xff]
        %v915 = vsel %vm257, %v912, 0
        %v918 = vsel %vm257, %v913, 0
        %v921 = vsel %vm374, %v330, 0
        %923 = vmatprep.subr.mxu0 0.0
        %924 = vmatpush1.msra.mxu0 %v921
        %925 = vmatprep.subr.mxu0 0.0
        %926 = vmatpush1.msra.mxu0 0.0
        %927 = vmatprep.subr.mxu0 0.0
        %928 = vmatpush1.msra.mxu0 0.0
        %929 = vmatprep.subr.mxu0 0.0
        %930 = vmatpush1.msra.mxu0 0.0
        %931 = vmatprep.subr.mxu0 0.0
        %932 = vmatpush1.msra.mxu0 0.0
        %933 = vmatprep.subr.mxu0 0.0
        %934 = vmatpush1.msra.mxu0 0.0
        %935 = vmatprep.subr.mxu0 0.0
        %936 = vmatpush1.msra.mxu0 0.0
        %937 = vmatprep.subr.mxu0 0.0
        %938 = vmatpush1.msra.mxu0 0.0
        %939 = vmatprep.subr.mxu0 0.0
        %940 = vmatpush1.msra.mxu0 0.0
        %941 = vmatprep.subr.mxu0 0.0
        %942 = vmatpush1.msra.mxu0 0.0
        %943 = vmatprep.subr.mxu0 0.0
        %944 = vmatpush1.msra.mxu0 0.0
        %945 = vmatprep.subr.mxu0 0.0
        %946 = vmatpush1.msra.mxu0 0.0
        %947 = vmatprep.subr.mxu0 0.0
        %948 = vmatpush1.msra.mxu0 0.0
        %949 = vmatprep.subr.mxu0 0.0
        %950 = vmatpush1.msra.mxu0 0.0
        %951 = vmatprep.subr.mxu0 0.0
        %952 = vmatpush1.msra.mxu0 0.0
        %953 = vmatprep.subr.mxu0 0.0
        %954 = vmatpush1.msra.mxu0 0.0
        %955 = vmatprep.subr.mxu0 0.0
        %956 = vmatpush1.msra.mxu0 0.0
        %957 = vmatprep.subr.mxu0 0.0
        %958 = vmatpush1.msra.mxu0 0.0
        %959 = vmatprep.subr.mxu0 0.0
        %960 = vmatpush1.msra.mxu0 0.0
        %961 = vmatprep.subr.mxu0 0.0
        %962 = vmatpush1.msra.mxu0 0.0
        %963 = vmatprep.subr.mxu0 0.0
        %964 = vmatpush1.msra.mxu0 0.0
        %965 = vmatprep.subr.mxu0 0.0
        %966 = vmatpush1.msra.mxu0 0.0
        %967 = vmatprep.subr.mxu0 0.0
        %968 = vmatpush1.msra.mxu0 0.0
        %969 = vmatprep.subr.mxu0 0.0
        %970 = vmatpush1.msra.mxu0 0.0
        %971 = vmatprep.subr.mxu0 0.0
        %972 = vmatpush1.msra.mxu0 0.0
        %973 = vmatprep.subr.mxu0 0.0
        %974 = vmatpush1.msra.mxu0 0.0
        %975 = vmatprep.subr.mxu0 0.0
        %976 = vmatpush1.msra.mxu0 0.0
        %977 = vmatprep.subr.mxu0 0.0
        %978 = vmatpush1.msra.mxu0 0.0
        %979 = vmatprep.subr.mxu0 0.0
        %980 = vmatpush1.msra.mxu0 0.0
        %981 = vmatprep.subr.mxu0 0.0
        %982 = vmatpush1.msra.mxu0 0.0
        %983 = vmatprep.subr.mxu0 0.0
        %984 = vmatpush1.msra.mxu0 0.0
        %985 = vmatprep.subr.mxu0 0.0
        %986 = vmatpush1.msra.mxu0 0.0
        %987 = vmatprep.mubr.f32.mxu0 0.0
        %988 = vmatmul.mubr.f32.gmra.mrb[0].mxu0 %v915
        %v989 = vpop.f32.mrb[0].mxu0
        %v990 = vadd.f32 0.0, %v989
        %v991 = vpop.f32.mrb[0].mxu0
        %992 = vmatprep.mubr.f32.mxu0 0.0
        %993 = vmatmul.mubr.f32.gmra.mrb[0].mxu0 %v918
        %v994 = vpop.f32.mrb[0].mxu0
        %v995 = vadd.f32 0.0, %v994
        %v996 = vpop.f32.mrb[0].mxu0
        %997 = vdwg.mxu0
        %v998 = vadd.f32 %v901, %v990
        %v999 = vadd.f32 %v902, %v995
        %v1000 = vld [vmem:[%s911 + $0x1] sm:$0xff]
        %v1001 = vld [vmem:[%s911 + $0x9] sm:$0xff]
        %v1003 = vsel %vm257, %v1000, 0
        %v1006 = vsel %vm257, %v1001, 0
        %v1009 = vsel %vm374, %v331, 0
        %1011 = vmatprep.subr.mxu0 0.0
        %1012 = vmatpush1.msra.mxu0 %v1009
        %1013 = vmatprep.subr.mxu0 0.0
        %1014 = vmatpush1.msra.mxu0 0.0
        %1015 = vmatprep.subr.mxu0 0.0
        %1016 = vmatpush1.msra.mxu0 0.0
        %1017 = vmatprep.subr.mxu0 0.0
        %1018 = vmatpush1.msra.mxu0 0.0
        %1019 = vmatprep.subr.mxu0 0.0
        %1020 = vmatpush1.msra.mxu0 0.0
        %1021 = vmatprep.subr.mxu0 0.0
        %1022 = vmatpush1.msra.mxu0 0.0
        %1023 = vmatprep.subr.mxu0 0.0
        %1024 = vmatpush1.msra.mxu0 0.0
        %1025 = vmatprep.subr.mxu0 0.0
        %1026 = vmatpush1.msra.mxu0 0.0
        %1027 = vmatprep.subr.mxu0 0.0
        %1028 = vmatpush1.msra.mxu0 0.0
        %1029 = vmatprep.subr.mxu0 0.0
        %1030 = vmatpush1.msra.mxu0 0.0
        %1031 = vmatprep.subr.mxu0 0.0
        %1032 = vmatpush1.msra.mxu0 0.0
        %1033 = vmatprep.subr.mxu0 0.0
        %1034 = vmatpush1.msra.mxu0 0.0
        %1035 = vmatprep.subr.mxu0 0.0
        %1036 = vmatpush1.msra.mxu0 0.0
        %1037 = vmatprep.subr.mxu0 0.0
        %1038 = vmatpush1.msra.mxu0 0.0
        %1039 = vmatprep.subr.mxu0 0.0
        %1040 = vmatpush1.msra.mxu0 0.0
        %1041 = vmatprep.subr.mxu0 0.0
        %1042 = vmatpush1.msra.mxu0 0.0
        %1043 = vmatprep.subr.mxu0 0.0
        %1044 = vmatpush1.msra.mxu0 0.0
        %1045 = vmatprep.subr.mxu0 0.0
        %1046 = vmatpush1.msra.mxu0 0.0
        %1047 = vmatprep.subr.mxu0 0.0
        %1048 = vmatpush1.msra.mxu0 0.0
        %1049 = vmatprep.subr.mxu0 0.0
        %1050 = vmatpush1.msra.mxu0 0.0
        %1051 = vmatprep.subr.mxu0 0.0
        %1052 = vmatpush1.msra.mxu0 0.0
        %1053 = vmatprep.subr.mxu0 0.0
        %1054 = vmatpush1.msra.mxu0 0.0
        %1055 = vmatprep.subr.mxu0 0.0
        %1056 = vmatpush1.msra.mxu0 0.0
        %1057 = vmatprep.subr.mxu0 0.0
        %1058 = vmatpush1.msra.mxu0 0.0
        %1059 = vmatprep.subr.mxu0 0.0
        %1060 = vmatpush1.msra.mxu0 0.0
        %1061 = vmatprep.subr.mxu0 0.0
        %1062 = vmatpush1.msra.mxu0 0.0
        %1063 = vmatprep.subr.mxu0 0.0
        %1064 = vmatpush1.msra.mxu0 0.0
        %1065 = vmatprep.subr.mxu0 0.0
        %1066 = vmatpush1.msra.mxu0 0.0
        %1067 = vmatprep.subr.mxu0 0.0
        %1068 = vmatpush1.msra.mxu0 0.0
        %1069 = vmatprep.subr.mxu0 0.0
        %1070 = vmatpush1.msra.mxu0 0.0
        %1071 = vmatprep.subr.mxu0 0.0
        %1072 = vmatpush1.msra.mxu0 0.0
        %1073 = vmatprep.subr.mxu0 0.0
        %1074 = vmatpush1.msra.mxu0 0.0
        %1075 = vmatprep.mubr.f32.mxu0 0.0
        %1076 = vmatmul.mubr.f32.gmra.mrb[0].mxu0 %v1003
        %v1077 = vpop.f32.mrb[0].mxu0
        %v1078 = vadd.f32 0.0, %v1077
        %v1079 = vpop.f32.mrb[0].mxu0
        %1080 = vmatprep.mubr.f32.mxu0 0.0
        %1081 = vmatmul.mubr.f32.gmra.mrb[0].mxu0 %v1006
        %v1082 = vpop.f32.mrb[0].mxu0
        %v1083 = vadd.f32 0.0, %v1082
        %v1084 = vpop.f32.mrb[0].mxu0
        %1085 = vdwg.mxu0
        %v1086 = vadd.f32 %v998, %v1078
        %v1087 = vadd.f32 %v999, %v1083
        %v1088 = vld [vmem:[%s911 + $0x2] sm:$0xff]
        %v1089 = vld [vmem:[%s911 + $0xa] sm:$0xff]
        %v1091 = vsel %vm257, %v1088, 0
        %v1094 = vsel %vm257, %v1089, 0
        %v1097 = vsel %vm374, %v332, 0
        %1099 = vmatprep.subr.mxu0 0.0
        %1100 = vmatpush1.msra.mxu0 %v1097
        %1101 = vmatprep.subr.mxu0 0.0
        %1102 = vmatpush1.msra.mxu0 0.0
        %1103 = vmatprep.subr.mxu0 0.0
        %1104 = vmatpush1.msra.mxu0 0.0
        %1105 = vmatprep.subr.mxu0 0.0
        %1106 = vmatpush1.msra.mxu0 0.0
        %1107 = vmatprep.subr.mxu0 0.0
        %1108 = vmatpush1.msra.mxu0 0.0
        %1109 = vmatprep.subr.mxu0 0.0
        %1110 = vmatpush1.msra.mxu0 0.0
        %1111 = vmatprep.subr.mxu0 0.0
        %1112 = vmatpush1.msra.mxu0 0.0
        %1113 = vmatprep.subr.mxu0 0.0
        %1114 = vmatpush1.msra.mxu0 0.0
        %1115 = vmatprep.subr.mxu0 0.0
        %1116 = vmatpush1.msra.mxu0 0.0
        %1117 = vmatprep.subr.mxu0 0.0
        %1118 = vmatpush1.msra.mxu0 0.0
        %1119 = vmatprep.subr.mxu0 0.0
        %1120 = vmatpush1.msra.mxu0 0.0
        %1121 = vmatprep.subr.mxu0 0.0
        %1122 = vmatpush1.msra.mxu0 0.0
        %1123 = vmatprep.subr.mxu0 0.0
        %1124 = vmatpush1.msra.mxu0 0.0
        %1125 = vmatprep.subr.mxu0 0.0
        %1126 = vmatpush1.msra.mxu0 0.0
        %1127 = vmatprep.subr.mxu0 0.0
        %1128 = vmatpush1.msra.mxu0 0.0
        %1129 = vmatprep.subr.mxu0 0.0
        %1130 = vmatpush1.msra.mxu0 0.0
        %1131 = vmatprep.subr.mxu0 0.0
        %1132 = vmatpush1.msra.mxu0 0.0
        %1133 = vmatprep.subr.mxu0 0.0
        %1134 = vmatpush1.msra.mxu0 0.0
        %1135 = vmatprep.subr.mxu0 0.0
        %1136 = vmatpush1.msra.mxu0 0.0
        %1137 = vmatprep.subr.mxu0 0.0
        %1138 = vmatpush1.msra.mxu0 0.0
        %1139 = vmatprep.subr.mxu0 0.0
        %1140 = vmatpush1.msra.mxu0 0.0
        %1141 = vmatprep.subr.mxu0 0.0
        %1142 = vmatpush1.msra.mxu0 0.0
        %1143 = vmatprep.subr.mxu0 0.0
        %1144 = vmatpush1.msra.mxu0 0.0
        %1145 = vmatprep.subr.mxu0 0.0
        %1146 = vmatpush1.msra.mxu0 0.0
        %1147 = vmatprep.subr.mxu0 0.0
        %1148 = vmatpush1.msra.mxu0 0.0
        %1149 = vmatprep.subr.mxu0 0.0
        %1150 = vmatpush1.msra.mxu0 0.0
        %1151 = vmatprep.subr.mxu0 0.0
        %1152 = vmatpush1.msra.mxu0 0.0
        %1153 = vmatprep.subr.mxu0 0.0
        %1154 = vmatpush1.msra.mxu0 0.0
        %1155 = vmatprep.subr.mxu0 0.0
        %1156 = vmatpush1.msra.mxu0 0.0
        %1157 = vmatprep.subr.mxu0 0.0
        %1158 = vmatpush1.msra.mxu0 0.0
        %1159 = vmatprep.subr.mxu0 0.0
        %1160 = vmatpush1.msra.mxu0 0.0
        %1161 = vmatprep.subr.mxu0 0.0
        %1162 = vmatpush1.msra.mxu0 0.0
        %1163 = vmatprep.mubr.f32.mxu0 0.0
        %1164 = vmatmul.mubr.f32.gmra.mrb[0].mxu0 %v1091
        %v1165 = vpop.f32.mrb[0].mxu0
        %v1166 = vadd.f32 0.0, %v1165
        %v1167 = vpop.f32.mrb[0].mxu0
        %1168 = vmatprep.mubr.f32.mxu0 0.0
        %1169 = vmatmul.mubr.f32.gmra.mrb[0].mxu0 %v1094
        %v1170 = vpop.f32.mrb[0].mxu0
        %v1171 = vadd.f32 0.0, %v1170
        %v1172 = vpop.f32.mrb[0].mxu0
        %1173 = vdwg.mxu0
        %v1174 = vadd.f32 %v1086, %v1166
        %v1175 = vadd.f32 %v1087, %v1171
        %s1176 = smul.u32 %s345, 24
        %s1177 = scalar_lea.vmem [#allocation3], %s1176
        %1178 = vst.msk [vmem:[%s1177 + $0x1] sm:$0xff] %vm257, %v1174
        %1179 = vst.msk [vmem:[%s1177 + $0x9] sm:$0xff] %vm257, %v1175
      $region45: #{resblock2_forward.1} parent=39 // loop_footer
        %s349 = sadd.s32 1, %s345
      $region46: #{resblock2_forward.1} parent=39 // loop_footer_branch
        %344 = sbr.rel target = $region42
      $region47: #{resblock2_forward.1} parent=39 // loop_exit
        _
      %v1180 = vld [vmem:[#allocation3 + $0x1] sm:$0xff]
      %v1181 = vld [vmem:[#allocation3 + $0x9] sm:$0xff]
      %v1182 = vld [vmem:[#allocation3 + $0x19] sm:$0xff]
      %v1183 = vld [vmem:[#allocation3 + $0x21] sm:$0xff]
      %v1184 = vld [vmem:[#allocation3 + $0x31] sm:$0xff]
      %v1185 = vld [vmem:[#allocation3 + $0x39] sm:$0xff]
      %v1186 = vld [vmem:[#allocation3 + $0x49] sm:$0xff]
      %v1187 = vld [vmem:[#allocation3 + $0x51] sm:$0xff]
      %v1188 = vld [vmem:[#allocation3 + $0x61] sm:$0xff]
      %v1189 = vld [vmem:[#allocation3 + $0x69] sm:$0xff]
      %v1190 = vld [vmem:[#allocation3 + $0x79] sm:$0xff]
      %v1191 = vld [vmem:[#allocation3 + $0x81] sm:$0xff]
      %v1192 = vld [vmem:[#allocation3 + $0x91] sm:$0xff]
      %v1193 = vld [vmem:[#allocation3 + $0x99] sm:$0xff]
      %v1194 = vld [vmem:[#allocation3 + $0xa9] sm:$0xff]
      %v1195 = vld [vmem:[#allocation3 + $0xb1] sm:$0xff]
      %v1196 = vld [vmem:[#allocation3 + $0xc1] sm:$0xff]
      %v1197 = vld [vmem:[#allocation3 + $0xc9] sm:$0xff]
      %v1198 = vld [vmem:[#allocation3 + $0xd9] sm:$0xff]
      %v1199 = vld [vmem:[#allocation3 + $0xe1] sm:$0xff]
      %v1200 = vld [vmem:[#allocation3 + $0xf1] sm:$0xff]
      %v1201 = vld [vmem:[#allocation3 + $0xf9] sm:$0xff]
      %v1202 = vld [vmem:[#allocation3 + $0x109] sm:$0xff]
      %v1203 = vld [vmem:[#allocation3 + $0x111] sm:$0xff]
      %v1204 = vld [vmem:[#allocation3 + $0x121] sm:$0xff]
      %v1205 = vld [vmem:[#allocation3 + $0x129] sm:$0xff]
      %v1206 = vld [vmem:[#allocation3 + $0x139] sm:$0xff]
      %v1207 = vld [vmem:[#allocation3 + $0x141] sm:$0xff]
      %v1208 = vld [vmem:[#allocation3 + $0x151] sm:$0xff]
      %v1209 = vld [vmem:[#allocation3 + $0x159] sm:$0xff]
      %v1210 = vld [vmem:[#allocation3 + $0x169] sm:$0xff]
      %v1211 = vld [vmem:[#allocation3 + $0x171] sm:$0xff]
      %v1212 = vsel %vm257, %v1180, 0.0
      %v1213 = vsel %vm257, %v1182, 0.0
      %v1214 = vadd.f32 %v1212, %v1213
      %v1215 = vsel %vm257, %v1184, 0.0
      %v1216 = vadd.f32 %v1214, %v1215
      %v1217 = vsel %vm257, %v1186, 0.0
      %v1218 = vadd.f32 %v1216, %v1217
      %v1219 = vsel %vm257, %v1188, 0.0
      %v1220 = vadd.f32 %v1218, %v1219
      %v1221 = vsel %vm257, %v1190, 0.0
      %v1222 = vadd.f32 %v1220, %v1221
      %v1223 = vsel %vm257, %v1192, 0.0
      %v1224 = vadd.f32 %v1222, %v1223
      %v1225 = vsel %vm257, %v1194, 0.0
      %v1226 = vadd.f32 %v1224, %v1225
      %v1227 = vsel %vm257, %v1196, 0.0
      %v1228 = vadd.f32 %v1226, %v1227
      %v1229 = vsel %vm257, %v1198, 0.0
      %v1230 = vadd.f32 %v1228, %v1229
      %v1231 = vsel %vm257, %v1200, 0.0
      %v1232 = vadd.f32 %v1230, %v1231
      %v1233 = vsel %vm257, %v1202, 0.0
      %v1234 = vadd.f32 %v1232, %v1233
      %v1235 = vsel %vm257, %v1204, 0.0
      %v1236 = vadd.f32 %v1234, %v1235
      %v1237 = vsel %vm257, %v1206, 0.0
      %v1238 = vadd.f32 %v1236, %v1237
      %v1239 = vsel %vm257, %v1208, 0.0
      %v1240 = vadd.f32 %v1238, %v1239
      %v1241 = vsel %vm257, %v1210, 0.0
      %v1242 = vadd.f32 %v1240, %v1241
      %v1243 = vsel %vm257, %v1181, 0.0
      %v1244 = vsel %vm257, %v1183, 0.0
      %v1245 = vadd.f32 %v1243, %v1244
      %v1246 = vsel %vm257, %v1185, 0.0
      %v1247 = vadd.f32 %v1245, %v1246
      %v1248 = vsel %vm257, %v1187, 0.0
      %v1249 = vadd.f32 %v1247, %v1248
      %v1250 = vsel %vm257, %v1189, 0.0
      %v1251 = vadd.f32 %v1249, %v1250
      %v1252 = vsel %vm257, %v1191, 0.0
      %v1253 = vadd.f32 %v1251, %v1252
      %v1254 = vsel %vm257, %v1193, 0.0
      %v1255 = vadd.f32 %v1253, %v1254
      %v1256 = vsel %vm257, %v1195, 0.0
      %v1257 = vadd.f32 %v1255, %v1256
      %v1258 = vsel %vm257, %v1197, 0.0
      %v1259 = vadd.f32 %v1257, %v1258
      %v1260 = vsel %vm257, %v1199, 0.0
      %v1261 = vadd.f32 %v1259, %v1260
      %v1262 = vsel %vm257, %v1201, 0.0
      %v1263 = vadd.f32 %v1261, %v1262
      %v1264 = vsel %vm257, %v1203, 0.0
      %v1265 = vadd.f32 %v1263, %v1264
      %v1266 = vsel %vm257, %v1205, 0.0
      %v1267 = vadd.f32 %v1265, %v1266
      %v1268 = vsel %vm257, %v1207, 0.0
      %v1269 = vadd.f32 %v1267, %v1268
      %v1270 = vsel %vm257, %v1209, 0.0
      %v1271 = vadd.f32 %v1269, %v1270
      %v1272 = vsel %vm257, %v1211, 0.0
      %v1273 = vadd.f32 %v1271, %v1272
      %v1274 = vsel %vm257, %v1242, 0.0
      %v1275 = vsel %vm257, %v1273, 0.0
      %v1276 = vadd.f32 %v1274, %v1275
      %v1277 = vrot.slane %v1276, 4
      %v1278 = vadd.f32 %v1276, %v1277
      %v1279 = vrot.slane %v1278, 2
      %v1280 = vadd.f32 %v1278, %v1279
      %v1281 = vrot.slane %v1280, 1
      %v1282 = vadd.f32 %v1280, %v1281
      %v1283 = vrcp.pop 256.0
      %v1284 = vmul.f32 %v1282, %v1283
      %v1285 = vsub.f32 %v1180, %v1284
      %v1286 = vsub.f32 %v1181, %v1284
      %v1287 = vsub.f32 %v1182, %v1284
      %v1288 = vsub.f32 %v1183, %v1284
      %v1289 = vsub.f32 %v1184, %v1284
      %v1290 = vsub.f32 %v1185, %v1284
      %v1291 = vsub.f32 %v1186, %v1284
      %v1292 = vsub.f32 %v1187, %v1284
      %v1293 = vsub.f32 %v1188, %v1284
      %v1294 = vsub.f32 %v1189, %v1284
      %v1295 = vsub.f32 %v1190, %v1284
      %v1296 = vsub.f32 %v1191, %v1284
      %v1297 = vsub.f32 %v1192, %v1284
      %v1298 = vsub.f32 %v1193, %v1284
      %v1299 = vsub.f32 %v1194, %v1284
      %v1300 = vsub.f32 %v1195, %v1284
      %v1301 = vsub.f32 %v1196, %v1284
      %v1302 = vsub.f32 %v1197, %v1284
      %v1303 = vsub.f32 %v1198, %v1284
      %v1304 = vsub.f32 %v1199, %v1284
      %v1305 = vsub.f32 %v1200, %v1284
      %v1306 = vsub.f32 %v1201, %v1284
      %v1307 = vsub.f32 %v1202, %v1284
      %v1308 = vsub.f32 %v1203, %v1284
      %v1309 = vsub.f32 %v1204, %v1284
      %v1310 = vsub.f32 %v1205, %v1284
      %v1311 = vsub.f32 %v1206, %v1284
      %v1312 = vsub.f32 %v1207, %v1284
      %v1313 = vsub.f32 %v1208, %v1284
      %v1314 = vsub.f32 %v1209, %v1284
      %v1315 = vsub.f32 %v1210, %v1284
      %v1316 = vsub.f32 %v1211, %v1284
      %v1317 = vmul.f32 %v1285, %v1285
      %v1318 = vmul.f32 %v1286, %v1286
      %v1319 = vmul.f32 %v1287, %v1287
      %v1320 = vmul.f32 %v1288, %v1288
      %v1321 = vmul.f32 %v1289, %v1289
      %v1322 = vmul.f32 %v1290, %v1290
      %v1323 = vmul.f32 %v1291, %v1291
      %v1324 = vmul.f32 %v1292, %v1292
      %v1325 = vmul.f32 %v1293, %v1293
      %v1326 = vmul.f32 %v1294, %v1294
      %v1327 = vmul.f32 %v1295, %v1295
      %v1328 = vmul.f32 %v1296, %v1296
      %v1329 = vmul.f32 %v1297, %v1297
      %v1330 = vmul.f32 %v1298, %v1298
      %v1331 = vmul.f32 %v1299, %v1299
      %v1332 = vmul.f32 %v1300, %v1300
      %v1333 = vmul.f32 %v1301, %v1301
      %v1334 = vmul.f32 %v1302, %v1302
      %v1335 = vmul.f32 %v1303, %v1303
      %v1336 = vmul.f32 %v1304, %v1304
      %v1337 = vmul.f32 %v1305, %v1305
      %v1338 = vmul.f32 %v1306, %v1306
      %v1339 = vmul.f32 %v1307, %v1307
      %v1340 = vmul.f32 %v1308, %v1308
      %v1341 = vmul.f32 %v1309, %v1309
      %v1342 = vmul.f32 %v1310, %v1310
      %v1343 = vmul.f32 %v1311, %v1311
      %v1344 = vmul.f32 %v1312, %v1312
      %v1345 = vmul.f32 %v1313, %v1313
      %v1346 = vmul.f32 %v1314, %v1314
      %v1347 = vmul.f32 %v1315, %v1315
      %v1348 = vmul.f32 %v1316, %v1316
      %v1349 = vsel %vm257, %v1317, 0.0
      %v1350 = vsel %vm257, %v1319, 0.0
      %v1351 = vadd.f32 %v1349, %v1350
      %v1352 = vsel %vm257, %v1321, 0.0
      %v1353 = vadd.f32 %v1351, %v1352
      %v1354 = vsel %vm257, %v1323, 0.0
      %v1355 = vadd.f32 %v1353, %v1354
      %v1356 = vsel %vm257, %v1325, 0.0
      %v1357 = vadd.f32 %v1355, %v1356
      %v1358 = vsel %vm257, %v1327, 0.0
      %v1359 = vadd.f32 %v1357, %v1358
      %v1360 = vsel %vm257, %v1329, 0.0
      %v1361 = vadd.f32 %v1359, %v1360
      %v1362 = vsel %vm257, %v1331, 0.0
      %v1363 = vadd.f32 %v1361, %v1362
      %v1364 = vsel %vm257, %v1333, 0.0
      %v1365 = vadd.f32 %v1363, %v1364
      %v1366 = vsel %vm257, %v1335, 0.0
      %v1367 = vadd.f32 %v1365, %v1366
      %v1368 = vsel %vm257, %v1337, 0.0
      %v1369 = vadd.f32 %v1367, %v1368
      %v1370 = vsel %vm257, %v1339, 0.0
      %v1371 = vadd.f32 %v1369, %v1370
      %v1372 = vsel %vm257, %v1341, 0.0
      %v1373 = vadd.f32 %v1371, %v1372
      %v1374 = vsel %vm257, %v1343, 0.0
      %v1375 = vadd.f32 %v1373, %v1374
      %v1376 = vsel %vm257, %v1345, 0.0
      %v1377 = vadd.f32 %v1375, %v1376
      %v1378 = vsel %vm257, %v1347, 0.0
      %v1379 = vadd.f32 %v1377, %v1378
      %v1380 = vsel %vm257, %v1318, 0.0
      %v1381 = vsel %vm257, %v1320, 0.0
      %v1382 = vadd.f32 %v1380, %v1381
      %v1383 = vsel %vm257, %v1322, 0.0
      %v1384 = vadd.f32 %v1382, %v1383
      %v1385 = vsel %vm257, %v1324, 0.0
      %v1386 = vadd.f32 %v1384, %v1385
      %v1387 = vsel %vm257, %v1326, 0.0
      %v1388 = vadd.f32 %v1386, %v1387
      %v1389 = vsel %vm257, %v1328, 0.0
      %v1390 = vadd.f32 %v1388, %v1389
      %v1391 = vsel %vm257, %v1330, 0.0
      %v1392 = vadd.f32 %v1390, %v1391
      %v1393 = vsel %vm257, %v1332, 0.0
      %v1394 = vadd.f32 %v1392, %v1393
      %v1395 = vsel %vm257, %v1334, 0.0
      %v1396 = vadd.f32 %v1394, %v1395
      %v1397 = vsel %vm257, %v1336, 0.0
      %v1398 = vadd.f32 %v1396, %v1397
      %v1399 = vsel %vm257, %v1338, 0.0
      %v1400 = vadd.f32 %v1398, %v1399
      %v1401 = vsel %vm257, %v1340, 0.0
      %v1402 = vadd.f32 %v1400, %v1401
      %v1403 = vsel %vm257, %v1342, 0.0
      %v1404 = vadd.f32 %v1402, %v1403
      %v1405 = vsel %vm257, %v1344, 0.0
      %v1406 = vadd.f32 %v1404, %v1405
      %v1407 = vsel %vm257, %v1346, 0.0
      %v1408 = vadd.f32 %v1406, %v1407
      %v1409 = vsel %vm257, %v1348, 0.0
      %v1410 = vadd.f32 %v1408, %v1409
      %v1411 = vsel %vm257, %v1379, 0.0
      %v1412 = vsel %vm257, %v1410, 0.0
      %v1413 = vadd.f32 %v1411, %v1412
      %v1414 = vrot.slane %v1413, 4
      %v1415 = vadd.f32 %v1413, %v1414
      %v1416 = vrot.slane %v1415, 2
      %v1417 = vadd.f32 %v1415, %v1416
      %v1418 = vrot.slane %v1417, 1
      %v1419 = vadd.f32 %v1417, %v1418
      %v1420 = vmul.f32 %v1419, %v1283
      %v1421 = vadd.f32 %v1420, 1e-05
      %v1422 = vrsqrt.pop %v1421
      %v1423 = vmul.f32 %v1285, %v1422
      %v1424 = vmul.f32 %v1286, %v1422
      %v1425 = vmul.f32 %v1287, %v1422
      %v1426 = vmul.f32 %v1288, %v1422
      %v1427 = vmul.f32 %v1289, %v1422
      %v1428 = vmul.f32 %v1290, %v1422
      %v1429 = vmul.f32 %v1291, %v1422
      %v1430 = vmul.f32 %v1292, %v1422
      %v1431 = vmul.f32 %v1293, %v1422
      %v1432 = vmul.f32 %v1294, %v1422
      %v1433 = vmul.f32 %v1295, %v1422
      %v1434 = vmul.f32 %v1296, %v1422
      %v1435 = vmul.f32 %v1297, %v1422
      %v1436 = vmul.f32 %v1298, %v1422
      %v1437 = vmul.f32 %v1299, %v1422
      %v1438 = vmul.f32 %v1300, %v1422
      %v1439 = vmul.f32 %v1301, %v1422
      %v1440 = vmul.f32 %v1302, %v1422
      %v1441 = vmul.f32 %v1303, %v1422
      %v1442 = vmul.f32 %v1304, %v1422
      %v1443 = vmul.f32 %v1305, %v1422
      %v1444 = vmul.f32 %v1306, %v1422
      %v1445 = vmul.f32 %v1307, %v1422
      %v1446 = vmul.f32 %v1308, %v1422
      %v1447 = vmul.f32 %v1309, %v1422
      %v1448 = vmul.f32 %v1310, %v1422
      %v1449 = vmul.f32 %v1311, %v1422
      %v1450 = vmul.f32 %v1312, %v1422
      %v1451 = vmul.f32 %v1313, %v1422
      %v1452 = vmul.f32 %v1314, %v1422
      %v1453 = vmul.f32 %v1315, %v1422
      %v1454 = vmul.f32 %v1316, %v1422
      %v1455 = vmax.f32 %v1423, 0.0
      %v1456 = vmax.f32 %v1424, 0.0
      %v1457 = vmax.f32 %v1425, 0.0
      %v1458 = vmax.f32 %v1426, 0.0
      %v1459 = vmax.f32 %v1427, 0.0
      %v1460 = vmax.f32 %v1428, 0.0
      %v1461 = vmax.f32 %v1429, 0.0
      %v1462 = vmax.f32 %v1430, 0.0
      %v1463 = vmax.f32 %v1431, 0.0
      %v1464 = vmax.f32 %v1432, 0.0
      %v1465 = vmax.f32 %v1433, 0.0
      %v1466 = vmax.f32 %v1434, 0.0
      %v1467 = vmax.f32 %v1435, 0.0
      %v1468 = vmax.f32 %v1436, 0.0
      %v1469 = vmax.f32 %v1437, 0.0
      %v1470 = vmax.f32 %v1438, 0.0
      %v1471 = vmax.f32 %v1439, 0.0
      %v1472 = vmax.f32 %v1440, 0.0
      %v1473 = vmax.f32 %v1441, 0.0
      %v1474 = vmax.f32 %v1442, 0.0
      %v1475 = vmax.f32 %v1443, 0.0
      %v1476 = vmax.f32 %v1444, 0.0
      %v1477 = vmax.f32 %v1445, 0.0
      %v1478 = vmax.f32 %v1446, 0.0
      %v1479 = vmax.f32 %v1447, 0.0
      %v1480 = vmax.f32 %v1448, 0.0
      %v1481 = vmax.f32 %v1449, 0.0
      %v1482 = vmax.f32 %v1450, 0.0
      %v1483 = vmax.f32 %v1451, 0.0
      %v1484 = vmax.f32 %v1452, 0.0
      %v1485 = vmax.f32 %v1453, 0.0
      %v1486 = vmax.f32 %v1454, 0.0
      %1487 = vst.msk [vmem:[#allocation3 + $0x1] sm:$0xff] %vm257, %v1455
      %1488 = vst.msk [vmem:[#allocation3 + $0x9] sm:$0xff] %vm257, %v1456
      %1489 = vst.msk [vmem:[#allocation3 + $0x19] sm:$0xff] %vm257, %v1457
      %1490 = vst.msk [vmem:[#allocation3 + $0x21] sm:$0xff] %vm257, %v1458
      %1491 = vst.msk [vmem:[#allocation3 + $0x31] sm:$0xff] %vm257, %v1459
      %1492 = vst.msk [vmem:[#allocation3 + $0x39] sm:$0xff] %vm257, %v1460
      %1493 = vst.msk [vmem:[#allocation3 + $0x49] sm:$0xff] %vm257, %v1461
      %1494 = vst.msk [vmem:[#allocation3 + $0x51] sm:$0xff] %vm257, %v1462
      %1495 = vst.msk [vmem:[#allocation3 + $0x61] sm:$0xff] %vm257, %v1463
      %1496 = vst.msk [vmem:[#allocation3 + $0x69] sm:$0xff] %vm257, %v1464
      %1497 = vst.msk [vmem:[#allocation3 + $0x79] sm:$0xff] %vm257, %v1465
      %1498 = vst.msk [vmem:[#allocation3 + $0x81] sm:$0xff] %vm257, %v1466
      %1499 = vst.msk [vmem:[#allocation3 + $0x91] sm:$0xff] %vm257, %v1467
      %1500 = vst.msk [vmem:[#allocation3 + $0x99] sm:$0xff] %vm257, %v1468
      %1501 = vst.msk [vmem:[#allocation3 + $0xa9] sm:$0xff] %vm257, %v1469
      %1502 = vst.msk [vmem:[#allocation3 + $0xb1] sm:$0xff] %vm257, %v1470
      %1503 = vst.msk [vmem:[#allocation3 + $0xc1] sm:$0xff] %vm257, %v1471
      %1504 = vst.msk [vmem:[#allocation3 + $0xc9] sm:$0xff] %vm257, %v1472
      %1505 = vst.msk [vmem:[#allocation3 + $0xd9] sm:$0xff] %vm257, %v1473
      %1506 = vst.msk [vmem:[#allocation3 + $0xe1] sm:$0xff] %vm257, %v1474
      %1507 = vst.msk [vmem:[#allocation3 + $0xf1] sm:$0xff] %vm257, %v1475
      %1508 = vst.msk [vmem:[#allocation3 + $0xf9] sm:$0xff] %vm257, %v1476
      %1509 = vst.msk [vmem:[#allocation3 + $0x109] sm:$0xff] %vm257, %v1477
      %1510 = vst.msk [vmem:[#allocation3 + $0x111] sm:$0xff] %vm257, %v1478
      %1511 = vst.msk [vmem:[#allocation3 + $0x121] sm:$0xff] %vm257, %v1479
      %1512 = vst.msk [vmem:[#allocation3 + $0x129] sm:$0xff] %vm257, %v1480
      %1513 = vst.msk [vmem:[#allocation3 + $0x139] sm:$0xff] %vm257, %v1481
      %1514 = vst.msk [vmem:[#allocation3 + $0x141] sm:$0xff] %vm257, %v1482
      %1515 = vst.msk [vmem:[#allocation3 + $0x151] sm:$0xff] %vm257, %v1483
      %1516 = vst.msk [vmem:[#allocation3 + $0x159] sm:$0xff] %vm257, %v1484
      %1517 = vst.msk [vmem:[#allocation3 + $0x169] sm:$0xff] %vm257, %v1485
      %1518 = vst.msk [vmem:[#allocation3 + $0x171] sm:$0xff] %vm257, %v1486
      %1519 = vst.msk [vmem:[#allocation3 - $0x1] sm:$0x2] %vm290, %v1455
      %1520 = vst.msk [vmem:[#allocation3 + $0x17] sm:$0x2] %vm290, %v1457
      %1521 = vst.msk [vmem:[#allocation3 + $0x2f] sm:$0x2] %vm290, %v1459
      %1522 = vst.msk [vmem:[#allocation3 + $0x47] sm:$0x2] %vm290, %v1461
      %1523 = vst.msk [vmem:[#allocation3 + $0x5f] sm:$0x2] %vm290, %v1463
      %1524 = vst.msk [vmem:[#allocation3 + $0x77] sm:$0x2] %vm290, %v1465
      %1525 = vst.msk [vmem:[#allocation3 + $0x8f] sm:$0x2] %vm290, %v1467
      %1526 = vst.msk [vmem:[#allocation3 + $0xa7] sm:$0x2] %vm290, %v1469
      %1527 = vst.msk [vmem:[#allocation3 + $0xbf] sm:$0x2] %vm290, %v1471
      %1528 = vst.msk [vmem:[#allocation3 + $0xd7] sm:$0x2] %vm290, %v1473
      %1529 = vst.msk [vmem:[#allocation3 + $0xef] sm:$0x2] %vm290, %v1475
      %1530 = vst.msk [vmem:[#allocation3 + $0x107] sm:$0x2] %vm290, %v1477
      %1531 = vst.msk [vmem:[#allocation3 + $0x11f] sm:$0x2] %vm290, %v1479
      %1532 = vst.msk [vmem:[#allocation3 + $0x137] sm:$0x2] %vm290, %v1481
      %1533 = vst.msk [vmem:[#allocation3 + $0x14f] sm:$0x2] %vm290, %v1483
      %1534 = vst.msk [vmem:[#allocation3 + $0x167] sm:$0x2] %vm290, %v1485
      %1535 = vst.msk [vmem:[#allocation3 + $0xb] sm:$0x40] %vm307, %v1456
      %1536 = vst.msk [vmem:[#allocation3 + $0x23] sm:$0x40] %vm307, %v1458
      %1537 = vst.msk [vmem:[#allocation3 + $0x3b] sm:$0x40] %vm307, %v1460
      %1538 = vst.msk [vmem:[#allocation3 + $0x53] sm:$0x40] %vm307, %v1462
      %1539 = vst.msk [vmem:[#allocation3 + $0x6b] sm:$0x40] %vm307, %v1464
      %1540 = vst.msk [vmem:[#allocation3 + $0x83] sm:$0x40] %vm307, %v1466
      %1541 = vst.msk [vmem:[#allocation3 + $0x9b] sm:$0x40] %vm307, %v1468
      %1542 = vst.msk [vmem:[#allocation3 + $0xb3] sm:$0x40] %vm307, %v1470
      %1543 = vst.msk [vmem:[#allocation3 + $0xcb] sm:$0x40] %vm307, %v1472
      %1544 = vst.msk [vmem:[#allocation3 + $0xe3] sm:$0x40] %vm307, %v1474
      %1545 = vst.msk [vmem:[#allocation3 + $0xfb] sm:$0x40] %vm307, %v1476
      %1546 = vst.msk [vmem:[#allocation3 + $0x113] sm:$0x40] %vm307, %v1478
      %1547 = vst.msk [vmem:[#allocation3 + $0x12b] sm:$0x40] %vm307, %v1480
      %1548 = vst.msk [vmem:[#allocation3 + $0x143] sm:$0x40] %vm307, %v1482
      %1549 = vst.msk [vmem:[#allocation3 + $0x15b] sm:$0x40] %vm307, %v1484
      %1550 = vst.msk [vmem:[#allocation3 + $0x173] sm:$0x40] %vm307, %v1486
      loop: start=0, step=1, limit=16
      $region48: #{resblock2_forward.1} parent=39 // loop_pre_header
        _
      $region49: #{resblock2_forward.1} parent=39 // loop_header
        %s1552 = sphi 0, %s1556
        %p1553 = scmp.ge.s32.totalorder %s1552, 16
      $region50: #{resblock2_forward.1} parent=39 // loop_header_branch
        %1555 = sbr.rel (%p1553) target = $region54
      $region51: #{resblock2_forward.1} parent=39 // loop_body
        %v1558 = vlaneseq
        %v1559 = vshrl.u32 %v1558, 7
        %v1560 = vsub.s32 0, %v1559
        %v1561 = vrot.slane %v343, %v1560
        %v1563 = vadd.f32 %v1561, 0.0
        %s1564 = sadd.s32 %s1552, 4294967295
        %p1565 = scmp.lt.s32.totalorder %s1564, 0
        %s1566 = ssub.s32 1, %s1552
        %s1567 = scalar_select %p1565, %s1566, %s1564
        %p1568 = scmp.gt.s32.totalorder %s1567, 15
        %s1569 = ssub.s32 30, %s1567
        %s1570 = scalar_select %p1568, %s1569, %s1567
        %s1571 = smul.u32 %s1570, 24
        %s1572 = scalar_lea.vmem [#allocation3], %s1571
        %v1573 = vld [vmem:[%s1572] sm:$0xff]
        %v1574 = vld [vmem:[%s1572 + $0x8] sm:$0xff]
        %v1576 = vsel %vm257, %v1573, 0
        %v1579 = vsel %vm257, %v1574, 0
        %vm1581 = vcmask 1043456
        %v1583 = vsel %vm1581, %v333, 0
        %1585 = vmatprep.subr.mxu0 0.0
        %1586 = vmatpush1.msra.mxu0 %v1583
        %1587 = vmatprep.subr.mxu0 0.0
        %1588 = vmatpush1.msra.mxu0 0.0
        %1589 = vmatprep.subr.mxu0 0.0
        %1590 = vmatpush1.msra.mxu0 0.0
        %1591 = vmatprep.subr.mxu0 0.0
        %1592 = vmatpush1.msra.mxu0 0.0
        %1593 = vmatprep.subr.mxu0 0.0
        %1594 = vmatpush1.msra.mxu0 0.0
        %1595 = vmatprep.subr.mxu0 0.0
        %1596 = vmatpush1.msra.mxu0 0.0
        %1597 = vmatprep.subr.mxu0 0.0
        %1598 = vmatpush1.msra.mxu0 0.0
        %1599 = vmatprep.subr.mxu0 0.0
        %1600 = vmatpush1.msra.mxu0 0.0
        %1601 = vmatprep.subr.mxu0 0.0
        %1602 = vmatpush1.msra.mxu0 0.0
        %1603 = vmatprep.subr.mxu0 0.0
        %1604 = vmatpush1.msra.mxu0 0.0
        %1605 = vmatprep.subr.mxu0 0.0
        %1606 = vmatpush1.msra.mxu0 0.0
        %1607 = vmatprep.subr.mxu0 0.0
        %1608 = vmatpush1.msra.mxu0 0.0
        %1609 = vmatprep.subr.mxu0 0.0
        %1610 = vmatpush1.msra.mxu0 0.0
        %1611 = vmatprep.subr.mxu0 0.0
        %1612 = vmatpush1.msra.mxu0 0.0
        %1613 = vmatprep.subr.mxu0 0.0
        %1614 = vmatpush1.msra.mxu0 0.0
        %1615 = vmatprep.subr.mxu0 0.0
        %1616 = vmatpush1.msra.mxu0 0.0
        %1617 = vmatprep.subr.mxu0 0.0
        %1618 = vmatpush1.msra.mxu0 0.0
        %1619 = vmatprep.subr.mxu0 0.0
        %1620 = vmatpush1.msra.mxu0 0.0
        %1621 = vmatprep.subr.mxu0 0.0
        %1622 = vmatpush1.msra.mxu0 0.0
        %1623 = vmatprep.subr.mxu0 0.0
        %1624 = vmatpush1.msra.mxu0 0.0
        %1625 = vmatprep.subr.mxu0 0.0
        %1626 = vmatpush1.msra.mxu0 0.0
        %1627 = vmatprep.subr.mxu0 0.0
        %1628 = vmatpush1.msra.mxu0 0.0
        %1629 = vmatprep.subr.mxu0 0.0
        %1630 = vmatpush1.msra.mxu0 0.0
        %1631 = vmatprep.subr.mxu0 0.0
        %1632 = vmatpush1.msra.mxu0 0.0
        %1633 = vmatprep.subr.mxu0 0.0
        %1634 = vmatpush1.msra.mxu0 0.0
        %1635 = vmatprep.subr.mxu0 0.0
        %1636 = vmatpush1.msra.mxu0 0.0
        %1637 = vmatprep.subr.mxu0 0.0
        %1638 = vmatpush1.msra.mxu0 0.0
        %1639 = vmatprep.subr.mxu0 0.0
        %1640 = vmatpush1.msra.mxu0 0.0
        %1641 = vmatprep.subr.mxu0 0.0
        %1642 = vmatpush1.msra.mxu0 0.0
        %1643 = vmatprep.subr.mxu0 0.0
        %1644 = vmatpush1.msra.mxu0 0.0
        %1645 = vmatprep.subr.mxu0 0.0
        %1646 = vmatpush1.msra.mxu0 0.0
        %1647 = vmatprep.subr.mxu0 0.0
        %1648 = vmatpush1.msra.mxu0 0.0
        %1649 = vmatprep.mubr.f32.mxu0 0.0
        %1650 = vmatmul.mubr.f32.gmra.mrb[0].mxu0 %v1576
        %v1651 = vpop.f32.mrb[0].mxu0
        %v1652 = vadd.f32 0.0, %v1651
        %v1653 = vpop.f32.mrb[0].mxu0
        %1654 = vmatprep.mubr.f32.mxu0 0.0
        %1655 = vmatmul.mubr.f32.gmra.mrb[0].mxu0 %v1579
        %v1656 = vpop.f32.mrb[0].mxu0
        %v1657 = vadd.f32 0.0, %v1656
        %v1658 = vpop.f32.mrb[0].mxu0
        %1659 = vdwg.mxu0
        %v1660 = vadd.f32 %v1563, %v1652
        %v1661 = vadd.f32 %v1563, %v1657
        %v1662 = vld [vmem:[%s1572 + $0x1] sm:$0xff]
        %v1663 = vld [vmem:[%s1572 + $0x9] sm:$0xff]
        %v1665 = vsel %vm257, %v1662, 0
        %v1668 = vsel %vm257, %v1663, 0
        %v1671 = vsel %vm1581, %v334, 0
        %1673 = vmatprep.subr.mxu0 0.0
        %1674 = vmatpush1.msra.mxu0 %v1671
        %1675 = vmatprep.subr.mxu0 0.0
        %1676 = vmatpush1.msra.mxu0 0.0
        %1677 = vmatprep.subr.mxu0 0.0
        %1678 = vmatpush1.msra.mxu0 0.0
        %1679 = vmatprep.subr.mxu0 0.0
        %1680 = vmatpush1.msra.mxu0 0.0
        %1681 = vmatprep.subr.mxu0 0.0
        %1682 = vmatpush1.msra.mxu0 0.0
        %1683 = vmatprep.subr.mxu0 0.0
        %1684 = vmatpush1.msra.mxu0 0.0
        %1685 = vmatprep.subr.mxu0 0.0
        %1686 = vmatpush1.msra.mxu0 0.0
        %1687 = vmatprep.subr.mxu0 0.0
        %1688 = vmatpush1.msra.mxu0 0.0
        %1689 = vmatprep.subr.mxu0 0.0
        %1690 = vmatpush1.msra.mxu0 0.0
        %1691 = vmatprep.subr.mxu0 0.0
        %1692 = vmatpush1.msra.mxu0 0.0
        %1693 = vmatprep.subr.mxu0 0.0
        %1694 = vmatpush1.msra.mxu0 0.0
        %1695 = vmatprep.subr.mxu0 0.0
        %1696 = vmatpush1.msra.mxu0 0.0
        %1697 = vmatprep.subr.mxu0 0.0
        %1698 = vmatpush1.msra.mxu0 0.0
        %1699 = vmatprep.subr.mxu0 0.0
        %1700 = vmatpush1.msra.mxu0 0.0
        %1701 = vmatprep.subr.mxu0 0.0
        %1702 = vmatpush1.msra.mxu0 0.0
        %1703 = vmatprep.subr.mxu0 0.0
        %1704 = vmatpush1.msra.mxu0 0.0
        %1705 = vmatprep.subr.mxu0 0.0
        %1706 = vmatpush1.msra.mxu0 0.0
        %1707 = vmatprep.subr.mxu0 0.0
        %1708 = vmatpush1.msra.mxu0 0.0
        %1709 = vmatprep.subr.mxu0 0.0
        %1710 = vmatpush1.msra.mxu0 0.0
        %1711 = vmatprep.subr.mxu0 0.0
        %1712 = vmatpush1.msra.mxu0 0.0
        %1713 = vmatprep.subr.mxu0 0.0
        %1714 = vmatpush1.msra.mxu0 0.0
        %1715 = vmatprep.subr.mxu0 0.0
        %1716 = vmatpush1.msra.mxu0 0.0
        %1717 = vmatprep.subr.mxu0 0.0
        %1718 = vmatpush1.msra.mxu0 0.0
        %1719 = vmatprep.subr.mxu0 0.0
        %1720 = vmatpush1.msra.mxu0 0.0
        %1721 = vmatprep.subr.mxu0 0.0
        %1722 = vmatpush1.msra.mxu0 0.0
        %1723 = vmatprep.subr.mxu0 0.0
        %1724 = vmatpush1.msra.mxu0 0.0
        %1725 = vmatprep.subr.mxu0 0.0
        %1726 = vmatpush1.msra.mxu0 0.0
        %1727 = vmatprep.subr.mxu0 0.0
        %1728 = vmatpush1.msra.mxu0 0.0
        %1729 = vmatprep.subr.mxu0 0.0
        %1730 = vmatpush1.msra.mxu0 0.0
        %1731 = vmatprep.subr.mxu0 0.0
        %1732 = vmatpush1.msra.mxu0 0.0
        %1733 = vmatprep.subr.mxu0 0.0
        %1734 = vmatpush1.msra.mxu0 0.0
        %1735 = vmatprep.subr.mxu0 0.0
        %1736 = vmatpush1.msra.mxu0 0.0
        %1737 = vmatprep.mubr.f32.mxu0 0.0
        %1738 = vmatmul.mubr.f32.gmra.mrb[0].mxu0 %v1665
        %v1739 = vpop.f32.mrb[0].mxu0
        %v1740 = vadd.f32 0.0, %v1739
        %v1741 = vpop.f32.mrb[0].mxu0
        %1742 = vmatprep.mubr.f32.mxu0 0.0
        %1743 = vmatmul.mubr.f32.gmra.mrb[0].mxu0 %v1668
        %v1744 = vpop.f32.mrb[0].mxu0
        %v1745 = vadd.f32 0.0, %v1744
        %v1746 = vpop.f32.mrb[0].mxu0
        %1747 = vdwg.mxu0
        %v1748 = vadd.f32 %v1660, %v1740
        %v1749 = vadd.f32 %v1661, %v1745
        %v1750 = vld [vmem:[%s1572 + $0x2] sm:$0xff]
        %v1751 = vld [vmem:[%s1572 + $0xa] sm:$0xff]
        %v1753 = vsel %vm257, %v1750, 0
        %v1756 = vsel %vm257, %v1751, 0
        %v1759 = vsel %vm1581, %v335, 0
        %1761 = vmatprep.subr.mxu0 0.0
        %1762 = vmatpush1.msra.mxu0 %v1759
        %1763 = vmatprep.subr.mxu0 0.0
        %1764 = vmatpush1.msra.mxu0 0.0
        %1765 = vmatprep.subr.mxu0 0.0
        %1766 = vmatpush1.msra.mxu0 0.0
        %1767 = vmatprep.subr.mxu0 0.0
        %1768 = vmatpush1.msra.mxu0 0.0
        %1769 = vmatprep.subr.mxu0 0.0
        %1770 = vmatpush1.msra.mxu0 0.0
        %1771 = vmatprep.subr.mxu0 0.0
        %1772 = vmatpush1.msra.mxu0 0.0
        %1773 = vmatprep.subr.mxu0 0.0
        %1774 = vmatpush1.msra.mxu0 0.0
        %1775 = vmatprep.subr.mxu0 0.0
        %1776 = vmatpush1.msra.mxu0 0.0
        %1777 = vmatprep.subr.mxu0 0.0
        %1778 = vmatpush1.msra.mxu0 0.0
        %1779 = vmatprep.subr.mxu0 0.0
        %1780 = vmatpush1.msra.mxu0 0.0
        %1781 = vmatprep.subr.mxu0 0.0
        %1782 = vmatpush1.msra.mxu0 0.0
        %1783 = vmatprep.subr.mxu0 0.0
        %1784 = vmatpush1.msra.mxu0 0.0
        %1785 = vmatprep.subr.mxu0 0.0
        %1786 = vmatpush1.msra.mxu0 0.0
        %1787 = vmatprep.subr.mxu0 0.0
        %1788 = vmatpush1.msra.mxu0 0.0
        %1789 = vmatprep.subr.mxu0 0.0
        %1790 = vmatpush1.msra.mxu0 0.0
        %1791 = vmatprep.subr.mxu0 0.0
        %1792 = vmatpush1.msra.mxu0 0.0
        %1793 = vmatprep.subr.mxu0 0.0
        %1794 = vmatpush1.msra.mxu0 0.0
        %1795 = vmatprep.subr.mxu0 0.0
        %1796 = vmatpush1.msra.mxu0 0.0
        %1797 = vmatprep.subr.mxu0 0.0
        %1798 = vmatpush1.msra.mxu0 0.0
        %1799 = vmatprep.subr.mxu0 0.0
        %1800 = vmatpush1.msra.mxu0 0.0
        %1801 = vmatprep.subr.mxu0 0.0
        %1802 = vmatpush1.msra.mxu0 0.0
        %1803 = vmatprep.subr.mxu0 0.0
        %1804 = vmatpush1.msra.mxu0 0.0
        %1805 = vmatprep.subr.mxu0 0.0
        %1806 = vmatpush1.msra.mxu0 0.0
        %1807 = vmatprep.subr.mxu0 0.0
        %1808 = vmatpush1.msra.mxu0 0.0
        %1809 = vmatprep.subr.mxu0 0.0
        %1810 = vmatpush1.msra.mxu0 0.0
        %1811 = vmatprep.subr.mxu0 0.0
        %1812 = vmatpush1.msra.mxu0 0.0
        %1813 = vmatprep.subr.mxu0 0.0
        %1814 = vmatpush1.msra.mxu0 0.0
        %1815 = vmatprep.subr.mxu0 0.0
        %1816 = vmatpush1.msra.mxu0 0.0
        %1817 = vmatprep.subr.mxu0 0.0
        %1818 = vmatpush1.msra.mxu0 0.0
        %1819 = vmatprep.subr.mxu0 0.0
        %1820 = vmatpush1.msra.mxu0 0.0
        %1821 = vmatprep.subr.mxu0 0.0
        %1822 = vmatpush1.msra.mxu0 0.0
        %1823 = vmatprep.subr.mxu0 0.0
        %1824 = vmatpush1.msra.mxu0 0.0
        %1825 = vmatprep.mubr.f32.mxu0 0.0
        %1826 = vmatmul.mubr.f32.gmra.mrb[0].mxu0 %v1753
        %v1827 = vpop.f32.mrb[0].mxu0
        %v1828 = vadd.f32 0.0, %v1827
        %v1829 = vpop.f32.mrb[0].mxu0
        %1830 = vmatprep.mubr.f32.mxu0 0.0
        %1831 = vmatmul.mubr.f32.gmra.mrb[0].mxu0 %v1756
        %v1832 = vpop.f32.mrb[0].mxu0
        %v1833 = vadd.f32 0.0, %v1832
        %v1834 = vpop.f32.mrb[0].mxu0
        %1835 = vdwg.mxu0
        %v1836 = vadd.f32 %v1748, %v1828
        %v1837 = vadd.f32 %v1749, %v1833
        %p1838 = scmp.lt.s32.totalorder %s1552, 0
        %s1839 = ssub.s32 0, %s1552
        %s1840 = scalar_select %p1838, %s1839, %s1552
        %p1841 = scmp.gt.s32.totalorder %s1840, 15
        %s1842 = ssub.s32 30, %s1840
        %s1843 = scalar_select %p1841, %s1842, %s1840
        %s1844 = smul.u32 %s1843, 24
        %s1845 = scalar_lea.vmem [#allocation3], %s1844
        %v1846 = vld [vmem:[%s1845] sm:$0xff]
        %v1847 = vld [vmem:[%s1845 + $0x8] sm:$0xff]
        %v1849 = vsel %vm257, %v1846, 0
        %v1852 = vsel %vm257, %v1847, 0
        %v1855 = vsel %vm1581, %v336, 0
        %1857 = vmatprep.subr.mxu0 0.0
        %1858 = vmatpush1.msra.mxu0 %v1855
        %1859 = vmatprep.subr.mxu0 0.0
        %1860 = vmatpush1.msra.mxu0 0.0
        %1861 = vmatprep.subr.mxu0 0.0
        %1862 = vmatpush1.msra.mxu0 0.0
        %1863 = vmatprep.subr.mxu0 0.0
        %1864 = vmatpush1.msra.mxu0 0.0
        %1865 = vmatprep.subr.mxu0 0.0
        %1866 = vmatpush1.msra.mxu0 0.0
        %1867 = vmatprep.subr.mxu0 0.0
        %1868 = vmatpush1.msra.mxu0 0.0
        %1869 = vmatprep.subr.mxu0 0.0
        %1870 = vmatpush1.msra.mxu0 0.0
        %1871 = vmatprep.subr.mxu0 0.0
        %1872 = vmatpush1.msra.mxu0 0.0
        %1873 = vmatprep.subr.mxu0 0.0
        %1874 = vmatpush1.msra.mxu0 0.0
        %1875 = vmatprep.subr.mxu0 0.0
        %1876 = vmatpush1.msra.mxu0 0.0
        %1877 = vmatprep.subr.mxu0 0.0
        %1878 = vmatpush1.msra.mxu0 0.0
        %1879 = vmatprep.subr.mxu0 0.0
        %1880 = vmatpush1.msra.mxu0 0.0
        %1881 = vmatprep.subr.mxu0 0.0
        %1882 = vmatpush1.msra.mxu0 0.0
        %1883 = vmatprep.subr.mxu0 0.0
        %1884 = vmatpush1.msra.mxu0 0.0
        %1885 = vmatprep.subr.mxu0 0.0
        %1886 = vmatpush1.msra.mxu0 0.0
        %1887 = vmatprep.subr.mxu0 0.0
        %1888 = vmatpush1.msra.mxu0 0.0
        %1889 = vmatprep.subr.mxu0 0.0
        %1890 = vmatpush1.msra.mxu0 0.0
        %1891 = vmatprep.subr.mxu0 0.0
        %1892 = vmatpush1.msra.mxu0 0.0
        %1893 = vmatprep.subr.mxu0 0.0
        %1894 = vmatpush1.msra.mxu0 0.0
        %1895 = vmatprep.subr.mxu0 0.0
        %1896 = vmatpush1.msra.mxu0 0.0
        %1897 = vmatprep.subr.mxu0 0.0
        %1898 = vmatpush1.msra.mxu0 0.0
        %1899 = vmatprep.subr.mxu0 0.0
        %1900 = vmatpush1.msra.mxu0 0.0
        %1901 = vmatprep.subr.mxu0 0.0
        %1902 = vmatpush1.msra.mxu0 0.0
        %1903 = vmatprep.subr.mxu0 0.0
        %1904 = vmatpush1.msra.mxu0 0.0
        %1905 = vmatprep.subr.mxu0 0.0
        %1906 = vmatpush1.msra.mxu0 0.0
        %1907 = vmatprep.subr.mxu0 0.0
        %1908 = vmatpush1.msra.mxu0 0.0
        %1909 = vmatprep.subr.mxu0 0.0
        %1910 = vmatpush1.msra.mxu0 0.0
        %1911 = vmatprep.subr.mxu0 0.0
        %1912 = vmatpush1.msra.mxu0 0.0
        %1913 = vmatprep.subr.mxu0 0.0
        %1914 = vmatpush1.msra.mxu0 0.0
        %1915 = vmatprep.subr.mxu0 0.0
        %1916 = vmatpush1.msra.mxu0 0.0
        %1917 = vmatprep.subr.mxu0 0.0
        %1918 = vmatpush1.msra.mxu0 0.0
        %1919 = vmatprep.subr.mxu0 0.0
        %1920 = vmatpush1.msra.mxu0 0.0
        %1921 = vmatprep.mubr.f32.mxu0 0.0
        %1922 = vmatmul.mubr.f32.gmra.mrb[0].mxu0 %v1849
        %v1923 = vpop.f32.mrb[0].mxu0
        %v1924 = vadd.f32 0.0, %v1923
        %v1925 = vpop.f32.mrb[0].mxu0
        %1926 = vmatprep.mubr.f32.mxu0 0.0
        %1927 = vmatmul.mubr.f32.gmra.mrb[0].mxu0 %v1852
        %v1928 = vpop.f32.mrb[0].mxu0
        %v1929 = vadd.f32 0.0, %v1928
        %v1930 = vpop.f32.mrb[0].mxu0
        %1931 = vdwg.mxu0
        %v1932 = vadd.f32 %v1836, %v1924
        %v1933 = vadd.f32 %v1837, %v1929
        %v1934 = vld [vmem:[%s1845 + $0x1] sm:$0xff]
        %v1935 = vld [vmem:[%s1845 + $0x9] sm:$0xff]
        %v1937 = vsel %vm257, %v1934, 0
        %v1940 = vsel %vm257, %v1935, 0
        %v1943 = vsel %vm1581, %v337, 0
        %1945 = vmatprep.subr.mxu0 0.0
        %1946 = vmatpush1.msra.mxu0 %v1943
        %1947 = vmatprep.subr.mxu0 0.0
        %1948 = vmatpush1.msra.mxu0 0.0
        %1949 = vmatprep.subr.mxu0 0.0
        %1950 = vmatpush1.msra.mxu0 0.0
        %1951 = vmatprep.subr.mxu0 0.0
        %1952 = vmatpush1.msra.mxu0 0.0
        %1953 = vmatprep.subr.mxu0 0.0
        %1954 = vmatpush1.msra.mxu0 0.0
        %1955 = vmatprep.subr.mxu0 0.0
        %1956 = vmatpush1.msra.mxu0 0.0
        %1957 = vmatprep.subr.mxu0 0.0
        %1958 = vmatpush1.msra.mxu0 0.0
        %1959 = vmatprep.subr.mxu0 0.0
        %1960 = vmatpush1.msra.mxu0 0.0
        %1961 = vmatprep.subr.mxu0 0.0
        %1962 = vmatpush1.msra.mxu0 0.0
        %1963 = vmatprep.subr.mxu0 0.0
        %1964 = vmatpush1.msra.mxu0 0.0
        %1965 = vmatprep.subr.mxu0 0.0
        %1966 = vmatpush1.msra.mxu0 0.0
        %1967 = vmatprep.subr.mxu0 0.0
        %1968 = vmatpush1.msra.mxu0 0.0
        %1969 = vmatprep.subr.mxu0 0.0
        %1970 = vmatpush1.msra.mxu0 0.0
        %1971 = vmatprep.subr.mxu0 0.0
        %1972 = vmatpush1.msra.mxu0 0.0
        %1973 = vmatprep.subr.mxu0 0.0
        %1974 = vmatpush1.msra.mxu0 0.0
        %1975 = vmatprep.subr.mxu0 0.0
        %1976 = vmatpush1.msra.mxu0 0.0
        %1977 = vmatprep.subr.mxu0 0.0
        %1978 = vmatpush1.msra.mxu0 0.0
        %1979 = vmatprep.subr.mxu0 0.0
        %1980 = vmatpush1.msra.mxu0 0.0
        %1981 = vmatprep.subr.mxu0 0.0
        %1982 = vmatpush1.msra.mxu0 0.0
        %1983 = vmatprep.subr.mxu0 0.0
        %1984 = vmatpush1.msra.mxu0 0.0
        %1985 = vmatprep.subr.mxu0 0.0
        %1986 = vmatpush1.msra.mxu0 0.0
        %1987 = vmatprep.subr.mxu0 0.0
        %1988 = vmatpush1.msra.mxu0 0.0
        %1989 = vmatprep.subr.mxu0 0.0
        %1990 = vmatpush1.msra.mxu0 0.0
        %1991 = vmatprep.subr.mxu0 0.0
        %1992 = vmatpush1.msra.mxu0 0.0
        %1993 = vmatprep.subr.mxu0 0.0
        %1994 = vmatpush1.msra.mxu0 0.0
        %1995 = vmatprep.subr.mxu0 0.0
        %1996 = vmatpush1.msra.mxu0 0.0
        %1997 = vmatprep.subr.mxu0 0.0
        %1998 = vmatpush1.msra.mxu0 0.0
        %1999 = vmatprep.subr.mxu0 0.0
        %2000 = vmatpush1.msra.mxu0 0.0
        %2001 = vmatprep.subr.mxu0 0.0
        %2002 = vmatpush1.msra.mxu0 0.0
        %2003 = vmatprep.subr.mxu0 0.0
        %2004 = vmatpush1.msra.mxu0 0.0
        %2005 = vmatprep.subr.mxu0 0.0
        %2006 = vmatpush1.msra.mxu0 0.0
        %2007 = vmatprep.subr.mxu0 0.0
        %2008 = vmatpush1.msra.mxu0 0.0
        %2009 = vmatprep.mubr.f32.mxu0 0.0
        %2010 = vmatmul.mubr.f32.gmra.mrb[0].mxu0 %v1937
        %v2011 = vpop.f32.mrb[0].mxu0
        %v2012 = vadd.f32 0.0, %v2011
        %v2013 = vpop.f32.mrb[0].mxu0
        %2014 = vmatprep.mubr.f32.mxu0 0.0
        %2015 = vmatmul.mubr.f32.gmra.mrb[0].mxu0 %v1940
        %v2016 = vpop.f32.mrb[0].mxu0
        %v2017 = vadd.f32 0.0, %v2016
        %v2018 = vpop.f32.mrb[0].mxu0
        %2019 = vdwg.mxu0
        %v2020 = vadd.f32 %v1932, %v2012
        %v2021 = vadd.f32 %v1933, %v2017
        %v2022 = vld [vmem:[%s1845 + $0x2] sm:$0xff]
        %v2023 = vld [vmem:[%s1845 + $0xa] sm:$0xff]
        %v2025 = vsel %vm257, %v2022, 0
        %v2028 = vsel %vm257, %v2023, 0
        %v2031 = vsel %vm1581, %v338, 0
        %2033 = vmatprep.subr.mxu0 0.0
        %2034 = vmatpush1.msra.mxu0 %v2031
        %2035 = vmatprep.subr.mxu0 0.0
        %2036 = vmatpush1.msra.mxu0 0.0
        %2037 = vmatprep.subr.mxu0 0.0
        %2038 = vmatpush1.msra.mxu0 0.0
        %2039 = vmatprep.subr.mxu0 0.0
        %2040 = vmatpush1.msra.mxu0 0.0
        %2041 = vmatprep.subr.mxu0 0.0
        %2042 = vmatpush1.msra.mxu0 0.0
        %2043 = vmatprep.subr.mxu0 0.0
        %2044 = vmatpush1.msra.mxu0 0.0
        %2045 = vmatprep.subr.mxu0 0.0
        %2046 = vmatpush1.msra.mxu0 0.0
        %2047 = vmatprep.subr.mxu0 0.0
        %2048 = vmatpush1.msra.mxu0 0.0
        %2049 = vmatprep.subr.mxu0 0.0
        %2050 = vmatpush1.msra.mxu0 0.0
        %2051 = vmatprep.subr.mxu0 0.0
        %2052 = vmatpush1.msra.mxu0 0.0
        %2053 = vmatprep.subr.mxu0 0.0
        %2054 = vmatpush1.msra.mxu0 0.0
        %2055 = vmatprep.subr.mxu0 0.0
        %2056 = vmatpush1.msra.mxu0 0.0
        %2057 = vmatprep.subr.mxu0 0.0
        %2058 = vmatpush1.msra.mxu0 0.0
        %2059 = vmatprep.subr.mxu0 0.0
        %2060 = vmatpush1.msra.mxu0 0.0
        %2061 = vmatprep.subr.mxu0 0.0
        %2062 = vmatpush1.msra.mxu0 0.0
        %2063 = vmatprep.subr.mxu0 0.0
        %2064 = vmatpush1.msra.mxu0 0.0
        %2065 = vmatprep.subr.mxu0 0.0
        %2066 = vmatpush1.msra.mxu0 0.0
        %2067 = vmatprep.subr.mxu0 0.0
        %2068 = vmatpush1.msra.mxu0 0.0
        %2069 = vmatprep.subr.mxu0 0.0
        %2070 = vmatpush1.msra.mxu0 0.0
        %2071 = vmatprep.subr.mxu0 0.0
        %2072 = vmatpush1.msra.mxu0 0.0
        %2073 = vmatprep.subr.mxu0 0.0
        %2074 = vmatpush1.msra.mxu0 0.0
        %2075 = vmatprep.subr.mxu0 0.0
        %2076 = vmatpush1.msra.mxu0 0.0
        %2077 = vmatprep.subr.mxu0 0.0
        %2078 = vmatpush1.msra.mxu0 0.0
        %2079 = vmatprep.subr.mxu0 0.0
        %2080 = vmatpush1.msra.mxu0 0.0
        %2081 = vmatprep.subr.mxu0 0.0
        %2082 = vmatpush1.msra.mxu0 0.0
        %2083 = vmatprep.subr.mxu0 0.0
        %2084 = vmatpush1.msra.mxu0 0.0
        %2085 = vmatprep.subr.mxu0 0.0
        %2086 = vmatpush1.msra.mxu0 0.0
        %2087 = vmatprep.subr.mxu0 0.0
        %2088 = vmatpush1.msra.mxu0 0.0
        %2089 = vmatprep.subr.mxu0 0.0
        %2090 = vmatpush1.msra.mxu0 0.0
        %2091 = vmatprep.subr.mxu0 0.0
        %2092 = vmatpush1.msra.mxu0 0.0
        %2093 = vmatprep.subr.mxu0 0.0
        %2094 = vmatpush1.msra.mxu0 0.0
        %2095 = vmatprep.subr.mxu0 0.0
        %2096 = vmatpush1.msra.mxu0 0.0
        %2097 = vmatprep.mubr.f32.mxu0 0.0
        %2098 = vmatmul.mubr.f32.gmra.mrb[0].mxu0 %v2025
        %v2099 = vpop.f32.mrb[0].mxu0
        %v2100 = vadd.f32 0.0, %v2099
        %v2101 = vpop.f32.mrb[0].mxu0
        %2102 = vmatprep.mubr.f32.mxu0 0.0
        %2103 = vmatmul.mubr.f32.gmra.mrb[0].mxu0 %v2028
        %v2104 = vpop.f32.mrb[0].mxu0
        %v2105 = vadd.f32 0.0, %v2104
        %v2106 = vpop.f32.mrb[0].mxu0
        %2107 = vdwg.mxu0
        %v2108 = vadd.f32 %v2020, %v2100
        %v2109 = vadd.f32 %v2021, %v2105
        %s2110 = sadd.s32 %s1552, 1
        %p2111 = scmp.lt.s32.totalorder %s2110, 0
        %s2112 = ssub.s32 4294967295, %s1552
        %s2113 = scalar_select %p2111, %s2112, %s2110
        %p2114 = scmp.gt.s32.totalorder %s2113, 15
        %s2115 = ssub.s32 30, %s2113
        %s2116 = scalar_select %p2114, %s2115, %s2113
        %s2117 = smul.u32 %s2116, 24
        %s2118 = scalar_lea.vmem [#allocation3], %s2117
        %v2119 = vld [vmem:[%s2118] sm:$0xff]
        %v2120 = vld [vmem:[%s2118 + $0x8] sm:$0xff]
        %v2122 = vsel %vm257, %v2119, 0
        %v2125 = vsel %vm257, %v2120, 0
        %v2128 = vsel %vm1581, %v339, 0
        %2130 = vmatprep.subr.mxu0 0.0
        %2131 = vmatpush1.msra.mxu0 %v2128
        %2132 = vmatprep.subr.mxu0 0.0
        %2133 = vmatpush1.msra.mxu0 0.0
        %2134 = vmatprep.subr.mxu0 0.0
        %2135 = vmatpush1.msra.mxu0 0.0
        %2136 = vmatprep.subr.mxu0 0.0
        %2137 = vmatpush1.msra.mxu0 0.0
        %2138 = vmatprep.subr.mxu0 0.0
        %2139 = vmatpush1.msra.mxu0 0.0
        %2140 = vmatprep.subr.mxu0 0.0
        %2141 = vmatpush1.msra.mxu0 0.0
        %2142 = vmatprep.subr.mxu0 0.0
        %2143 = vmatpush1.msra.mxu0 0.0
        %2144 = vmatprep.subr.mxu0 0.0
        %2145 = vmatpush1.msra.mxu0 0.0
        %2146 = vmatprep.subr.mxu0 0.0
        %2147 = vmatpush1.msra.mxu0 0.0
        %2148 = vmatprep.subr.mxu0 0.0
        %2149 = vmatpush1.msra.mxu0 0.0
        %2150 = vmatprep.subr.mxu0 0.0
        %2151 = vmatpush1.msra.mxu0 0.0
        %2152 = vmatprep.subr.mxu0 0.0
        %2153 = vmatpush1.msra.mxu0 0.0
        %2154 = vmatprep.subr.mxu0 0.0
        %2155 = vmatpush1.msra.mxu0 0.0
        %2156 = vmatprep.subr.mxu0 0.0
        %2157 = vmatpush1.msra.mxu0 0.0
        %2158 = vmatprep.subr.mxu0 0.0
        %2159 = vmatpush1.msra.mxu0 0.0
        %2160 = vmatprep.subr.mxu0 0.0
        %2161 = vmatpush1.msra.mxu0 0.0
        %2162 = vmatprep.subr.mxu0 0.0
        %2163 = vmatpush1.msra.mxu0 0.0
        %2164 = vmatprep.subr.mxu0 0.0
        %2165 = vmatpush1.msra.mxu0 0.0
        %2166 = vmatprep.subr.mxu0 0.0
        %2167 = vmatpush1.msra.mxu0 0.0
        %2168 = vmatprep.subr.mxu0 0.0
        %2169 = vmatpush1.msra.mxu0 0.0
        %2170 = vmatprep.subr.mxu0 0.0
        %2171 = vmatpush1.msra.mxu0 0.0
        %2172 = vmatprep.subr.mxu0 0.0
        %2173 = vmatpush1.msra.mxu0 0.0
        %2174 = vmatprep.subr.mxu0 0.0
        %2175 = vmatpush1.msra.mxu0 0.0
        %2176 = vmatprep.subr.mxu0 0.0
        %2177 = vmatpush1.msra.mxu0 0.0
        %2178 = vmatprep.subr.mxu0 0.0
        %2179 = vmatpush1.msra.mxu0 0.0
        %2180 = vmatprep.subr.mxu0 0.0
        %2181 = vmatpush1.msra.mxu0 0.0
        %2182 = vmatprep.subr.mxu0 0.0
        %2183 = vmatpush1.msra.mxu0 0.0
        %2184 = vmatprep.subr.mxu0 0.0
        %2185 = vmatpush1.msra.mxu0 0.0
        %2186 = vmatprep.subr.mxu0 0.0
        %2187 = vmatpush1.msra.mxu0 0.0
        %2188 = vmatprep.subr.mxu0 0.0
        %2189 = vmatpush1.msra.mxu0 0.0
        %2190 = vmatprep.subr.mxu0 0.0
        %2191 = vmatpush1.msra.mxu0 0.0
        %2192 = vmatprep.subr.mxu0 0.0
        %2193 = vmatpush1.msra.mxu0 0.0
        %2194 = vmatprep.mubr.f32.mxu0 0.0
        %2195 = vmatmul.mubr.f32.gmra.mrb[0].mxu0 %v2122
        %v2196 = vpop.f32.mrb[0].mxu0
        %v2197 = vadd.f32 0.0, %v2196
        %v2198 = vpop.f32.mrb[0].mxu0
        %2199 = vmatprep.mubr.f32.mxu0 0.0
        %2200 = vmatmul.mubr.f32.gmra.mrb[0].mxu0 %v2125
        %v2201 = vpop.f32.mrb[0].mxu0
        %v2202 = vadd.f32 0.0, %v2201
        %v2203 = vpop.f32.mrb[0].mxu0
        %2204 = vdwg.mxu0
        %v2205 = vadd.f32 %v2108, %v2197
        %v2206 = vadd.f32 %v2109, %v2202
        %v2207 = vld [vmem:[%s2118 + $0x1] sm:$0xff]
        %v2208 = vld [vmem:[%s2118 + $0x9] sm:$0xff]
        %v2210 = vsel %vm257, %v2207, 0
        %v2213 = vsel %vm257, %v2208, 0
        %v2216 = vsel %vm1581, %v340, 0
        %2218 = vmatprep.subr.mxu0 0.0
        %2219 = vmatpush1.msra.mxu0 %v2216
        %2220 = vmatprep.subr.mxu0 0.0
        %2221 = vmatpush1.msra.mxu0 0.0
        %2222 = vmatprep.subr.mxu0 0.0
        %2223 = vmatpush1.msra.mxu0 0.0
        %2224 = vmatprep.subr.mxu0 0.0
        %2225 = vmatpush1.msra.mxu0 0.0
        %2226 = vmatprep.subr.mxu0 0.0
        %2227 = vmatpush1.msra.mxu0 0.0
        %2228 = vmatprep.subr.mxu0 0.0
        %2229 = vmatpush1.msra.mxu0 0.0
        %2230 = vmatprep.subr.mxu0 0.0
        %2231 = vmatpush1.msra.mxu0 0.0
        %2232 = vmatprep.subr.mxu0 0.0
        %2233 = vmatpush1.msra.mxu0 0.0
        %2234 = vmatprep.subr.mxu0 0.0
        %2235 = vmatpush1.msra.mxu0 0.0
        %2236 = vmatprep.subr.mxu0 0.0
        %2237 = vmatpush1.msra.mxu0 0.0
        %2238 = vmatprep.subr.mxu0 0.0
        %2239 = vmatpush1.msra.mxu0 0.0
        %2240 = vmatprep.subr.mxu0 0.0
        %2241 = vmatpush1.msra.mxu0 0.0
        %2242 = vmatprep.subr.mxu0 0.0
        %2243 = vmatpush1.msra.mxu0 0.0
        %2244 = vmatprep.subr.mxu0 0.0
        %2245 = vmatpush1.msra.mxu0 0.0
        %2246 = vmatprep.subr.mxu0 0.0
        %2247 = vmatpush1.msra.mxu0 0.0
        %2248 = vmatprep.subr.mxu0 0.0
        %2249 = vmatpush1.msra.mxu0 0.0
        %2250 = vmatprep.subr.mxu0 0.0
        %2251 = vmatpush1.msra.mxu0 0.0
        %2252 = vmatprep.subr.mxu0 0.0
        %2253 = vmatpush1.msra.mxu0 0.0
        %2254 = vmatprep.subr.mxu0 0.0
        %2255 = vmatpush1.msra.mxu0 0.0
        %2256 = vmatprep.subr.mxu0 0.0
        %2257 = vmatpush1.msra.mxu0 0.0
        %2258 = vmatprep.subr.mxu0 0.0
        %2259 = vmatpush1.msra.mxu0 0.0
        %2260 = vmatprep.subr.mxu0 0.0
        %2261 = vmatpush1.msra.mxu0 0.0
        %2262 = vmatprep.subr.mxu0 0.0
        %2263 = vmatpush1.msra.mxu0 0.0
        %2264 = vmatprep.subr.mxu0 0.0
        %2265 = vmatpush1.msra.mxu0 0.0
        %2266 = vmatprep.subr.mxu0 0.0
        %2267 = vmatpush1.msra.mxu0 0.0
        %2268 = vmatprep.subr.mxu0 0.0
        %2269 = vmatpush1.msra.mxu0 0.0
        %2270 = vmatprep.subr.mxu0 0.0
        %2271 = vmatpush1.msra.mxu0 0.0
        %2272 = vmatprep.subr.mxu0 0.0
        %2273 = vmatpush1.msra.mxu0 0.0
        %2274 = vmatprep.subr.mxu0 0.0
        %2275 = vmatpush1.msra.mxu0 0.0
        %2276 = vmatprep.subr.mxu0 0.0
        %2277 = vmatpush1.msra.mxu0 0.0
        %2278 = vmatprep.subr.mxu0 0.0
        %2279 = vmatpush1.msra.mxu0 0.0
        %2280 = vmatprep.subr.mxu0 0.0
        %2281 = vmatpush1.msra.mxu0 0.0
        %2282 = vmatprep.mubr.f32.mxu0 0.0
        %2283 = vmatmul.mubr.f32.gmra.mrb[0].mxu0 %v2210
        %v2284 = vpop.f32.mrb[0].mxu0
        %v2285 = vadd.f32 0.0, %v2284
        %v2286 = vpop.f32.mrb[0].mxu0
        %2287 = vmatprep.mubr.f32.mxu0 0.0
        %2288 = vmatmul.mubr.f32.gmra.mrb[0].mxu0 %v2213
        %v2289 = vpop.f32.mrb[0].mxu0
        %v2290 = vadd.f32 0.0, %v2289
        %v2291 = vpop.f32.mrb[0].mxu0
        %2292 = vdwg.mxu0
        %v2293 = vadd.f32 %v2205, %v2285
        %v2294 = vadd.f32 %v2206, %v2290
        %v2295 = vld [vmem:[%s2118 + $0x2] sm:$0xff]
        %v2296 = vld [vmem:[%s2118 + $0xa] sm:$0xff]
        %v2298 = vsel %vm257, %v2295, 0
        %v2301 = vsel %vm257, %v2296, 0
        %v2304 = vsel %vm1581, %v341, 0
        %2306 = vmatprep.subr.mxu0 0.0
        %2307 = vmatpush1.msra.mxu0 %v2304
        %2308 = vmatprep.subr.mxu0 0.0
        %2309 = vmatpush1.msra.mxu0 0.0
        %2310 = vmatprep.subr.mxu0 0.0
        %2311 = vmatpush1.msra.mxu0 0.0
        %2312 = vmatprep.subr.mxu0 0.0
        %2313 = vmatpush1.msra.mxu0 0.0
        %2314 = vmatprep.subr.mxu0 0.0
        %2315 = vmatpush1.msra.mxu0 0.0
        %2316 = vmatprep.subr.mxu0 0.0
        %2317 = vmatpush1.msra.mxu0 0.0
        %2318 = vmatprep.subr.mxu0 0.0
        %2319 = vmatpush1.msra.mxu0 0.0
        %2320 = vmatprep.subr.mxu0 0.0
        %2321 = vmatpush1.msra.mxu0 0.0
        %2322 = vmatprep.subr.mxu0 0.0
        %2323 = vmatpush1.msra.mxu0 0.0
        %2324 = vmatprep.subr.mxu0 0.0
        %2325 = vmatpush1.msra.mxu0 0.0
        %2326 = vmatprep.subr.mxu0 0.0
        %2327 = vmatpush1.msra.mxu0 0.0
        %2328 = vmatprep.subr.mxu0 0.0
        %2329 = vmatpush1.msra.mxu0 0.0
        %2330 = vmatprep.subr.mxu0 0.0
        %2331 = vmatpush1.msra.mxu0 0.0
        %2332 = vmatprep.subr.mxu0 0.0
        %2333 = vmatpush1.msra.mxu0 0.0
        %2334 = vmatprep.subr.mxu0 0.0
        %2335 = vmatpush1.msra.mxu0 0.0
        %2336 = vmatprep.subr.mxu0 0.0
        %2337 = vmatpush1.msra.mxu0 0.0
        %2338 = vmatprep.subr.mxu0 0.0
        %2339 = vmatpush1.msra.mxu0 0.0
        %2340 = vmatprep.subr.mxu0 0.0
        %2341 = vmatpush1.msra.mxu0 0.0
        %2342 = vmatprep.subr.mxu0 0.0
        %2343 = vmatpush1.msra.mxu0 0.0
        %2344 = vmatprep.subr.mxu0 0.0
        %2345 = vmatpush1.msra.mxu0 0.0
        %2346 = vmatprep.subr.mxu0 0.0
        %2347 = vmatpush1.msra.mxu0 0.0
        %2348 = vmatprep.subr.mxu0 0.0
        %2349 = vmatpush1.msra.mxu0 0.0
        %2350 = vmatprep.subr.mxu0 0.0
        %2351 = vmatpush1.msra.mxu0 0.0
        %2352 = vmatprep.subr.mxu0 0.0
        %2353 = vmatpush1.msra.mxu0 0.0
        %2354 = vmatprep.subr.mxu0 0.0
        %2355 = vmatpush1.msra.mxu0 0.0
        %2356 = vmatprep.subr.mxu0 0.0
        %2357 = vmatpush1.msra.mxu0 0.0
        %2358 = vmatprep.subr.mxu0 0.0
        %2359 = vmatpush1.msra.mxu0 0.0
        %2360 = vmatprep.subr.mxu0 0.0
        %2361 = vmatpush1.msra.mxu0 0.0
        %2362 = vmatprep.subr.mxu0 0.0
        %2363 = vmatpush1.msra.mxu0 0.0
        %2364 = vmatprep.subr.mxu0 0.0
        %2365 = vmatpush1.msra.mxu0 0.0
        %2366 = vmatprep.subr.mxu0 0.0
        %2367 = vmatpush1.msra.mxu0 0.0
        %2368 = vmatprep.subr.mxu0 0.0
        %2369 = vmatpush1.msra.mxu0 0.0
        %2370 = vmatprep.mubr.f32.mxu0 0.0
        %2371 = vmatmul.mubr.f32.gmra.mrb[0].mxu0 %v2298
        %v2372 = vpop.f32.mrb[0].mxu0
        %v2373 = vadd.f32 0.0, %v2372
        %v2374 = vpop.f32.mrb[0].mxu0
        %2375 = vmatprep.mubr.f32.mxu0 0.0
        %2376 = vmatmul.mubr.f32.gmra.mrb[0].mxu0 %v2301
        %v2377 = vpop.f32.mrb[0].mxu0
        %v2378 = vadd.f32 0.0, %v2377
        %v2379 = vpop.f32.mrb[0].mxu0
        %2380 = vdwg.mxu0
        %v2381 = vadd.f32 %v2293, %v2373
        %v2382 = vadd.f32 %v2294, %v2378
        %s2383 = smul.u32 %s1552, 16
        %s2384 = scalar_lea.vmem [#allocation4], %s2383
        %2385 = vst.msk [vmem:[%s2384] sm:$0xff] %vm257, %v2381
        %2386 = vst.msk [vmem:[%s2384 + $0x8] sm:$0xff] %vm257, %v2382
      $region52: #{resblock2_forward.1} parent=39 // loop_footer
        %s1556 = sadd.s32 1, %s1552
      $region53: #{resblock2_forward.1} parent=39 // loop_footer_branch
        %1551 = sbr.rel target = $region49
      $region54: #{resblock2_forward.1} parent=39 // loop_exit
        _
      %v2387 = vld [vmem:[#allocation4] sm:$0xff]
      %v2388 = vld [vmem:[#allocation4 + $0x8] sm:$0xff]
      %v2389 = vld [vmem:[#allocation4 + $0x10] sm:$0xff]
      %v2390 = vld [vmem:[#allocation4 + $0x18] sm:$0xff]
      %v2391 = vld [vmem:[#allocation4 + $0x20] sm:$0xff]
      %v2392 = vld [vmem:[#allocation4 + $0x28] sm:$0xff]
      %v2393 = vld [vmem:[#allocation4 + $0x30] sm:$0xff]
      %v2394 = vld [vmem:[#allocation4 + $0x38] sm:$0xff]
      %v2395 = vld [vmem:[#allocation4 + $0x40] sm:$0xff]
      %v2396 = vld [vmem:[#allocation4 + $0x48] sm:$0xff]
      %v2397 = vld [vmem:[#allocation4 + $0x50] sm:$0xff]
      %v2398 = vld [vmem:[#allocation4 + $0x58] sm:$0xff]
      %v2399 = vld [vmem:[#allocation4 + $0x60] sm:$0xff]
      %v2400 = vld [vmem:[#allocation4 + $0x68] sm:$0xff]
      %v2401 = vld [vmem:[#allocation4 + $0x70] sm:$0xff]
      %v2402 = vld [vmem:[#allocation4 + $0x78] sm:$0xff]
      %v2403 = vld [vmem:[#allocation4 + $0x80] sm:$0xff]
      %v2404 = vld [vmem:[#allocation4 + $0x88] sm:$0xff]
      %v2405 = vld [vmem:[#allocation4 + $0x90] sm:$0xff]
      %v2406 = vld [vmem:[#allocation4 + $0x98] sm:$0xff]
      %v2407 = vld [vmem:[#allocation4 + $0xa0] sm:$0xff]
      %v2408 = vld [vmem:[#allocation4 + $0xa8] sm:$0xff]
      %v2409 = vld [vmem:[#allocation4 + $0xb0] sm:$0xff]
      %v2410 = vld [vmem:[#allocation4 + $0xb8] sm:$0xff]
      %v2411 = vld [vmem:[#allocation4 + $0xc0] sm:$0xff]
      %v2412 = vld [vmem:[#allocation4 + $0xc8] sm:$0xff]
      %v2413 = vld [vmem:[#allocation4 + $0xd0] sm:$0xff]
      %v2414 = vld [vmem:[#allocation4 + $0xd8] sm:$0xff]
      %v2415 = vld [vmem:[#allocation4 + $0xe0] sm:$0xff]
      %v2416 = vld [vmem:[#allocation4 + $0xe8] sm:$0xff]
      %v2417 = vld [vmem:[#allocation4 + $0xf0] sm:$0xff]
      %v2418 = vld [vmem:[#allocation4 + $0xf8] sm:$0xff]
      %v2419 = vsel %vm257, %v2387, 0.0
      %v2420 = vsel %vm257, %v2389, 0.0
      %v2421 = vadd.f32 %v2419, %v2420
      %v2422 = vsel %vm257, %v2391, 0.0
      %v2423 = vadd.f32 %v2421, %v2422
      %v2424 = vsel %vm257, %v2393, 0.0
      %v2425 = vadd.f32 %v2423, %v2424
      %v2426 = vsel %vm257, %v2395, 0.0
      %v2427 = vadd.f32 %v2425, %v2426
      %v2428 = vsel %vm257, %v2397, 0.0
      %v2429 = vadd.f32 %v2427, %v2428
      %v2430 = vsel %vm257, %v2399, 0.0
      %v2431 = vadd.f32 %v2429, %v2430
      %v2432 = vsel %vm257, %v2401, 0.0
      %v2433 = vadd.f32 %v2431, %v2432
      %v2434 = vsel %vm257, %v2403, 0.0
      %v2435 = vadd.f32 %v2433, %v2434
      %v2436 = vsel %vm257, %v2405, 0.0
      %v2437 = vadd.f32 %v2435, %v2436
      %v2438 = vsel %vm257, %v2407, 0.0
      %v2439 = vadd.f32 %v2437, %v2438
      %v2440 = vsel %vm257, %v2409, 0.0
      %v2441 = vadd.f32 %v2439, %v2440
      %v2442 = vsel %vm257, %v2411, 0.0
      %v2443 = vadd.f32 %v2441, %v2442
      %v2444 = vsel %vm257, %v2413, 0.0
      %v2445 = vadd.f32 %v2443, %v2444
      %v2446 = vsel %vm257, %v2415, 0.0
      %v2447 = vadd.f32 %v2445, %v2446
      %v2448 = vsel %vm257, %v2417, 0.0
      %v2449 = vadd.f32 %v2447, %v2448
      %v2450 = vsel %vm257, %v2388, 0.0
      %v2451 = vsel %vm257, %v2390, 0.0
      %v2452 = vadd.f32 %v2450, %v2451
      %v2453 = vsel %vm257, %v2392, 0.0
      %v2454 = vadd.f32 %v2452, %v2453
      %v2455 = vsel %vm257, %v2394, 0.0
      %v2456 = vadd.f32 %v2454, %v2455
      %v2457 = vsel %vm257, %v2396, 0.0
      %v2458 = vadd.f32 %v2456, %v2457
      %v2459 = vsel %vm257, %v2398, 0.0
      %v2460 = vadd.f32 %v2458, %v2459
      %v2461 = vsel %vm257, %v2400, 0.0
      %v2462 = vadd.f32 %v2460, %v2461
      %v2463 = vsel %vm257, %v2402, 0.0
      %v2464 = vadd.f32 %v2462, %v2463
      %v2465 = vsel %vm257, %v2404, 0.0
      %v2466 = vadd.f32 %v2464, %v2465
      %v2467 = vsel %vm257, %v2406, 0.0
      %v2468 = vadd.f32 %v2466, %v2467
      %v2469 = vsel %vm257, %v2408, 0.0
      %v2470 = vadd.f32 %v2468, %v2469
      %v2471 = vsel %vm257, %v2410, 0.0
      %v2472 = vadd.f32 %v2470, %v2471
      %v2473 = vsel %vm257, %v2412, 0.0
      %v2474 = vadd.f32 %v2472, %v2473
      %v2475 = vsel %vm257, %v2414, 0.0
      %v2476 = vadd.f32 %v2474, %v2475
      %v2477 = vsel %vm257, %v2416, 0.0
      %v2478 = vadd.f32 %v2476, %v2477
      %v2479 = vsel %vm257, %v2418, 0.0
      %v2480 = vadd.f32 %v2478, %v2479
      %v2481 = vsel %vm257, %v2449, 0.0
      %v2482 = vsel %vm257, %v2480, 0.0
      %v2483 = vadd.f32 %v2481, %v2482
      %v2484 = vrot.slane %v2483, 4
      %v2485 = vadd.f32 %v2483, %v2484
      %v2486 = vrot.slane %v2485, 2
      %v2487 = vadd.f32 %v2485, %v2486
      %v2488 = vrot.slane %v2487, 1
      %v2489 = vadd.f32 %v2487, %v2488
      %v2490 = vmul.f32 %v2489, %v1283
      %v2491 = vsub.f32 %v2387, %v2490
      %v2492 = vsub.f32 %v2388, %v2490
      %v2493 = vsub.f32 %v2389, %v2490
      %v2494 = vsub.f32 %v2390, %v2490
      %v2495 = vsub.f32 %v2391, %v2490
      %v2496 = vsub.f32 %v2392, %v2490
      %v2497 = vsub.f32 %v2393, %v2490
      %v2498 = vsub.f32 %v2394, %v2490
      %v2499 = vsub.f32 %v2395, %v2490
      %v2500 = vsub.f32 %v2396, %v2490
      %v2501 = vsub.f32 %v2397, %v2490
      %v2502 = vsub.f32 %v2398, %v2490
      %v2503 = vsub.f32 %v2399, %v2490
      %v2504 = vsub.f32 %v2400, %v2490
      %v2505 = vsub.f32 %v2401, %v2490
      %v2506 = vsub.f32 %v2402, %v2490
      %v2507 = vsub.f32 %v2403, %v2490
      %v2508 = vsub.f32 %v2404, %v2490
      %v2509 = vsub.f32 %v2405, %v2490
      %v2510 = vsub.f32 %v2406, %v2490
      %v2511 = vsub.f32 %v2407, %v2490
      %v2512 = vsub.f32 %v2408, %v2490
      %v2513 = vsub.f32 %v2409, %v2490
      %v2514 = vsub.f32 %v2410, %v2490
      %v2515 = vsub.f32 %v2411, %v2490
      %v2516 = vsub.f32 %v2412, %v2490
      %v2517 = vsub.f32 %v2413, %v2490
      %v2518 = vsub.f32 %v2414, %v2490
      %v2519 = vsub.f32 %v2415, %v2490
      %v2520 = vsub.f32 %v2416, %v2490
      %v2521 = vsub.f32 %v2417, %v2490
      %v2522 = vsub.f32 %v2418, %v2490
      %v2523 = vmul.f32 %v2491, %v2491
      %v2524 = vmul.f32 %v2492, %v2492
      %v2525 = vmul.f32 %v2493, %v2493
      %v2526 = vmul.f32 %v2494, %v2494
      %v2527 = vmul.f32 %v2495, %v2495
      %v2528 = vmul.f32 %v2496, %v2496
      %v2529 = vmul.f32 %v2497, %v2497
      %v2530 = vmul.f32 %v2498, %v2498
      %v2531 = vmul.f32 %v2499, %v2499
      %v2532 = vmul.f32 %v2500, %v2500
      %v2533 = vmul.f32 %v2501, %v2501
      %v2534 = vmul.f32 %v2502, %v2502
      %v2535 = vmul.f32 %v2503, %v2503
      %v2536 = vmul.f32 %v2504, %v2504
      %v2537 = vmul.f32 %v2505, %v2505
      %v2538 = vmul.f32 %v2506, %v2506
      %v2539 = vmul.f32 %v2507, %v2507
      %v2540 = vmul.f32 %v2508, %v2508
      %v2541 = vmul.f32 %v2509, %v2509
      %v2542 = vmul.f32 %v2510, %v2510
      %v2543 = vmul.f32 %v2511, %v2511
      %v2544 = vmul.f32 %v2512, %v2512
      %v2545 = vmul.f32 %v2513, %v2513
      %v2546 = vmul.f32 %v2514, %v2514
      %v2547 = vmul.f32 %v2515, %v2515
      %v2548 = vmul.f32 %v2516, %v2516
      %v2549 = vmul.f32 %v2517, %v2517
      %v2550 = vmul.f32 %v2518, %v2518
      %v2551 = vmul.f32 %v2519, %v2519
      %v2552 = vmul.f32 %v2520, %v2520
      %v2553 = vmul.f32 %v2521, %v2521
      %v2554 = vmul.f32 %v2522, %v2522
      %v2555 = vsel %vm257, %v2523, 0.0
      %v2556 = vsel %vm257, %v2525, 0.0
      %v2557 = vadd.f32 %v2555, %v2556
      %v2558 = vsel %vm257, %v2527, 0.0
      %v2559 = vadd.f32 %v2557, %v2558
      %v2560 = vsel %vm257, %v2529, 0.0
      %v2561 = vadd.f32 %v2559, %v2560
      %v2562 = vsel %vm257, %v2531, 0.0
      %v2563 = vadd.f32 %v2561, %v2562
      %v2564 = vsel %vm257, %v2533, 0.0
      %v2565 = vadd.f32 %v2563, %v2564
      %v2566 = vsel %vm257, %v2535, 0.0
      %v2567 = vadd.f32 %v2565, %v2566
      %v2568 = vsel %vm257, %v2537, 0.0
      %v2569 = vadd.f32 %v2567, %v2568
      %v2570 = vsel %vm257, %v2539, 0.0
      %v2571 = vadd.f32 %v2569, %v2570
      %v2572 = vsel %vm257, %v2541, 0.0
      %v2573 = vadd.f32 %v2571, %v2572
      %v2574 = vsel %vm257, %v2543, 0.0
      %v2575 = vadd.f32 %v2573, %v2574
      %v2576 = vsel %vm257, %v2545, 0.0
      %v2577 = vadd.f32 %v2575, %v2576
      %v2578 = vsel %vm257, %v2547, 0.0
      %v2579 = vadd.f32 %v2577, %v2578
      %v2580 = vsel %vm257, %v2549, 0.0
      %v2581 = vadd.f32 %v2579, %v2580
      %v2582 = vsel %vm257, %v2551, 0.0
      %v2583 = vadd.f32 %v2581, %v2582
      %v2584 = vsel %vm257, %v2553, 0.0
      %v2585 = vadd.f32 %v2583, %v2584
      %v2586 = vsel %vm257, %v2524, 0.0
      %v2587 = vsel %vm257, %v2526, 0.0
      %v2588 = vadd.f32 %v2586, %v2587
      %v2589 = vsel %vm257, %v2528, 0.0
      %v2590 = vadd.f32 %v2588, %v2589
      %v2591 = vsel %vm257, %v2530, 0.0
      %v2592 = vadd.f32 %v2590, %v2591
      %v2593 = vsel %vm257, %v2532, 0.0
      %v2594 = vadd.f32 %v2592, %v2593
      %v2595 = vsel %vm257, %v2534, 0.0
      %v2596 = vadd.f32 %v2594, %v2595
      %v2597 = vsel %vm257, %v2536, 0.0
      %v2598 = vadd.f32 %v2596, %v2597
      %v2599 = vsel %vm257, %v2538, 0.0
      %v2600 = vadd.f32 %v2598, %v2599
      %v2601 = vsel %vm257, %v2540, 0.0
      %v2602 = vadd.f32 %v2600, %v2601
      %v2603 = vsel %vm257, %v2542, 0.0
      %v2604 = vadd.f32 %v2602, %v2603
      %v2605 = vsel %vm257, %v2544, 0.0
      %v2606 = vadd.f32 %v2604, %v2605
      %v2607 = vsel %vm257, %v2546, 0.0
      %v2608 = vadd.f32 %v2606, %v2607
      %v2609 = vsel %vm257, %v2548, 0.0
      %v2610 = vadd.f32 %v2608, %v2609
      %v2611 = vsel %vm257, %v2550, 0.0
      %v2612 = vadd.f32 %v2610, %v2611
      %v2613 = vsel %vm257, %v2552, 0.0
      %v2614 = vadd.f32 %v2612, %v2613
      %v2615 = vsel %vm257, %v2554, 0.0
      %v2616 = vadd.f32 %v2614, %v2615
      %v2617 = vsel %vm257, %v2585, 0.0
      %v2618 = vsel %vm257, %v2616, 0.0
      %v2619 = vadd.f32 %v2617, %v2618
      %v2620 = vrot.slane %v2619, 4
      %v2621 = vadd.f32 %v2619, %v2620
      %v2622 = vrot.slane %v2621, 2
      %v2623 = vadd.f32 %v2621, %v2622
      %v2624 = vrot.slane %v2623, 1
      %v2625 = vadd.f32 %v2623, %v2624
      %v2626 = vmul.f32 %v2625, %v1283
      %v2627 = vadd.f32 %v2626, 1e-05
      %v2628 = vrsqrt.pop %v2627
      %v2629 = vmul.f32 %v2491, %v2628
      %v2630 = vmul.f32 %v2492, %v2628
      %v2631 = vmul.f32 %v2493, %v2628
      %v2632 = vmul.f32 %v2494, %v2628
      %v2633 = vmul.f32 %v2495, %v2628
      %v2634 = vmul.f32 %v2496, %v2628
      %v2635 = vmul.f32 %v2497, %v2628
      %v2636 = vmul.f32 %v2498, %v2628
      %v2637 = vmul.f32 %v2499, %v2628
      %v2638 = vmul.f32 %v2500, %v2628
      %v2639 = vmul.f32 %v2501, %v2628
      %v2640 = vmul.f32 %v2502, %v2628
      %v2641 = vmul.f32 %v2503, %v2628
      %v2642 = vmul.f32 %v2504, %v2628
      %v2643 = vmul.f32 %v2505, %v2628
      %v2644 = vmul.f32 %v2506, %v2628
      %v2645 = vmul.f32 %v2507, %v2628
      %v2646 = vmul.f32 %v2508, %v2628
      %v2647 = vmul.f32 %v2509, %v2628
      %v2648 = vmul.f32 %v2510, %v2628
      %v2649 = vmul.f32 %v2511, %v2628
      %v2650 = vmul.f32 %v2512, %v2628
      %v2651 = vmul.f32 %v2513, %v2628
      %v2652 = vmul.f32 %v2514, %v2628
      %v2653 = vmul.f32 %v2515, %v2628
      %v2654 = vmul.f32 %v2516, %v2628
      %v2655 = vmul.f32 %v2517, %v2628
      %v2656 = vmul.f32 %v2518, %v2628
      %v2657 = vmul.f32 %v2519, %v2628
      %v2658 = vmul.f32 %v2520, %v2628
      %v2659 = vmul.f32 %v2521, %v2628
      %v2660 = vmul.f32 %v2522, %v2628
      %v2661 = vadd.f32 %v225, %v2629
      %v2662 = vadd.f32 %v226, %v2630
      %v2663 = vadd.f32 %v227, %v2631
      %v2664 = vadd.f32 %v228, %v2632
      %v2665 = vadd.f32 %v229, %v2633
      %v2666 = vadd.f32 %v230, %v2634
      %v2667 = vadd.f32 %v231, %v2635
      %v2668 = vadd.f32 %v232, %v2636
      %v2669 = vadd.f32 %v233, %v2637
      %v2670 = vadd.f32 %v234, %v2638
      %v2671 = vadd.f32 %v235, %v2639
      %v2672 = vadd.f32 %v236, %v2640
      %v2673 = vadd.f32 %v237, %v2641
      %v2674 = vadd.f32 %v238, %v2642
      %v2675 = vadd.f32 %v239, %v2643
      %v2676 = vadd.f32 %v240, %v2644
      %v2677 = vadd.f32 %v241, %v2645
      %v2678 = vadd.f32 %v242, %v2646
      %v2679 = vadd.f32 %v243, %v2647
      %v2680 = vadd.f32 %v244, %v2648
      %v2681 = vadd.f32 %v245, %v2649
      %v2682 = vadd.f32 %v246, %v2650
      %v2683 = vadd.f32 %v247, %v2651
      %v2684 = vadd.f32 %v248, %v2652
      %v2685 = vadd.f32 %v249, %v2653
      %v2686 = vadd.f32 %v250, %v2654
      %v2687 = vadd.f32 %v251, %v2655
      %v2688 = vadd.f32 %v252, %v2656
      %v2689 = vadd.f32 %v253, %v2657
      %v2690 = vadd.f32 %v254, %v2658
      %v2691 = vadd.f32 %v255, %v2659
      %v2692 = vadd.f32 %v256, %v2660
      %v2693 = vmax.f32 %v2661, 0.0
      %v2694 = vmax.f32 %v2662, 0.0
      %v2695 = vmax.f32 %v2663, 0.0
      %v2696 = vmax.f32 %v2664, 0.0
      %v2697 = vmax.f32 %v2665, 0.0
      %v2698 = vmax.f32 %v2666, 0.0
      %v2699 = vmax.f32 %v2667, 0.0
      %v2700 = vmax.f32 %v2668, 0.0
      %v2701 = vmax.f32 %v2669, 0.0
      %v2702 = vmax.f32 %v2670, 0.0
      %v2703 = vmax.f32 %v2671, 0.0
      %v2704 = vmax.f32 %v2672, 0.0
      %v2705 = vmax.f32 %v2673, 0.0
      %v2706 = vmax.f32 %v2674, 0.0
      %v2707 = vmax.f32 %v2675, 0.0
      %v2708 = vmax.f32 %v2676, 0.0
      %v2709 = vmax.f32 %v2677, 0.0
      %v2710 = vmax.f32 %v2678, 0.0
      %v2711 = vmax.f32 %v2679, 0.0
      %v2712 = vmax.f32 %v2680, 0.0
      %v2713 = vmax.f32 %v2681, 0.0
      %v2714 = vmax.f32 %v2682, 0.0
      %v2715 = vmax.f32 %v2683, 0.0
      %v2716 = vmax.f32 %v2684, 0.0
      %v2717 = vmax.f32 %v2685, 0.0
      %v2718 = vmax.f32 %v2686, 0.0
      %v2719 = vmax.f32 %v2687, 0.0
      %v2720 = vmax.f32 %v2688, 0.0
      %v2721 = vmax.f32 %v2689, 0.0
      %v2722 = vmax.f32 %v2690, 0.0
      %v2723 = vmax.f32 %v2691, 0.0
      %v2724 = vmax.f32 %v2692, 0.0
      %2725 = vst.msk [vmem:[%s224] sm:$0xff] %vm257, %v2693
      %2726 = vst.msk [vmem:[%s224 + $0x8] sm:$0xff] %vm257, %v2694
      %2727 = vst.msk [vmem:[%s224 + $0x10] sm:$0xff] %vm257, %v2695
      %2728 = vst.msk [vmem:[%s224 + $0x18] sm:$0xff] %vm257, %v2696
      %2729 = vst.msk [vmem:[%s224 + $0x20] sm:$0xff] %vm257, %v2697
      %2730 = vst.msk [vmem:[%s224 + $0x28] sm:$0xff] %vm257, %v2698
      %2731 = vst.msk [vmem:[%s224 + $0x30] sm:$0xff] %vm257, %v2699
      %2732 = vst.msk [vmem:[%s224 + $0x38] sm:$0xff] %vm257, %v2700
      %2733 = vst.msk [vmem:[%s224 + $0x40] sm:$0xff] %vm257, %v2701
      %2734 = vst.msk [vmem:[%s224 + $0x48] sm:$0xff] %vm257, %v2702
      %2735 = vst.msk [vmem:[%s224 + $0x50] sm:$0xff] %vm257, %v2703
      %2736 = vst.msk [vmem:[%s224 + $0x58] sm:$0xff] %vm257, %v2704
      %2737 = vst.msk [vmem:[%s224 + $0x60] sm:$0xff] %vm257, %v2705
      %2738 = vst.msk [vmem:[%s224 + $0x68] sm:$0xff] %vm257, %v2706
      %2739 = vst.msk [vmem:[%s224 + $0x70] sm:$0xff] %vm257, %v2707
      %2740 = vst.msk [vmem:[%s224 + $0x78] sm:$0xff] %vm257, %v2708
      %2741 = vst.msk [vmem:[%s224 + $0x80] sm:$0xff] %vm257, %v2709
      %2742 = vst.msk [vmem:[%s224 + $0x88] sm:$0xff] %vm257, %v2710
      %2743 = vst.msk [vmem:[%s224 + $0x90] sm:$0xff] %vm257, %v2711
      %2744 = vst.msk [vmem:[%s224 + $0x98] sm:$0xff] %vm257, %v2712
      %2745 = vst.msk [vmem:[%s224 + $0xa0] sm:$0xff] %vm257, %v2713
      %2746 = vst.msk [vmem:[%s224 + $0xa8] sm:$0xff] %vm257, %v2714
      %2747 = vst.msk [vmem:[%s224 + $0xb0] sm:$0xff] %vm257, %v2715
      %2748 = vst.msk [vmem:[%s224 + $0xb8] sm:$0xff] %vm257, %v2716
      %2749 = vst.msk [vmem:[%s224 + $0xc0] sm:$0xff] %vm257, %v2717
      %2750 = vst.msk [vmem:[%s224 + $0xc8] sm:$0xff] %vm257, %v2718
      %2751 = vst.msk [vmem:[%s224 + $0xd0] sm:$0xff] %vm257, %v2719
      %2752 = vst.msk [vmem:[%s224 + $0xd8] sm:$0xff] %vm257, %v2720
      %2753 = vst.msk [vmem:[%s224 + $0xe0] sm:$0xff] %vm257, %v2721
      %2754 = vst.msk [vmem:[%s224 + $0xe8] sm:$0xff] %vm257, %v2722
      %2755 = vst.msk [vmem:[%s224 + $0xf0] sm:$0xff] %vm257, %v2723
      %2756 = vst.msk [vmem:[%s224 + $0xf8] sm:$0xff] %vm257, %v2724
      %p2757 = scmp.lt.s32.totalorder %s16, 1
      %s2758 = scalar_select %p2757, %s16, 1
      %s2759 = smul.addr %s2758, 32
      %s2760 = smul.addr %s2759, 8
      %s2761 = scalar_lea.vmem %s5, %s2760
      // Predicated region
      $region55: #{resblock2_forward.1} parent=39 // pred_check
        %p2762 = pneg %p144
      $region56: #{resblock2_forward.1} parent=39 // pred_check_branch
        %2764 = sbr.rel (%p2762) target = $region58
      $region57: #{resblock2_forward.1} parent=39 // pred_region
        _
      $region58: #{resblock2_forward.1} parent=39 // pred_fallthru
        _
    $region40: #{resblock2_forward.1} parent=5 // pred_fallthru
      _
    %p2765 = scmp.le.s32.totalorder 2, %s11
    // Predicated region
    $region59: #{resblock2_forward.1} parent=5 // pred_check
      %p2766 = pneg %p2765
    $region60: #{resblock2_forward.1} parent=5 // pred_check_branch
      %2768 = sbr.rel (%p2766) target = $region62
    $region61: #{resblock2_forward.1} parent=5 // pred_region
      %s2769 = ssub.s32 %s11, 2
      // Predicated region
      $region63: #{resblock2_forward.1} parent=61 // pred_check
        %p2770 = pneg %p150
      $region64: #{resblock2_forward.1} parent=61 // pred_check_branch
        %2772 = sbr.rel (%p2770) target = $region66
      $region65: #{resblock2_forward.1} parent=61 // pred_region
        %p2773 = scmp.lt.s32.totalorder %s17, 1
        %s2774 = scalar_select %p2773, %s17, 1
        %s2775 = smul.addr %s2774, 32
        %s2776 = smul.addr %s2775, 8
        %s2777 = scalar_lea.vmem %s5, %s2776
      $region66: #{resblock2_forward.1} parent=61 // pred_fallthru
        _
    $region62: #{resblock2_forward.1} parent=5 // pred_fallthru
      _
  $region6: #{resblock2_forward.1} parent=0 // loop_footer
    %s15 = sadd.s32 1, %s11
  $region7: #{resblock2_forward.1} parent=0 // loop_footer_branch
    %10 = sbr.rel target = $region3
  $region8: #{resblock2_forward.1} parent=0 // loop_exit
    _

</llo_original>
